<compile_context>
chip_gen: v7x
topology: tpu7x:2x2x1
jax: 0.10.0
libtpu: 0.0.40
codegen_flags: <defaults>
</compile_context>

<pallas_src>
import functools

import jax
import jax.numpy as jnp
import numpy as np
from jax.experimental import pallas as pl
from jax.experimental.pallas import tpu as pltpu


# ----------------------------------------------------------------------------
# Fused kernel: expand (1x1) -> depthwise (3x3, stride 1/2) -> project (1x1)
# ----------------------------------------------------------------------------
def _ir_kernel(*refs, n_planes, Wrow, tile_ho, rows_store, has_expand,
               use_res, compute_dtype):
    """One grid step = one batch element x one tile of output rows.

    Spatial positions are flattened onto the sublane axis: the two 1x1 convs
    are single large MXU matmuls and the depthwise is 9 shifted whole-tile
    loads + FMAs.  Junk (padding) columns of the flat layout are stripped by
    the wrapper.
    """
    it = iter(refs)
    x_ref = next(it)
    if has_expand:
        mask_ref, w1_ref, s1_ref, b1_ref = next(it), next(it), next(it), next(it)
    wdw_ref, s2_ref, b2_ref = next(it), next(it), next(it)
    w2_ref, s3_ref, b3_ref = next(it), next(it), next(it)
    o_ref = next(it)
    hid_ref = next(it)

    f32 = jnp.float32
    hidden = hid_ref.shape[-1]
    Mout = tile_ho * Wrow                  # output rows of this tile (flat, incl. junk cols)
    Mst = rows_store * Wrow                # stored hidden rows (flat, incl. halo)
    base = pl.program_id(1) * Mout         # flat start of this tile in the padded planes
    g = Mout & -Mout                       # largest power-of-two divisor of Mout
    if g >= 8:
        base = pl.multiple_of(base, g)

    # ---- stage 1: 1x1 expand conv + BN + ReLU6 (ONE matmul per plane) ----
    if has_expand:
        w1 = w1_ref[...].astype(compute_dtype)
        s1 = s1_ref[...]
        b1 = b1_ref[...]
    tail_zero = jnp.zeros((Wrow, hidden), hid_ref.dtype)
    for p in range(n_planes):              # 1 plane (stride 1) or 4 parity planes (stride 2)
        xs = x_ref[0, p, pl.ds(base, Mst), :]                       # (Mst, Cin) f32
        if has_expand:
            h = jnp.dot(xs.astype(compute_dtype), w1, preferred_element_type=f32)
            h = jnp.clip(h * s1 + b1, 0.0, 6.0)
            # zero the depthwise padding ring (expand(0) != 0 after the BN shift)
            h = h * mask_ref[p, pl.ds(base, Mst), :]
        else:
            h = xs.astype(f32)             # input is already zero padded
        hid_ref[p, 0:Mst, :] = h.astype(hid_ref.dtype)
        hid_ref[p, Mst:Mst + Wrow, :] = tail_zero                   # junk-tail guard rows

    # ---- stage 2: 3x3 depthwise + BN + ReLU6 on the WHOLE tile at once ----
    # Tap (kh, kw) of output flat position q reads hidden flat position q + off
    # inside plane p; junk columns produce junk that the wrapper strips.
    if n_planes == 1:                      # stride 1: single padded plane
        taps = [(0, kh * Wrow + kw) for kh in range(3) for kw in range(3)]
    else:                                  # stride 2: (row parity, col parity) planes
        taps = [((kh % 2) * 2 + (kw % 2), (kh // 2) * Wrow + (kw // 2))
                for kh in range(3) for kw in range(3)]
    w_dw = wdw_ref[...].astype(f32)        # (9, hidden); hoisted out of the tap loop
    acc = jnp.zeros((Mout, hidden), f32)
    for k, (p, off) in enumerate(taps):
        tap = hid_ref[p, off:off + Mout, :].astype(f32)
        acc = acc + tap * w_dw[k:k + 1, :]
    dw = jnp.clip(acc * s2_ref[...] + b2_ref[...], 0.0, 6.0)

    # ---- stage 3: 1x1 project conv + BN (+ residual), ONE matmul ----
    out = jnp.dot(dw.astype(compute_dtype), w2_ref[...].astype(compute_dtype),
                  preferred_element_type=f32)
    out = out * s3_ref[...] + b3_ref[...]
    if use_res:                            # stride==1 and Cin==oup only
        # residual from the f32 padded input: one flat slice for the whole tile
        res = x_ref[0, 0, pl.ds(base + Wrow + 1, Mout), :]
        out = out + res.astype(f32)
    o_ref[0, :, :] = out.astype(o_ref.dtype)


# ----------------------------------------------------------------------------
# Tile selection (generation-aware VMEM budget) and wrapper
# ----------------------------------------------------------------------------
def _vmem_capacity_bytes():
    try:
        info = pltpu.get_tpu_info()
        for name in ("vmem_capacity_bytes", "vmem_size_bytes", "vmem_bytes"):
            v = getattr(info, name, None)
            if v:
                return int(v)
    except Exception:
        pass
    return 64 * 1024 * 1024    # v7x-safe fallback


def _pick_tile_ho(Ho, *, batch, n_planes, Pp, Wrow, Cin, hidden, oup,
                  has_expand, scratch_bytes, rows_extra, budget_bytes):
    """Largest divisor of Ho whose true per-step VMEM footprint fits the budget.

    Counts the double-buffered input / mask / output blocks, the weights, the
    hidden scratch and the large live values; requires the output block's
    sublane extent to be 8-aligned unless it spans all of Ho; keeps >=2 grid
    steps when batch==1 so both v7x TensorCores get work.
    """
    def footprint(d):
        Mout = d * Wrow
        Mst = (d + rows_extra) * Wrow
        fp = 2 * n_planes * Pp * Cin * 4                              # input block x2
        if has_expand:
            fp += 2 * n_planes * (-(-Pp // 8)) * 8 * 128 * 4          # mask block x2 (lane-padded)
        fp += n_planes * (Mst + Wrow) * hidden * scratch_bytes        # hidden scratch
        fp += 2 * Mout * oup * 4                                      # output block x2
        fp += 2 * 4 * (Cin * hidden + 9 * hidden + hidden * oup + 3 * (hidden + oup))
        fp += 4 * (Mst * hidden + 2 * Mout * hidden + Mout * (oup + Cin))  # live values
        return fp

    divisors = [d for d in range(1, Ho + 1) if Ho % d == 0]
    cands = sorted([d for d in divisors if d == Ho or (d * Wrow) % 8 == 0],
                   reverse=True)
    fitting = [d for d in cands if footprint(d) <= budget_bytes]
    if batch == 1:
        multi = [d for d in fitting if Ho // d >= 2]
        if multi:
            return multi[0]
    if fitting:
        return fitting[0]
    return cands[-1]    # smallest legal tile (best effort; correct but slow)


def inverted_residual_forward(x_nhwc, params, *, stride, hidden, oup, use_res,
                              compute_dtype=jnp.bfloat16,
                              scratch_dtype=jnp.float32):
    """x_nhwc: (N, H, W, Cin) float32 -> (N, Ho, Wo, oup) float32."""
    N, H, W, Cin = x_nhwc.shape
    has_expand = "w1" in params
    assert stride in (1, 2)
    if stride == 2:
        # TODO(synk): odd H/W with stride 2 would need one extra pad row/col.
        assert H % 2 == 0 and W % 2 == 0
    Ho = (H - 1) // stride + 1
    Wo = (W - 1) // stride + 1

    x = x_nhwc.astype(jnp.float32)
    xp = jnp.pad(x, ((0, 0), (1, 1), (1, 1), (0, 0)))   # pad once, pre-expansion

    if stride == 1:
        n_planes, Hrow, Wrow = 1, H + 2, W + 2
        planes = xp[:, None]                                         # (N,1,H+2,W+2,Cin)
    else:
        # native stride-2: row/col parity planes keep every kernel access a
        # contiguous flat slice (no strided gathers, no over-compute).
        n_planes, Hrow, Wrow = 4, Ho + 1, Wo + 1
        planes = jnp.stack([xp[:, rp::2, cp::2, :]
                            for rp in (0, 1) for cp in (0, 1)], axis=1)
    Pp = Hrow * Wrow
    x_flat = planes.reshape(N, n_planes, Pp, Cin)
    rows_extra = 2 if stride == 1 else 1                 # halo rows per tile

    in_specs = [pl.BlockSpec((1, n_planes, Pp, Cin), lambda n, t: (n, 0, 0, 0))]
    args = [x_flat]

    if has_expand:
        # validity mask: 1.0 at real-input positions, 0.0 on the zero-pad ring.
        masks = []
        for p in range(n_planes):
            if stride == 1:
                rr = jnp.arange(Hrow)[:, None]
                cc = jnp.arange(Wrow)[None, :]
            else:
                rp, cp = divmod(p, 2)
                rr = 2 * jnp.arange(Hrow)[:, None] + rp
                cc = 2 * jnp.arange(Wrow)[None, :] + cp
            masks.append((rr >= 1) & (rr <= H) & (cc >= 1) & (cc <= W))
        mask = jnp.stack(masks, 0).astype(jnp.float32).reshape(n_planes, Pp, 1)
        in_specs.append(pl.BlockSpec((n_planes, Pp, 1), lambda n, t: (0, 0, 0)))
        args.append(mask)
        in_specs += [pl.BlockSpec((Cin, hidden), lambda n, t: (0, 0)),
                     pl.BlockSpec((1, hidden), lambda n, t: (0, 0)),
                     pl.BlockSpec((1, hidden), lambda n, t: (0, 0))]
        args += [params["w1"], params["s1"].reshape(1, -1),
                 params["b1"].reshape(1, -1)]

    in_specs += [pl.BlockSpec((9, hidden), lambda n, t: (0, 0)),
                 pl.BlockSpec((1, hidden), lambda n, t: (0, 0)),
                 pl.BlockSpec((1, hidden), lambda n, t: (0, 0)),
                 pl.BlockSpec((hidden, oup), lambda n, t: (0, 0)),
                 pl.BlockSpec((1, oup), lambda n, t: (0, 0)),
                 pl.BlockSpec((1, oup), lambda n, t: (0, 0))]
    args += [params["w_dw"].reshape(9, hidden),
             params["s2"].reshape(1, -1), params["b2"].reshape(1, -1),
             params["w2"],
             params["s3"].reshape(1, -1), params["b3"].reshape(1, -1)]

    # generation-aware VMEM budget (v5e/v6e: 128 MiB, v7x: 64 MiB)
    vmem_cap = _vmem_capacity_bytes()
    scratch_bytes = jnp.dtype(scratch_dtype).itemsize
    tile_ho = _pick_tile_ho(Ho, batch=N, n_planes=n_planes, Pp=Pp, Wrow=Wrow,
                            Cin=Cin, hidden=hidden, oup=oup,
                            has_expand=has_expand, scratch_bytes=scratch_bytes,
                            rows_extra=rows_extra,
                            budget_bytes=int(0.45 * vmem_cap))
    n_tiles = Ho // tile_ho
    rows_store = tile_ho + rows_extra
    Mout = tile_ho * Wrow
    Mst = rows_store * Wrow

    kernel = functools.partial(
        _ir_kernel, n_planes=n_planes, Wrow=Wrow, tile_ho=tile_ho,
        rows_store=rows_store, has_expand=has_expand, use_res=use_res,
        compute_dtype=compute_dtype)

    out_flat = pl.pallas_call(
        kernel,
        out_shape=jax.ShapeDtypeStruct((N, Ho * Wrow, oup), jnp.float32),
        grid=(N, n_tiles),
        in_specs=in_specs,
        out_specs=pl.BlockSpec((1, Mout, oup), lambda n, t: (n, t, 0)),
        scratch_shapes=[pltpu.VMEM((n_planes, Mst + Wrow, hidden), scratch_dtype)],
        compiler_params=pltpu.CompilerParams(
            dimension_semantics=("parallel", "parallel"),
            vmem_limit_bytes=max(32 * 1024 * 1024, int(0.75 * vmem_cap))),
    )(*args)

    # strip the junk (padding) columns of the flat layout; tiny XLA slice.
    return out_flat.reshape(N, Ho, Wrow, oup)[:, :, :Wo, :]


# ----------------------------------------------------------------------------
# InvertedResidual module (deterministic in-script parameters, folded BN)
# ----------------------------------------------------------------------------
def fold_bn(gamma, beta, mean, var, eps=1e-5):
    scale = gamma / jnp.sqrt(var + eps)
    shift = beta - mean * scale
    return scale, shift


class InvertedResidualPallas:
    """Inference-mode MobileNetV2 InvertedResidual with folded BatchNorm."""

    def __init__(self, inp, oup, stride, expand_ratio, key,
                 compute_dtype=jnp.bfloat16, scratch_dtype=jnp.float32):
        assert stride in (1, 2)
        self.inp, self.oup, self.stride = inp, oup, stride
        self.expand_ratio = expand_ratio
        self.hidden = int(round(inp * expand_ratio))
        self.use_res_connect = (stride == 1 and inp == oup)
        self.compute_dtype = compute_dtype
        self.scratch_dtype = scratch_dtype

        ks = jax.random.split(key, 12)
        h = self.hidden
        p = {}
        if expand_ratio != 1:
            # 1x1 expand conv: PyTorch weight (h, inp, 1, 1) -> (inp, h)
            p["w1"] = 0.1 * jax.random.normal(ks[0], (inp, h), jnp.float32)
            p["s1"], p["b1"] = fold_bn(
                jax.random.uniform(ks[1], (h,), minval=0.5, maxval=1.5),
                0.1 * jax.random.normal(ks[2], (h,)),
                0.1 * jax.random.normal(ks[3], (h,)),
                jax.random.uniform(ks[4], (h,), minval=0.5, maxval=1.5))
        # 3x3 depthwise conv: PyTorch weight (h, 1, 3, 3) -> (3, 3, h)
        p["w_dw"] = 0.1 * jax.random.normal(ks[5], (3, 3, h), jnp.float32)
        p["s2"], p["b2"] = fold_bn(
            jax.random.uniform(ks[6], (h,), minval=0.5, maxval=1.5),
            0.1 * jax.random.normal(ks[7], (h,)),
            0.1 * jax.random.normal(ks[8], (h,)),
            jax.random.uniform(ks[9], (h,), minval=0.5, maxval=1.5))
        # 1x1 project conv: PyTorch weight (oup, h, 1, 1) -> (h, oup)
        p["w2"] = 0.1 * jax.random.normal(ks[10], (h, oup), jnp.float32)
        p["s3"], p["b3"] = fold_bn(
            jnp.ones((oup,), jnp.float32),
            0.1 * jax.random.normal(ks[11], (oup,)),
            jnp.zeros((oup,), jnp.float32),
            jnp.ones((oup,), jnp.float32))
        self.p = p

    def __call__(self, x_nchw):
        # NCHW -> NHWC (small tensor; in a full NHWC model this disappears).
        x = jnp.transpose(x_nchw, (0, 2, 3, 1)).astype(jnp.float32)
        out = inverted_residual_forward(
            x, self.p, stride=self.stride, hidden=self.hidden, oup=self.oup,
            use_res=self.use_res_connect, compute_dtype=self.compute_dtype,
            scratch_dtype=self.scratch_dtype)
        return jnp.transpose(out, (0, 3, 1, 2))

    # pure-JAX reference for correctness checking
    def reference(self, x_nchw):
        x = jnp.transpose(x_nchw, (0, 2, 3, 1)).astype(jnp.float32)
        p = self.p
        h = x
        if self.expand_ratio != 1:
            h = jnp.einsum("nhwc,cd->nhwd", x, p["w1"]) * p["s1"] + p["b1"]
            h = jnp.clip(h, 0.0, 6.0)
        hd = jax.lax.conv_general_dilated(
            h, p["w_dw"].reshape(3, 3, 1, self.hidden),
            window_strides=(self.stride, self.stride),
            padding=((1, 1), (1, 1)),
            dimension_numbers=("NHWC", "HWIO", "NHWC"),
            feature_group_count=self.hidden)
        hd = jnp.clip(hd * p["s2"] + p["b2"], 0.0, 6.0)
        out = jnp.einsum("nhwc,cd->nhwd", hd, p["w2"]) * p["s3"] + p["b3"]
        if self.use_res_connect:
            out = out + x
        return jnp.transpose(out, (0, 3, 1, 2))


if __name__ == "__main__":
    key = jax.random.PRNGKey(0)
    k_x, k_a, k_b, k_d = jax.random.split(key, 4)

    N, C, H, W = 2, 8, 16, 16
    x = jax.random.normal(k_x, (N, C, H, W), jnp.float32)

    # Config A (f32 matmuls): stride 1, expand 2, residual path -- tight check.
    blk_a32 = InvertedResidualPallas(C, C, 1, 2, k_a, compute_dtype=jnp.float32)
    out_a = jax.block_until_ready(blk_a32(x))
    ref_a = jax.block_until_ready(blk_a32.reference(x))
    assert out_a.shape == (N, C, H, W), out_a.shape
    np.testing.assert_allclose(np.asarray(out_a), np.asarray(ref_a),
                               rtol=1e-3, atol=1e-3)

    # Config A (default bf16 MXU operands + bf16 hidden scratch); same params.
    blk_a16 = InvertedResidualPallas(C, C, 1, 2, k_a, scratch_dtype=jnp.bfloat16)
    out_a16 = jax.block_until_ready(blk_a16(x))
    np.testing.assert_allclose(np.asarray(out_a16), np.asarray(ref_a),
                               rtol=1e-1, atol=1e-1)

    # Config B: stride 2, expand 4, channel change (native strided depthwise).
    blk_b = InvertedResidualPallas(C, 16, 2, 4, k_b)
    out_b = jax.block_until_ready(blk_b(x))
    ref_b = jax.block_until_ready(blk_b.reference(x))
    assert out_b.shape == (N, 16, H // 2, W // 2), out_b.shape
    np.testing.assert_allclose(np.asarray(out_b), np.asarray(ref_b),
                               rtol=1e-1, atol=1e-1)

    # Config D: expand_ratio == 1 (no expand conv) with residual.
    blk_d = InvertedResidualPallas(C, C, 1, 1, k_d)
    out_d = jax.block_until_ready(blk_d(x))
    ref_d = jax.block_until_ready(blk_d.reference(x))
    np.testing.assert_allclose(np.asarray(out_d), np.asarray(ref_d),
                               rtol=1e-1, atol=1e-1)

    print("KERNEL_OK")
</pallas_src>

<mosaic_0001>
module attributes {stable_mosaic.version = 11 : i64} {
  func.func @_ir_kernel(%arg0: i32, %arg1: i32, %arg2: memref<1x1x324x8xf32, #tpu.memory_space<vmem>>, %arg3: memref<1x324x1xf32, #tpu.memory_space<vmem>>, %arg4: memref<8x16xf32, #tpu.memory_space<vmem>>, %arg5: memref<1x16xf32, #tpu.memory_space<vmem>>, %arg6: memref<1x16xf32, #tpu.memory_space<vmem>>, %arg7: memref<9x16xf32, #tpu.memory_space<vmem>>, %arg8: memref<1x16xf32, #tpu.memory_space<vmem>>, %arg9: memref<1x16xf32, #tpu.memory_space<vmem>>, %arg10: memref<16x8xf32, #tpu.memory_space<vmem>>, %arg11: memref<1x8xf32, #tpu.memory_space<vmem>>, %arg12: memref<1x8xf32, #tpu.memory_space<vmem>>, %arg13: memref<1x288x8xf32, #tpu.memory_space<vmem>>, %arg14: memref<1x342x16xf32, #tpu.memory_space<vmem>>) attributes {dimension_semantics = [#tpu.dimension_semantics<parallel>, #tpu.dimension_semantics<parallel>], iteration_bounds = array<i64: 2, 1>, scalar_prefetch = 0 : i64, scratch_operands = 1 : i64, tpu.core_type = #tpu.core_type<tc>, window_params = [{transform_indices = @transform_0, window_bounds = array<i64: 1, 1, 324, 8>}, {pipeline_mode = #tpu.pipeline_mode<synchronous>, transform_indices = @transform_1, window_bounds = array<i64: 1, 324, 1>}, {pipeline_mode = #tpu.pipeline_mode<synchronous>, transform_indices = @transform_2, window_bounds = array<i64: 8, 16>}, {pipeline_mode = #tpu.pipeline_mode<synchronous>, transform_indices = @transform_3, window_bounds = array<i64: 1, 16>}, {pipeline_mode = #tpu.pipeline_mode<synchronous>, transform_indices = @transform_4, window_bounds = array<i64: 1, 16>}, {pipeline_mode = #tpu.pipeline_mode<synchronous>, transform_indices = @transform_5, window_bounds = array<i64: 9, 16>}, {pipeline_mode = #tpu.pipeline_mode<synchronous>, transform_indices = @transform_6, window_bounds = array<i64: 1, 16>}, {pipeline_mode = #tpu.pipeline_mode<synchronous>, transform_indices = @transform_7, window_bounds = array<i64: 1, 16>}, {pipeline_mode = #tpu.pipeline_mode<synchronous>, transform_indices = @transform_8, window_bounds = array<i64: 16, 8>}, {pipeline_mode = #tpu.pipeline_mode<synchronous>, transform_indices = @transform_9, window_bounds = array<i64: 1, 8>}, {pipeline_mode = #tpu.pipeline_mode<synchronous>, transform_indices = @transform_10, window_bounds = array<i64: 1, 8>}, {transform_indices = @transform_11, window_bounds = array<i64: 1, 288, 8>}]} {
    %c288_i32 = arith.constant 288 : i32
    %0 = arith.muli %arg1, %c288_i32 : i32
    %1 = tpu.assume_multiple %0, 32 : i32
    %c0 = arith.constant 0 : index
    %c0_0 = arith.constant 0 : index
    %2 = vector.load %arg4[%c0, %c0_0] : memref<8x16xf32, #tpu.memory_space<vmem>>, vector<8x16xf32>
    %c0_1 = arith.constant 0 : index
    %c0_2 = arith.constant 0 : index
    %3 = vector.load %arg5[%c0_1, %c0_2] : memref<1x16xf32, #tpu.memory_space<vmem>>, vector<1x16xf32>
    %c0_3 = arith.constant 0 : index
    %c0_4 = arith.constant 0 : index
    %4 = vector.load %arg6[%c0_3, %c0_4] : memref<1x16xf32, #tpu.memory_space<vmem>>, vector<1x16xf32>
    %cst = arith.constant 0.000000e+00 : f32
    %5 = vector.broadcast %cst : f32 to vector<18x16xf32>
    %c0_5 = arith.constant 0 : index
    %c0_6 = arith.constant 0 : index
    %6 = arith.index_cast %1 : i32 to index
    %c0_7 = arith.constant 0 : index
    %7 = vector.load %arg2[%c0_5, %c0_6, %6, %c0_7] : memref<1x1x324x8xf32, #tpu.memory_space<vmem>>, vector<1x1x324x8xf32>
    %8 = vector.shape_cast %7 : vector<1x1x324x8xf32> to vector<324x8xf32>
    %cst_8 = arith.constant dense<0.000000e+00> : vector<324x16xf32>
    %9 = tpu.matmul %8, %2, %cst_8 {dimension_numbers = #tpu.dot_dimension_numbers<[1], [0], [0], [1], [0, 0, 1, 1], [], []>} : vector<324x8xf32>, vector<8x16xf32>, vector<324x16xf32> -> vector<324x16xf32>
    %10 = vector.broadcast %3 : vector<1x16xf32> to vector<324x16xf32>
    %11 = arith.mulf %9, %10 : vector<324x16xf32>
    %12 = vector.broadcast %4 : vector<1x16xf32> to vector<324x16xf32>
    %13 = arith.addf %11, %12 : vector<324x16xf32>
    %cst_9 = arith.constant 0.000000e+00 : f32
    %cst_10 = arith.constant 6.000000e+00 : f32
    %14 = vector.broadcast %cst_9 : f32 to vector<324x16xf32>
    %15 = arith.maximumf %14, %13 : vector<324x16xf32>
    %16 = vector.broadcast %cst_10 : f32 to vector<324x16xf32>
    %17 = arith.minimumf %16, %15 : vector<324x16xf32>
    %c0_11 = arith.constant 0 : index
    %18 = arith.index_cast %1 : i32 to index
    %c0_12 = arith.constant 0 : index
    %19 = vector.load %arg3[%c0_11, %18, %c0_12] : memref<1x324x1xf32, #tpu.memory_space<vmem>>, vector<1x324x1xf32>
    %20 = vector.shape_cast %19 : vector<1x324x1xf32> to vector<324x1xf32>
    %21 = vector.broadcast %20 : vector<324x1xf32> to vector<324x16xf32>
    %22 = arith.mulf %17, %21 : vector<324x16xf32>
    %c0_13 = arith.constant 0 : index
    %c0_14 = arith.constant 0 : index
    %c0_15 = arith.constant 0 : index
    %23 = vector.load %arg14[%c0_13, %c0_14, %c0_15] : memref<1x342x16xf32, #tpu.memory_space<vmem>>, vector<1x324x16xf32>
    %24 = vector.shape_cast %23 : vector<1x324x16xf32> to vector<324x16xf32>
    %25 = vector.shape_cast %22 : vector<324x16xf32> to vector<1x324x16xf32>
    tpu.vector_store %arg14[%c0_13, %c0_14, %c0_15], %25 {strides = array<i32>} : memref<1x342x16xf32, #tpu.memory_space<vmem>>, vector<1x324x16xf32>,
    %c0_16 = arith.constant 0 : index
    %c324 = arith.constant 324 : index
    %c0_17 = arith.constant 0 : index
    %26 = vector.load %arg14[%c0_16, %c324, %c0_17] : memref<1x342x16xf32, #tpu.memory_space<vmem>>, vector<1x18x16xf32>
    %27 = vector.shape_cast %26 : vector<1x18x16xf32> to vector<18x16xf32>
    %28 = vector.shape_cast %5 : vector<18x16xf32> to vector<1x18x16xf32>
    tpu.vector_store %arg14[%c0_16, %c324, %c0_17], %28 {strides = array<i32>} : memref<1x342x16xf32, #tpu.memory_space<vmem>>, vector<1x18x16xf32>,
    %c0_18 = arith.constant 0 : index
    %c0_19 = arith.constant 0 : index
    %29 = vector.load %arg7[%c0_18, %c0_19] : memref<9x16xf32, #tpu.memory_space<vmem>>, vector<9x16xf32>
    %cst_20 = arith.constant 0.000000e+00 : f32
    %30 = vector.broadcast %cst_20 : f32 to vector<288x16xf32>
    %c0_21 = arith.constant 0 : index
    %c0_22 = arith.constant 0 : index
    %c0_23 = arith.constant 0 : index
    %31 = vector.load %arg14[%c0_21, %c0_22, %c0_23] : memref<1x342x16xf32, #tpu.memory_space<vmem>>, vector<1x288x16xf32>
    %32 = vector.shape_cast %31 : vector<1x288x16xf32> to vector<288x16xf32>
    %33 = vector.extract_strided_slice %29 {offsets = [0, 0], sizes = [1, 16], strides = [1, 1]} : vector<9x16xf32> to vector<1x16xf32>
    %34 = vector.broadcast %33 : vector<1x16xf32> to vector<288x16xf32>
    %35 = arith.mulf %32, %34 : vector<288x16xf32>
    %36 = arith.addf %30, %35 : vector<288x16xf32>
    %c0_24 = arith.constant 0 : index
    %c1 = arith.constant 1 : index
    %c0_25 = arith.constant 0 : index
    %37 = vector.load %arg14[%c0_24, %c1, %c0_25] : memref<1x342x16xf32, #tpu.memory_space<vmem>>, vector<1x288x16xf32>
    %38 = vector.shape_cast %37 : vector<1x288x16xf32> to vector<288x16xf32>
    %39 = vector.extract_strided_slice %29 {offsets = [1, 0], sizes = [1, 16], strides = [1, 1]} : vector<9x16xf32> to vector<1x16xf32>
    %40 = vector.broadcast %39 : vector<1x16xf32> to vector<288x16xf32>
    %41 = arith.mulf %38, %40 : vector<288x16xf32>
    %42 = arith.addf %36, %41 : vector<288x16xf32>
    %c0_26 = arith.constant 0 : index
    %c2 = arith.constant 2 : index
    %c0_27 = arith.constant 0 : index
    %43 = vector.load %arg14[%c0_26, %c2, %c0_27] : memref<1x342x16xf32, #tpu.memory_space<vmem>>, vector<1x288x16xf32>
    %44 = vector.shape_cast %43 : vector<1x288x16xf32> to vector<288x16xf32>
    %45 = vector.extract_strided_slice %29 {offsets = [2, 0], sizes = [1, 16], strides = [1, 1]} : vector<9x16xf32> to vector<1x16xf32>
    %46 = vector.broadcast %45 : vector<1x16xf32> to vector<288x16xf32>
    %47 = arith.mulf %44, %46 : vector<288x16xf32>
    %48 = arith.addf %42, %47 : vector<288x16xf32>
    %c0_28 = arith.constant 0 : index
    %c18 = arith.constant 18 : index
    %c0_29 = arith.constant 0 : index
    %49 = vector.load %arg14[%c0_28, %c18, %c0_29] : memref<1x342x16xf32, #tpu.memory_space<vmem>>, vector<1x288x16xf32>
    %50 = vector.shape_cast %49 : vector<1x288x16xf32> to vector<288x16xf32>
    %51 = vector.extract_strided_slice %29 {offsets = [3, 0], sizes = [1, 16], strides = [1, 1]} : vector<9x16xf32> to vector<1x16xf32>
    %52 = vector.broadcast %51 : vector<1x16xf32> to vector<288x16xf32>
    %53 = arith.mulf %50, %52 : vector<288x16xf32>
    %54 = arith.addf %48, %53 : vector<288x16xf32>
    %c0_30 = arith.constant 0 : index
    %c19 = arith.constant 19 : index
    %c0_31 = arith.constant 0 : index
    %55 = vector.load %arg14[%c0_30, %c19, %c0_31] : memref<1x342x16xf32, #tpu.memory_space<vmem>>, vector<1x288x16xf32>
    %56 = vector.shape_cast %55 : vector<1x288x16xf32> to vector<288x16xf32>
    %57 = vector.extract_strided_slice %29 {offsets = [4, 0], sizes = [1, 16], strides = [1, 1]} : vector<9x16xf32> to vector<1x16xf32>
    %58 = vector.broadcast %57 : vector<1x16xf32> to vector<288x16xf32>
    %59 = arith.mulf %56, %58 : vector<288x16xf32>
    %60 = arith.addf %54, %59 : vector<288x16xf32>
    %c0_32 = arith.constant 0 : index
    %c20 = arith.constant 20 : index
    %c0_33 = arith.constant 0 : index
    %61 = vector.load %arg14[%c0_32, %c20, %c0_33] : memref<1x342x16xf32, #tpu.memory_space<vmem>>, vector<1x288x16xf32>
    %62 = vector.shape_cast %61 : vector<1x288x16xf32> to vector<288x16xf32>
    %63 = vector.extract_strided_slice %29 {offsets = [5, 0], sizes = [1, 16], strides = [1, 1]} : vector<9x16xf32> to vector<1x16xf32>
    %64 = vector.broadcast %63 : vector<1x16xf32> to vector<288x16xf32>
    %65 = arith.mulf %62, %64 : vector<288x16xf32>
    %66 = arith.addf %60, %65 : vector<288x16xf32>
    %c0_34 = arith.constant 0 : index
    %c36 = arith.constant 36 : index
    %c0_35 = arith.constant 0 : index
    %67 = vector.load %arg14[%c0_34, %c36, %c0_35] : memref<1x342x16xf32, #tpu.memory_space<vmem>>, vector<1x288x16xf32>
    %68 = vector.shape_cast %67 : vector<1x288x16xf32> to vector<288x16xf32>
    %69 = vector.extract_strided_slice %29 {offsets = [6, 0], sizes = [1, 16], strides = [1, 1]} : vector<9x16xf32> to vector<1x16xf32>
    %70 = vector.broadcast %69 : vector<1x16xf32> to vector<288x16xf32>
    %71 = arith.mulf %68, %70 : vector<288x16xf32>
    %72 = arith.addf %66, %71 : vector<288x16xf32>
    %c0_36 = arith.constant 0 : index
    %c37 = arith.constant 37 : index
    %c0_37 = arith.constant 0 : index
    %73 = vector.load %arg14[%c0_36, %c37, %c0_37] : memref<1x342x16xf32, #tpu.memory_space<vmem>>, vector<1x288x16xf32>
    %74 = vector.shape_cast %73 : vector<1x288x16xf32> to vector<288x16xf32>
    %75 = vector.extract_strided_slice %29 {offsets = [7, 0], sizes = [1, 16], strides = [1, 1]} : vector<9x16xf32> to vector<1x16xf32>
    %76 = vector.broadcast %75 : vector<1x16xf32> to vector<288x16xf32>
    %77 = arith.mulf %74, %76 : vector<288x16xf32>
    %78 = arith.addf %72, %77 : vector<288x16xf32>
    %c0_38 = arith.constant 0 : index
    %c38 = arith.constant 38 : index
    %c0_39 = arith.constant 0 : index
    %79 = vector.load %arg14[%c0_38, %c38, %c0_39] : memref<1x342x16xf32, #tpu.memory_space<vmem>>, vector<1x288x16xf32>
    %80 = vector.shape_cast %79 : vector<1x288x16xf32> to vector<288x16xf32>
    %81 = vector.extract_strided_slice %29 {offsets = [8, 0], sizes = [1, 16], strides = [1, 1]} : vector<9x16xf32> to vector<1x16xf32>
    %82 = vector.broadcast %81 : vector<1x16xf32> to vector<288x16xf32>
    %83 = arith.mulf %80, %82 : vector<288x16xf32>
    %84 = arith.addf %78, %83 : vector<288x16xf32>
    %c0_40 = arith.constant 0 : index
    %c0_41 = arith.constant 0 : index
    %85 = vector.load %arg8[%c0_40, %c0_41] : memref<1x16xf32, #tpu.memory_space<vmem>>, vector<1x16xf32>
    %86 = vector.broadcast %85 : vector<1x16xf32> to vector<288x16xf32>
    %87 = arith.mulf %84, %86 : vector<288x16xf32>
    %c0_42 = arith.constant 0 : index
    %c0_43 = arith.constant 0 : index
    %88 = vector.load %arg9[%c0_42, %c0_43] : memref<1x16xf32, #tpu.memory_space<vmem>>, vector<1x16xf32>
    %89 = vector.broadcast %88 : vector<1x16xf32> to vector<288x16xf32>
    %90 = arith.addf %87, %89 : vector<288x16xf32>
    %cst_44 = arith.constant 0.000000e+00 : f32
    %cst_45 = arith.constant 6.000000e+00 : f32
    %91 = vector.broadcast %cst_44 : f32 to vector<288x16xf32>
    %92 = arith.maximumf %91, %90 : vector<288x16xf32>
    %93 = vector.broadcast %cst_45 : f32 to vector<288x16xf32>
    %94 = arith.minimumf %93, %92 : vector<288x16xf32>
    %c0_46 = arith.constant 0 : index
    %c0_47 = arith.constant 0 : index
    %95 = vector.load %arg10[%c0_46, %c0_47] : memref<16x8xf32, #tpu.memory_space<vmem>>, vector<16x8xf32>
    %cst_48 = arith.constant dense<0.000000e+00> : vector<288x8xf32>
    %96 = tpu.matmul %94, %95, %cst_48 {dimension_numbers = #tpu.dot_dimension_numbers<[1], [0], [0], [1], [0, 0, 1, 1], [], []>} : vector<288x16xf32>, vector<16x8xf32>, vector<288x8xf32> -> vector<288x8xf32>
    %c0_49 = arith.constant 0 : index
    %c0_50 = arith.constant 0 : index
    %97 = vector.load %arg11[%c0_49, %c0_50] : memref<1x8xf32, #tpu.memory_space<vmem>>, vector<1x8xf32>
    %98 = vector.broadcast %97 : vector<1x8xf32> to vector<288x8xf32>
    %99 = arith.mulf %96, %98 : vector<288x8xf32>
    %c0_51 = arith.constant 0 : index
    %c0_52 = arith.constant 0 : index
    %100 = vector.load %arg12[%c0_51, %c0_52] : memref<1x8xf32, #tpu.memory_space<vmem>>, vector<1x8xf32>
    %101 = vector.broadcast %100 : vector<1x8xf32> to vector<288x8xf32>
    %102 = arith.addf %99, %101 : vector<288x8xf32>
    %c18_i32 = arith.constant 18 : i32
    %103 = arith.addi %1, %c18_i32 : i32
    %c1_i32 = arith.constant 1 : i32
    %104 = arith.addi %103, %c1_i32 : i32
    %c0_53 = arith.constant 0 : index
    %c0_54 = arith.constant 0 : index
    %105 = arith.index_cast %104 : i32 to index
    %c0_55 = arith.constant 0 : index
    %106 = vector.load %arg2[%c0_53, %c0_54, %105, %c0_55] : memref<1x1x324x8xf32, #tpu.memory_space<vmem>>, vector<1x1x288x8xf32>
    %107 = vector.shape_cast %106 : vector<1x1x288x8xf32> to vector<288x8xf32>
    %108 = arith.addf %102, %107 : vector<288x8xf32>
    %c0_56 = arith.constant 0 : index
    %c0_57 = arith.constant 0 : index
    %c0_58 = arith.constant 0 : index
    %109 = vector.load %arg13[%c0_56, %c0_57, %c0_58] : memref<1x288x8xf32, #tpu.memory_space<vmem>>, vector<1x288x8xf32>
    %110 = vector.shape_cast %109 : vector<1x288x8xf32> to vector<288x8xf32>
    %111 = vector.shape_cast %108 : vector<288x8xf32> to vector<1x288x8xf32>
    tpu.vector_store %arg13[%c0_56, %c0_57, %c0_58], %111 {strides = array<i32>} : memref<1x288x8xf32, #tpu.memory_space<vmem>>, vector<1x288x8xf32>,
    return
  }
  func.func @transform_0(%arg0: i32, %arg1: i32) -> (i32, i32, i32, i32) {
    %c0_i32 = arith.constant 0 : i32
    %c0_i32_0 = arith.constant 0 : i32
    %c0_i32_1 = arith.constant 0 : i32
    %c0_i32_2 = arith.constant 0 : i32
    return %arg0, %c0_i32, %c0_i32_0, %c0_i32_1 : i32, i32, i32, i32
  }
  func.func @transform_1(%arg0: i32, %arg1: i32) -> (i32, i32, i32) {
    %c0_i32 = arith.constant 0 : i32
    %c0_i32_0 = arith.constant 0 : i32
    %c0_i32_1 = arith.constant 0 : i32
    %c0_i32_2 = arith.constant 0 : i32
    return %c0_i32, %c0_i32_0, %c0_i32_1 : i32, i32, i32
  }
  func.func @transform_2(%arg0: i32, %arg1: i32) -> (i32, i32) {
    %c0_i32 = arith.constant 0 : i32
    %c0_i32_0 = arith.constant 0 : i32
    %c0_i32_1 = arith.constant 0 : i32
    return %c0_i32, %c0_i32_0 : i32, i32
  }
  func.func @transform_3(%arg0: i32, %arg1: i32) -> (i32, i32) {
    %c0_i32 = arith.constant 0 : i32
    %c0_i32_0 = arith.constant 0 : i32
    %c0_i32_1 = arith.constant 0 : i32
    return %c0_i32, %c0_i32_0 : i32, i32
  }
  func.func @transform_4(%arg0: i32, %arg1: i32) -> (i32, i32) {
    %c0_i32 = arith.constant 0 : i32
    %c0_i32_0 = arith.constant 0 : i32
    %c0_i32_1 = arith.constant 0 : i32
    return %c0_i32, %c0_i32_0 : i32, i32
  }
  func.func @transform_5(%arg0: i32, %arg1: i32) -> (i32, i32) {
    %c0_i32 = arith.constant 0 : i32
    %c0_i32_0 = arith.constant 0 : i32
    %c0_i32_1 = arith.constant 0 : i32
    return %c0_i32, %c0_i32_0 : i32, i32
  }
  func.func @transform_6(%arg0: i32, %arg1: i32) -> (i32, i32) {
    %c0_i32 = arith.constant 0 : i32
    %c0_i32_0 = arith.constant 0 : i32
    %c0_i32_1 = arith.constant 0 : i32
    return %c0_i32, %c0_i32_0 : i32, i32
  }
  func.func @transform_7(%arg0: i32, %arg1: i32) -> (i32, i32) {
    %c0_i32 = arith.constant 0 : i32
    %c0_i32_0 = arith.constant 0 : i32
    %c0_i32_1 = arith.constant 0 : i32
    return %c0_i32, %c0_i32_0 : i32, i32
  }
  func.func @transform_8(%arg0: i32, %arg1: i32) -> (i32, i32) {
    %c0_i32 = arith.constant 0 : i32
    %c0_i32_0 = arith.constant 0 : i32
    %c0_i32_1 = arith.constant 0 : i32
    return %c0_i32, %c0_i32_0 : i32, i32
  }
  func.func @transform_9(%arg0: i32, %arg1: i32) -> (i32, i32) {
    %c0_i32 = arith.constant 0 : i32
    %c0_i32_0 = arith.constant 0 : i32
    %c0_i32_1 = arith.constant 0 : i32
    return %c0_i32, %c0_i32_0 : i32, i32
  }
  func.func @transform_10(%arg0: i32, %arg1: i32) -> (i32, i32) {
    %c0_i32 = arith.constant 0 : i32
    %c0_i32_0 = arith.constant 0 : i32
    %c0_i32_1 = arith.constant 0 : i32
    return %c0_i32, %c0_i32_0 : i32, i32
  }
  func.func @transform_11(%arg0: i32, %arg1: i32) -> (i32, i32, i32) {
    %c0_i32 = arith.constant 0 : i32
    %c0_i32_0 = arith.constant 0 : i32
    return %arg0, %arg1, %c0_i32 : i32, i32, i32
  }
}

</mosaic_0001>

<llo_original>
// kernel: tpu_custom_call.1
$region0: #{tpu_custom_call.1}
  #allocation0 [shape = 'u32[]', space=smem, size = 0x4, offset = 0x4, fixed_abs, tag = 'smem constant byte address 0x4 - core index']
  #allocation1 [shape = 'u32[144,128]{1,0:T(1,128)}', space=vmem, size = 0x12000, scoped, tag = 'internal scratch']
  #allocation2 [shape = 'f32[1,342,16]{2,1,0:T(8,128)}', space=vmem, size = 0x2b000, scoped, tag = 'scratch operand']
  %s0 = inlined_call_operand.vmem [shape: f32[2,1,324,8], index: 0, kind: input, shape index: {}]
  %s1 = inlined_call_operand.vmem [shape: f32[1,324,1], index: 1, kind: input, shape index: {}]
  %s2 = inlined_call_operand.vmem [shape: f32[8,16], index: 2, kind: input, shape index: {}]
  %s3 = inlined_call_operand.vmem [shape: f32[1,16], index: 3, kind: input, shape index: {}]
  %s4 = inlined_call_operand.vmem [shape: f32[1,16], index: 4, kind: input, shape index: {}]
  %s5 = inlined_call_operand.vmem [shape: f32[9,16], index: 5, kind: input, shape index: {}]
  %s6 = inlined_call_operand.vmem [shape: f32[1,16], index: 6, kind: input, shape index: {}]
  %s7 = inlined_call_operand.vmem [shape: f32[1,16], index: 7, kind: input, shape index: {}]
  %s8 = inlined_call_operand.vmem [shape: f32[16,8], index: 8, kind: input, shape index: {}]
  %s9 = inlined_call_operand.vmem [shape: f32[1,8], index: 9, kind: input, shape index: {}]
  %s10 = inlined_call_operand.vmem [shape: f32[1,8], index: 10, kind: input, shape index: {}]
  %s11 = inlined_call_operand.vmem [shape: f32[2,288,8], index: 11, kind: output, shape index: {}]
  %s12 = sld [smem:[#allocation0]]
  $region77: #{tpu_custom_call.1} parent=0
    _
  %s14 = ssub.s32 1, %s12
  %s15 = scalar_select 0, %s14, %s12
  loop: start=0, step=1, limit=4
  $region2: #{tpu_custom_call.1} parent=0 // loop_pre_header
    _
  $region3: #{tpu_custom_call.1} parent=0 // loop_header
    %s17 = sphi 0, %s21
    %p18 = scmp.ge.s32.totalorder %s17, 4
    %s24 = sphi 0, %s36
    %s25 = sphi 0, %s32
    %s26 = sphi 0, %s24
    %s27 = sphi 0, %s25
    %s28 = sphi 0, %s26
    %s29 = sphi 0, %s27
    %s39 = sphi 0, %s41
    %s42 = sphi 0, %s39
    %s43 = sphi 0, %s42
    %s59 = sphi 0, %s43
    %s63 = sphi 0, %s63
    %s65 = sphi 0, %s63
    %s66 = sphi 0, %s65
    %s80 = sphi 0, %s66
    %s84 = sphi 0, %s84
    %s86 = sphi 0, %s84
    %s87 = sphi 0, %s86
    %s101 = sphi 0, %s87
    %s105 = sphi 0, %s105
    %s107 = sphi 0, %s105
    %s108 = sphi 0, %s107
    %s122 = sphi 0, %s108
    %s126 = sphi 0, %s126
    %s128 = sphi 0, %s126
    %s129 = sphi 0, %s128
    %s143 = sphi 0, %s129
    %s147 = sphi 0, %s147
    %s149 = sphi 0, %s147
    %s150 = sphi 0, %s149
    %s164 = sphi 0, %s150
    %s168 = sphi 0, %s168
    %s170 = sphi 0, %s168
    %s171 = sphi 0, %s170
    %s185 = sphi 0, %s171
    %s189 = sphi 0, %s189
    %s191 = sphi 0, %s189
    %s192 = sphi 0, %s191
    %s206 = sphi 0, %s192
    %s210 = sphi 0, %s210
    %s212 = sphi 0, %s210
    %s213 = sphi 0, %s212
    %s227 = sphi 0, %s213
    %s231 = sphi 0, %s231
    %s233 = sphi 0, %s231
    %s234 = sphi 0, %s233
    %s248 = sphi 0, %s234
    %s252 = sphi 0, %s252
    %s254 = sphi 0, %s252
    %s255 = sphi 0, %s254
    %s269 = sphi 0, %s255
    %s277 = sphi 0, %s279
    %s280 = sphi 0, %s277
    %s281 = sphi 0, %s280
    %s297 = sphi 0, %s281
  $region4: #{tpu_custom_call.1} parent=0 // loop_header_branch
    %20 = sbr.rel (%p18) target = $region8
  $region5: #{tpu_custom_call.1} parent=0 // loop_body
    %s22 = ssub.s32 %s17, 1
    %s23 = ssub.s32 %s17, 2
    %s30 = sadd.s32 1, %s25
    %p31 = scmp.ge.s32.totalorder %s30, 1
    %s32 = scalar_select %p31, 0, %s30
    %s33 = sadd.s32 1, %s24
    %s34 = scalar_select %p31, %s33, %s24
    %p35 = scmp.ge.s32.totalorder %s34, 2
    %s36 = scalar_select %p35, 0, %s34
    %s37 = ssub.s32 %s24, %s36
    %p38 = scmp.eq.s32.totalorder %s37, 0
    %s40 = sadd.s32 %s39, 1
    %s41 = scalar_select %p38, %s39, %s40
    %p44 = pneg %p38
    %p45 = scmp.eq.s32.totalorder %s17, 1
    %p46 = por %p44, %p45
    %p47 = scmp.ne.s32.totalorder %s39, %s42
    %p48 = scmp.eq.s32.totalorder %s17, 0
    %p49 = por %p47, %p48
    %p50 = scmp.ne.s32.totalorder %s39, %s42
    %p51 = scmp.eq.s32.totalorder %s22, 1
    %p52 = por %p50, %p51
    %p53 = scmp.ne.s32.totalorder %s42, %s43
    %p54 = scmp.eq.s32.totalorder %s22, 0
    %p55 = por %p53, %p54
    %p56 = scmp.ne.s32.totalorder %s42, %s43
    %p57 = scmp.eq.s32.totalorder %s23, 1
    %p58 = por %p56, %p57
    %p60 = scmp.ne.s32.totalorder %s43, %s59
    %p61 = scmp.eq.s32.totalorder %s23, 0
    %p62 = por %p60, %p61
    %s64 = sadd.s32 %s63, 1
    %p67 = scmp.eq.s32.totalorder %s17, 1
    %p68 = scmp.ne.s32.totalorder %s63, %s65
    %p69 = scmp.eq.s32.totalorder %s17, 0
    %p70 = por %p68, %p69
    %p71 = scmp.ne.s32.totalorder %s63, %s65
    %p72 = scmp.eq.s32.totalorder %s22, 1
    %p73 = por %p71, %p72
    %p74 = scmp.ne.s32.totalorder %s65, %s66
    %p75 = scmp.eq.s32.totalorder %s22, 0
    %p76 = por %p74, %p75
    %p77 = scmp.ne.s32.totalorder %s65, %s66
    %p78 = scmp.eq.s32.totalorder %s23, 1
    %p79 = por %p77, %p78
    %p81 = scmp.ne.s32.totalorder %s66, %s80
    %p82 = scmp.eq.s32.totalorder %s23, 0
    %p83 = por %p81, %p82
    %s85 = sadd.s32 %s84, 1
    %p88 = scmp.eq.s32.totalorder %s17, 1
    %p89 = scmp.ne.s32.totalorder %s84, %s86
    %p90 = scmp.eq.s32.totalorder %s17, 0
    %p91 = por %p89, %p90
    %p92 = scmp.ne.s32.totalorder %s84, %s86
    %p93 = scmp.eq.s32.totalorder %s22, 1
    %p94 = por %p92, %p93
    %p95 = scmp.ne.s32.totalorder %s86, %s87
    %p96 = scmp.eq.s32.totalorder %s22, 0
    %p97 = por %p95, %p96
    %p98 = scmp.ne.s32.totalorder %s86, %s87
    %p99 = scmp.eq.s32.totalorder %s23, 1
    %p100 = por %p98, %p99
    %p102 = scmp.ne.s32.totalorder %s87, %s101
    %p103 = scmp.eq.s32.totalorder %s23, 0
    %p104 = por %p102, %p103
    %s106 = sadd.s32 %s105, 1
    %p109 = scmp.eq.s32.totalorder %s17, 1
    %p110 = scmp.ne.s32.totalorder %s105, %s107
    %p111 = scmp.eq.s32.totalorder %s17, 0
    %p112 = por %p110, %p111
    %p113 = scmp.ne.s32.totalorder %s105, %s107
    %p114 = scmp.eq.s32.totalorder %s22, 1
    %p115 = por %p113, %p114
    %p116 = scmp.ne.s32.totalorder %s107, %s108
    %p117 = scmp.eq.s32.totalorder %s22, 0
    %p118 = por %p116, %p117
    %p119 = scmp.ne.s32.totalorder %s107, %s108
    %p120 = scmp.eq.s32.totalorder %s23, 1
    %p121 = por %p119, %p120
    %p123 = scmp.ne.s32.totalorder %s108, %s122
    %p124 = scmp.eq.s32.totalorder %s23, 0
    %p125 = por %p123, %p124
    %s127 = sadd.s32 %s126, 1
    %p130 = scmp.eq.s32.totalorder %s17, 1
    %p131 = scmp.ne.s32.totalorder %s126, %s128
    %p132 = scmp.eq.s32.totalorder %s17, 0
    %p133 = por %p131, %p132
    %p134 = scmp.ne.s32.totalorder %s126, %s128
    %p135 = scmp.eq.s32.totalorder %s22, 1
    %p136 = por %p134, %p135
    %p137 = scmp.ne.s32.totalorder %s128, %s129
    %p138 = scmp.eq.s32.totalorder %s22, 0
    %p139 = por %p137, %p138
    %p140 = scmp.ne.s32.totalorder %s128, %s129
    %p141 = scmp.eq.s32.totalorder %s23, 1
    %p142 = por %p140, %p141
    %p144 = scmp.ne.s32.totalorder %s129, %s143
    %p145 = scmp.eq.s32.totalorder %s23, 0
    %p146 = por %p144, %p145
    %s148 = sadd.s32 %s147, 1
    %p151 = scmp.eq.s32.totalorder %s17, 1
    %p152 = scmp.ne.s32.totalorder %s147, %s149
    %p153 = scmp.eq.s32.totalorder %s17, 0
    %p154 = por %p152, %p153
    %p155 = scmp.ne.s32.totalorder %s147, %s149
    %p156 = scmp.eq.s32.totalorder %s22, 1
    %p157 = por %p155, %p156
    %p158 = scmp.ne.s32.totalorder %s149, %s150
    %p159 = scmp.eq.s32.totalorder %s22, 0
    %p160 = por %p158, %p159
    %p161 = scmp.ne.s32.totalorder %s149, %s150
    %p162 = scmp.eq.s32.totalorder %s23, 1
    %p163 = por %p161, %p162
    %p165 = scmp.ne.s32.totalorder %s150, %s164
    %p166 = scmp.eq.s32.totalorder %s23, 0
    %p167 = por %p165, %p166
    %s169 = sadd.s32 %s168, 1
    %p172 = scmp.eq.s32.totalorder %s17, 1
    %p173 = scmp.ne.s32.totalorder %s168, %s170
    %p174 = scmp.eq.s32.totalorder %s17, 0
    %p175 = por %p173, %p174
    %p176 = scmp.ne.s32.totalorder %s168, %s170
    %p177 = scmp.eq.s32.totalorder %s22, 1
    %p178 = por %p176, %p177
    %p179 = scmp.ne.s32.totalorder %s170, %s171
    %p180 = scmp.eq.s32.totalorder %s22, 0
    %p181 = por %p179, %p180
    %p182 = scmp.ne.s32.totalorder %s170, %s171
    %p183 = scmp.eq.s32.totalorder %s23, 1
    %p184 = por %p182, %p183
    %p186 = scmp.ne.s32.totalorder %s171, %s185
    %p187 = scmp.eq.s32.totalorder %s23, 0
    %p188 = por %p186, %p187
    %s190 = sadd.s32 %s189, 1
    %p193 = scmp.eq.s32.totalorder %s17, 1
    %p194 = scmp.ne.s32.totalorder %s189, %s191
    %p195 = scmp.eq.s32.totalorder %s17, 0
    %p196 = por %p194, %p195
    %p197 = scmp.ne.s32.totalorder %s189, %s191
    %p198 = scmp.eq.s32.totalorder %s22, 1
    %p199 = por %p197, %p198
    %p200 = scmp.ne.s32.totalorder %s191, %s192
    %p201 = scmp.eq.s32.totalorder %s22, 0
    %p202 = por %p200, %p201
    %p203 = scmp.ne.s32.totalorder %s191, %s192
    %p204 = scmp.eq.s32.totalorder %s23, 1
    %p205 = por %p203, %p204
    %p207 = scmp.ne.s32.totalorder %s192, %s206
    %p208 = scmp.eq.s32.totalorder %s23, 0
    %p209 = por %p207, %p208
    %s211 = sadd.s32 %s210, 1
    %p214 = scmp.eq.s32.totalorder %s17, 1
    %p215 = scmp.ne.s32.totalorder %s210, %s212
    %p216 = scmp.eq.s32.totalorder %s17, 0
    %p217 = por %p215, %p216
    %p218 = scmp.ne.s32.totalorder %s210, %s212
    %p219 = scmp.eq.s32.totalorder %s22, 1
    %p220 = por %p218, %p219
    %p221 = scmp.ne.s32.totalorder %s212, %s213
    %p222 = scmp.eq.s32.totalorder %s22, 0
    %p223 = por %p221, %p222
    %p224 = scmp.ne.s32.totalorder %s212, %s213
    %p225 = scmp.eq.s32.totalorder %s23, 1
    %p226 = por %p224, %p225
    %p228 = scmp.ne.s32.totalorder %s213, %s227
    %p229 = scmp.eq.s32.totalorder %s23, 0
    %p230 = por %p228, %p229
    %s232 = sadd.s32 %s231, 1
    %p235 = scmp.eq.s32.totalorder %s17, 1
    %p236 = scmp.ne.s32.totalorder %s231, %s233
    %p237 = scmp.eq.s32.totalorder %s17, 0
    %p238 = por %p236, %p237
    %p239 = scmp.ne.s32.totalorder %s231, %s233
    %p240 = scmp.eq.s32.totalorder %s22, 1
    %p241 = por %p239, %p240
    %p242 = scmp.ne.s32.totalorder %s233, %s234
    %p243 = scmp.eq.s32.totalorder %s22, 0
    %p244 = por %p242, %p243
    %p245 = scmp.ne.s32.totalorder %s233, %s234
    %p246 = scmp.eq.s32.totalorder %s23, 1
    %p247 = por %p245, %p246
    %p249 = scmp.ne.s32.totalorder %s234, %s248
    %p250 = scmp.eq.s32.totalorder %s23, 0
    %p251 = por %p249, %p250
    %s253 = sadd.s32 %s252, 1
    %p256 = scmp.eq.s32.totalorder %s17, 1
    %p257 = scmp.ne.s32.totalorder %s252, %s254
    %p258 = scmp.eq.s32.totalorder %s17, 0
    %p259 = por %p257, %p258
    %p260 = scmp.ne.s32.totalorder %s252, %s254
    %p261 = scmp.eq.s32.totalorder %s22, 1
    %p262 = por %p260, %p261
    %p263 = scmp.ne.s32.totalorder %s254, %s255
    %p264 = scmp.eq.s32.totalorder %s22, 0
    %p265 = por %p263, %p264
    %p266 = scmp.ne.s32.totalorder %s254, %s255
    %p267 = scmp.eq.s32.totalorder %s23, 1
    %p268 = por %p266, %p267
    %p270 = scmp.ne.s32.totalorder %s255, %s269
    %p271 = scmp.eq.s32.totalorder %s23, 0
    %p272 = por %p270, %p271
    %s273 = ssub.s32 %s24, %s36
    %s274 = ssub.s32 %s25, %s32
    %s275 = sor.u32 %s273, %s274
    %p276 = scmp.eq.s32.totalorder %s275, 0
    %s278 = sadd.s32 %s277, 1
    %s279 = scalar_select %p276, %s277, %s278
    %p282 = pneg %p276
    %p283 = scmp.eq.s32.totalorder %s17, 1
    %p284 = por %p282, %p283
    %p285 = scmp.ne.s32.totalorder %s277, %s280
    %p286 = scmp.eq.s32.totalorder %s17, 0
    %p287 = por %p285, %p286
    %p288 = scmp.ne.s32.totalorder %s277, %s280
    %p289 = scmp.eq.s32.totalorder %s22, 1
    %p290 = por %p288, %p289
    %p291 = scmp.ne.s32.totalorder %s280, %s281
    %p292 = scmp.eq.s32.totalorder %s22, 0
    %p293 = por %p291, %p292
    %p294 = scmp.ne.s32.totalorder %s280, %s281
    %p295 = scmp.eq.s32.totalorder %s23, 1
    %p296 = por %p294, %p295
    %p298 = scmp.ne.s32.totalorder %s281, %s297
    %p299 = scmp.eq.s32.totalorder %s23, 0
    %p300 = por %p298, %p299
    %p301 = scmp.le.s32.totalorder 1, %s17
    %p302 = scmp.lt.s32.totalorder %s17, 3
    %p303 = pnand %p301, %p302
    %p304 = pneg %p303
    // Predicated region
    $region9: #{tpu_custom_call.1} parent=5 // pred_check
      _
    $region10: #{tpu_custom_call.1} parent=5 // pred_check_branch
      %306 = sbr.rel (%p303) target = $region12
    $region11: #{tpu_custom_call.1} parent=5 // pred_region
      %s307 = ssub.s32 %s17, 1
      // Predicated region
      $region13: #{tpu_custom_call.1} parent=11 // pred_check
        %p308 = pneg %p76
      $region14: #{tpu_custom_call.1} parent=11 // pred_check_branch
        %310 = sbr.rel (%p308) target = $region16
      $region15: #{tpu_custom_call.1} parent=11 // pred_region
        _
      $region16: #{tpu_custom_call.1} parent=11 // pred_fallthru
        _
      // Predicated region
      $region17: #{tpu_custom_call.1} parent=11 // pred_check
        %p311 = pneg %p97
      $region18: #{tpu_custom_call.1} parent=11 // pred_check_branch
        %313 = sbr.rel (%p311) target = $region20
      $region19: #{tpu_custom_call.1} parent=11 // pred_region
        _
      $region20: #{tpu_custom_call.1} parent=11 // pred_fallthru
        _
      // Predicated region
      $region21: #{tpu_custom_call.1} parent=11 // pred_check
        %p314 = pneg %p118
      $region22: #{tpu_custom_call.1} parent=11 // pred_check_branch
        %316 = sbr.rel (%p314) target = $region24
      $region23: #{tpu_custom_call.1} parent=11 // pred_region
        _
      $region24: #{tpu_custom_call.1} parent=11 // pred_fallthru
        _
      // Predicated region
      $region25: #{tpu_custom_call.1} parent=11 // pred_check
        %p317 = pneg %p139
      $region26: #{tpu_custom_call.1} parent=11 // pred_check_branch
        %319 = sbr.rel (%p317) target = $region28
      $region27: #{tpu_custom_call.1} parent=11 // pred_region
        _
      $region28: #{tpu_custom_call.1} parent=11 // pred_fallthru
        _
      // Predicated region
      $region29: #{tpu_custom_call.1} parent=11 // pred_check
        %p320 = pneg %p160
      $region30: #{tpu_custom_call.1} parent=11 // pred_check_branch
        %322 = sbr.rel (%p320) target = $region32
      $region31: #{tpu_custom_call.1} parent=11 // pred_region
        _
      $region32: #{tpu_custom_call.1} parent=11 // pred_fallthru
        _
      // Predicated region
      $region33: #{tpu_custom_call.1} parent=11 // pred_check
        %p323 = pneg %p181
      $region34: #{tpu_custom_call.1} parent=11 // pred_check_branch
        %325 = sbr.rel (%p323) target = $region36
      $region35: #{tpu_custom_call.1} parent=11 // pred_region
        _
      $region36: #{tpu_custom_call.1} parent=11 // pred_fallthru
        _
      // Predicated region
      $region37: #{tpu_custom_call.1} parent=11 // pred_check
        %p326 = pneg %p202
      $region38: #{tpu_custom_call.1} parent=11 // pred_check_branch
        %328 = sbr.rel (%p326) target = $region40
      $region39: #{tpu_custom_call.1} parent=11 // pred_region
        _
      $region40: #{tpu_custom_call.1} parent=11 // pred_fallthru
        _
      // Predicated region
      $region41: #{tpu_custom_call.1} parent=11 // pred_check
        %p329 = pneg %p223
      $region42: #{tpu_custom_call.1} parent=11 // pred_check_branch
        %331 = sbr.rel (%p329) target = $region44
      $region43: #{tpu_custom_call.1} parent=11 // pred_region
        _
      $region44: #{tpu_custom_call.1} parent=11 // pred_fallthru
        _
      // Predicated region
      $region45: #{tpu_custom_call.1} parent=11 // pred_check
        %p332 = pneg %p244
      $region46: #{tpu_custom_call.1} parent=11 // pred_check_branch
        %334 = sbr.rel (%p332) target = $region48
      $region47: #{tpu_custom_call.1} parent=11 // pred_region
        _
      $region48: #{tpu_custom_call.1} parent=11 // pred_fallthru
        _
      // Predicated region
      $region49: #{tpu_custom_call.1} parent=11 // pred_check
        %p335 = pneg %p265
      $region50: #{tpu_custom_call.1} parent=11 // pred_check_branch
        %337 = sbr.rel (%p335) target = $region52
      $region51: #{tpu_custom_call.1} parent=11 // pred_region
        _
      $region52: #{tpu_custom_call.1} parent=11 // pred_fallthru
        _
    $region12: #{tpu_custom_call.1} parent=5 // pred_fallthru
      _
    %p338 = scmp.lt.s32.totalorder %s17, 2
    // Predicated region
    $region53: #{tpu_custom_call.1} parent=5 // pred_check
      %p339 = pneg %p338
    $region54: #{tpu_custom_call.1} parent=5 // pred_check_branch
      %341 = sbr.rel (%p339) target = $region56
    $region55: #{tpu_custom_call.1} parent=5 // pred_region
      // Predicated region
      $region57: #{tpu_custom_call.1} parent=55 // pred_check
        %p342 = pneg %p49
      $region58: #{tpu_custom_call.1} parent=55 // pred_check_branch
        %344 = sbr.rel (%p342) target = $region60
      $region59: #{tpu_custom_call.1} parent=55 // pred_region
        %p345 = scmp.lt.s32.totalorder %s24, 1
        %s346 = scalar_select %p345, %s24, 1
        %s347 = smul.addr %s346, 41
        %s348 = smul.addr %s347, 8
        %s349 = scalar_lea.vmem %s0, %s348
      $region60: #{tpu_custom_call.1} parent=55 // pred_fallthru
        _
    $region56: #{tpu_custom_call.1} parent=5 // pred_fallthru
      _
    %p350 = scmp.le.s32.totalorder 1, %s17
    %p351 = scmp.lt.s32.totalorder %s17, 3
    %p352 = pnand %p350, %p351
    %p353 = pneg %p352
    // Predicated region
    $region61: #{tpu_custom_call.1} parent=5 // pred_check
      _
    $region62: #{tpu_custom_call.1} parent=5 // pred_check_branch
      %355 = sbr.rel (%p352) target = $region64
    $region63: #{tpu_custom_call.1} parent=5 // pred_region
      %s356 = ssub.s32 %s17, 1
      %p357 = scmp.lt.s32.totalorder %s26, 1
      %s358 = scalar_select %p357, %s26, 1
      %s359 = smul.addr %s358, 41
      %s360 = smul.addr %s359, 8
      %s361 = scalar_lea.vmem %s0, %s360
      %p362 = pneg %p55
      %p363 = pneg %p52
      %p364 = pneg %p76
      %p365 = pneg %p73
      %p366 = pneg %p97
      %p367 = pneg %p94
      %p368 = pneg %p118
      %p369 = pneg %p115
      %p370 = pneg %p139
      %p371 = pneg %p136
      %p372 = pneg %p160
      %p373 = pneg %p157
      %p374 = pneg %p181
      %p375 = pneg %p178
      %p376 = pneg %p202
      %p377 = pneg %p199
      %p378 = pneg %p223
      %p379 = pneg %p220
      %p380 = pneg %p244
      %p381 = pneg %p241
      %p382 = pneg %p265
      %p383 = pneg %p262
      %p384 = pneg %p293
      %p385 = pneg %p290
      %s386 = smul.u32 36, %s27
      %p387 = scmp.lt.s32.totalorder %s26, 1
      %s388 = scalar_select %p387, %s26, 1
      %p389 = scmp.lt.s32.totalorder %s386, 35
      %s390 = scalar_select %p389, %s386, 35
      %s391 = smul.addr %s388, 36
      %s392 = sadd.s32 %s390, %s391
      %s393 = smul.addr %s392, 8
      %s394 = scalar_lea.vmem %s11, %s393
      %p395 = scmp.lt.s32.totalorder %s26, 1
      %s396 = scalar_select %p395, %s26, 1
      %s397 = smul.addr %s396, 41
      %s398 = smul.addr %s397, 8
      %s399 = scalar_lea.vmem %s0, %s398
      %s400 = smul.u32 36, %s27
      %p401 = scmp.lt.s32.totalorder %s26, 1
      %s402 = scalar_select %p401, %s26, 1
      %p403 = scmp.lt.s32.totalorder %s400, 35
      %s404 = scalar_select %p403, %s400, 35
      %s405 = smul.addr %s402, 36
      %s406 = sadd.s32 %s404, %s405
      %s407 = smul.addr %s406, 8
      %s408 = scalar_lea.vmem %s11, %s407
      %s409 = smul.u32 36, %s27
      %s410 = smul.u32 %s27, 288
      %v411 = vld [vmem:[%s2] sm:$0xff]
      %v412 = vld [vmem:[%s3] sm:$0x1]
      %v413 = vld [vmem:[%s4] sm:$0x1]
      %s414 = scalar_lea.vmem %s399, %s410
      %v415 = vld [vmem:[%s414] sm:$0xff]
      %v416 = vld [vmem:[%s414 + $0x8] sm:$0xff]
      %v417 = vld [vmem:[%s414 + $0x10] sm:$0xff]
      %v418 = vld [vmem:[%s414 + $0x18] sm:$0xff]
      %v419 = vld [vmem:[%s414 + $0x20] sm:$0xff]
      %v420 = vld [vmem:[%s414 + $0x28] sm:$0xff]
      %v421 = vld [vmem:[%s414 + $0x30] sm:$0xff]
      %v422 = vld [vmem:[%s414 + $0x38] sm:$0xff]
      %v423 = vld [vmem:[%s414 + $0x40] sm:$0xff]
      %v424 = vld [vmem:[%s414 + $0x48] sm:$0xff]
      %v425 = vld [vmem:[%s414 + $0x50] sm:$0xff]
      %v426 = vld [vmem:[%s414 + $0x58] sm:$0xff]
      %v427 = vld [vmem:[%s414 + $0x60] sm:$0xff]
      %v428 = vld [vmem:[%s414 + $0x68] sm:$0xff]
      %v429 = vld [vmem:[%s414 + $0x70] sm:$0xff]
      %v430 = vld [vmem:[%s414 + $0x78] sm:$0xff]
      %v431 = vld [vmem:[%s414 + $0x80] sm:$0xff]
      %v432 = vld [vmem:[%s414 + $0x88] sm:$0xff]
      %v433 = vld [vmem:[%s414 + $0x90] sm:$0xff]
      %v434 = vld [vmem:[%s414 + $0x98] sm:$0xff]
      %v435 = vld [vmem:[%s414 + $0xa0] sm:$0xff]
      %v436 = vld [vmem:[%s414 + $0xa8] sm:$0xff]
      %v437 = vld [vmem:[%s414 + $0xb0] sm:$0xff]
      %v438 = vld [vmem:[%s414 + $0xb8] sm:$0xff]
      %v439 = vld [vmem:[%s414 + $0xc0] sm:$0xff]
      %v440 = vld [vmem:[%s414 + $0xc8] sm:$0xff]
      %v441 = vld [vmem:[%s414 + $0xd0] sm:$0xff]
      %v442 = vld [vmem:[%s414 + $0xd8] sm:$0xff]
      %v443 = vld [vmem:[%s414 + $0xe0] sm:$0xff]
      %v444 = vld [vmem:[%s414 + $0xe8] sm:$0xff]
      %v445 = vld [vmem:[%s414 + $0xf0] sm:$0xff]
      %v446 = vld [vmem:[%s414 + $0xf8] sm:$0xff]
      %v447 = vld [vmem:[%s414 + $0x100] sm:$0xff]
      %v448 = vld [vmem:[%s414 + $0x108] sm:$0xff]
      %v449 = vld [vmem:[%s414 + $0x110] sm:$0xff]
      %v450 = vld [vmem:[%s414 + $0x118] sm:$0xff]
      %v451 = vld [vmem:[%s414 + $0x120] sm:$0xff]
      %v452 = vld [vmem:[%s414 + $0x128] sm:$0xff]
      %v453 = vld [vmem:[%s414 + $0x130] sm:$0xff]
      %v454 = vld [vmem:[%s414 + $0x138] sm:$0xff]
      %v455 = vld [vmem:[%s414 + $0x140] sm:$0xf]
      %vm456 = vcmask 64512
      %v458 = vsel %vm456, %v415, 0
      %v461 = vsel %vm456, %v416, 0
      %v464 = vsel %vm456, %v417, 0
      %v467 = vsel %vm456, %v418, 0
      %v470 = vsel %vm456, %v419, 0
      %v473 = vsel %vm456, %v420, 0
      %v476 = vsel %vm456, %v421, 0
      %v479 = vsel %vm456, %v422, 0
      %v482 = vsel %vm456, %v423, 0
      %v485 = vsel %vm456, %v424, 0
      %v488 = vsel %vm456, %v425, 0
      %v491 = vsel %vm456, %v426, 0
      %v494 = vsel %vm456, %v427, 0
      %v497 = vsel %vm456, %v428, 0
      %v500 = vsel %vm456, %v429, 0
      %v503 = vsel %vm456, %v430, 0
      %v506 = vsel %vm456, %v431, 0
      %v509 = vsel %vm456, %v432, 0
      %v512 = vsel %vm456, %v433, 0
      %v515 = vsel %vm456, %v434, 0
      %v518 = vsel %vm456, %v435, 0
      %v521 = vsel %vm456, %v436, 0
      %v524 = vsel %vm456, %v437, 0
      %v527 = vsel %vm456, %v438, 0
      %v530 = vsel %vm456, %v439, 0
      %v533 = vsel %vm456, %v440, 0
      %v536 = vsel %vm456, %v441, 0
      %v539 = vsel %vm456, %v442, 0
      %v542 = vsel %vm456, %v443, 0
      %v545 = vsel %vm456, %v444, 0
      %v548 = vsel %vm456, %v445, 0
      %v551 = vsel %vm456, %v446, 0
      %v554 = vsel %vm456, %v447, 0
      %v557 = vsel %vm456, %v448, 0
      %v560 = vsel %vm456, %v449, 0
      %v563 = vsel %vm456, %v450, 0
      %v566 = vsel %vm456, %v451, 0
      %v569 = vsel %vm456, %v452, 0
      %v572 = vsel %vm456, %v453, 0
      %v575 = vsel %vm456, %v454, 0
      %v578 = vsel %vm456, %v455, 0
      %580 = vmatprep.subr.mxu0 0.0
      %581 = vmatpush1.msra.mxu0 %v411
      %582 = vmatprep.subr.mxu0 0.0
      %583 = vmatpush1.msra.mxu0 0.0
      %584 = vmatprep.subr.mxu0 0.0
      %585 = vmatpush1.msra.mxu0 0.0
      %586 = vmatprep.subr.mxu0 0.0
      %587 = vmatpush1.msra.mxu0 0.0
      %588 = vmatprep.subr.mxu0 0.0
      %589 = vmatpush1.msra.mxu0 0.0
      %590 = vmatprep.subr.mxu0 0.0
      %591 = vmatpush1.msra.mxu0 0.0
      %592 = vmatprep.subr.mxu0 0.0
      %593 = vmatpush1.msra.mxu0 0.0
      %594 = vmatprep.subr.mxu0 0.0
      %595 = vmatpush1.msra.mxu0 0.0
      %596 = vmatprep.subr.mxu0 0.0
      %597 = vmatpush1.msra.mxu0 0.0
      %598 = vmatprep.subr.mxu0 0.0
      %599 = vmatpush1.msra.mxu0 0.0
      %600 = vmatprep.subr.mxu0 0.0
      %601 = vmatpush1.msra.mxu0 0.0
      %602 = vmatprep.subr.mxu0 0.0
      %603 = vmatpush1.msra.mxu0 0.0
      %604 = vmatprep.subr.mxu0 0.0
      %605 = vmatpush1.msra.mxu0 0.0
      %606 = vmatprep.subr.mxu0 0.0
      %607 = vmatpush1.msra.mxu0 0.0
      %608 = vmatprep.subr.mxu0 0.0
      %609 = vmatpush1.msra.mxu0 0.0
      %610 = vmatprep.subr.mxu0 0.0
      %611 = vmatpush1.msra.mxu0 0.0
      %612 = vmatprep.subr.mxu0 0.0
      %613 = vmatpush1.msra.mxu0 0.0
      %614 = vmatprep.subr.mxu0 0.0
      %615 = vmatpush1.msra.mxu0 0.0
      %616 = vmatprep.subr.mxu0 0.0
      %617 = vmatpush1.msra.mxu0 0.0
      %618 = vmatprep.subr.mxu0 0.0
      %619 = vmatpush1.msra.mxu0 0.0
      %620 = vmatprep.subr.mxu0 0.0
      %621 = vmatpush1.msra.mxu0 0.0
      %622 = vmatprep.subr.mxu0 0.0
      %623 = vmatpush1.msra.mxu0 0.0
      %624 = vmatprep.subr.mxu0 0.0
      %625 = vmatpush1.msra.mxu0 0.0
      %626 = vmatprep.subr.mxu0 0.0
      %627 = vmatpush1.msra.mxu0 0.0
      %628 = vmatprep.subr.mxu0 0.0
      %629 = vmatpush1.msra.mxu0 0.0
      %630 = vmatprep.subr.mxu0 0.0
      %631 = vmatpush1.msra.mxu0 0.0
      %632 = vmatprep.subr.mxu0 0.0
      %633 = vmatpush1.msra.mxu0 0.0
      %634 = vmatprep.subr.mxu0 0.0
      %635 = vmatpush1.msra.mxu0 0.0
      %636 = vmatprep.subr.mxu0 0.0
      %637 = vmatpush1.msra.mxu0 0.0
      %638 = vmatprep.subr.mxu0 0.0
      %639 = vmatpush1.msra.mxu0 0.0
      %640 = vmatprep.subr.mxu0 0.0
      %641 = vmatpush1.msra.mxu0 0.0
      %642 = vmatprep.subr.mxu0 0.0
      %643 = vmatpush1.msra.mxu0 0.0
      %644 = vmatprep.mubr.f32.mxu0 0.0
      %645 = vmatmul.mubr.f32.gmra.mrb[0].mxu0 %v458
      %v646 = vpop.f32.mrb[0].mxu0
      %v647 = vadd.f32 0.0, %v646
      %v648 = vpop.f32.mrb[0].mxu0
      %649 = vmatprep.mubr.f32.mxu0 0.0
      %650 = vmatmul.mubr.f32.gmra.mrb[0].mxu0 %v461
      %v651 = vpop.f32.mrb[0].mxu0
      %v652 = vadd.f32 0.0, %v651
      %v653 = vpop.f32.mrb[0].mxu0
      %654 = vmatprep.mubr.f32.mxu0 0.0
      %655 = vmatmul.mubr.f32.gmra.mrb[0].mxu0 %v464
      %v656 = vpop.f32.mrb[0].mxu0
      %v657 = vadd.f32 0.0, %v656
      %v658 = vpop.f32.mrb[0].mxu0
      %659 = vmatprep.mubr.f32.mxu0 0.0
      %660 = vmatmul.mubr.f32.gmra.mrb[0].mxu0 %v467
      %v661 = vpop.f32.mrb[0].mxu0
      %v662 = vadd.f32 0.0, %v661
      %v663 = vpop.f32.mrb[0].mxu0
      %664 = vmatprep.mubr.f32.mxu0 0.0
      %665 = vmatmul.mubr.f32.gmra.mrb[0].mxu0 %v470
      %v666 = vpop.f32.mrb[0].mxu0
      %v667 = vadd.f32 0.0, %v666
      %v668 = vpop.f32.mrb[0].mxu0
      %669 = vmatprep.mubr.f32.mxu0 0.0
      %670 = vmatmul.mubr.f32.gmra.mrb[0].mxu0 %v473
      %v671 = vpop.f32.mrb[0].mxu0
      %v672 = vadd.f32 0.0, %v671
      %v673 = vpop.f32.mrb[0].mxu0
      %674 = vmatprep.mubr.f32.mxu0 0.0
      %675 = vmatmul.mubr.f32.gmra.mrb[0].mxu0 %v476
      %v676 = vpop.f32.mrb[0].mxu0
      %v677 = vadd.f32 0.0, %v676
      %v678 = vpop.f32.mrb[0].mxu0
      %679 = vmatprep.mubr.f32.mxu0 0.0
      %680 = vmatmul.mubr.f32.gmra.mrb[0].mxu0 %v479
      %v681 = vpop.f32.mrb[0].mxu0
      %v682 = vadd.f32 0.0, %v681
      %v683 = vpop.f32.mrb[0].mxu0
      %684 = vmatprep.mubr.f32.mxu0 0.0
      %685 = vmatmul.mubr.f32.gmra.mrb[0].mxu0 %v482
      %v686 = vpop.f32.mrb[0].mxu0
      %v687 = vadd.f32 0.0, %v686
      %v688 = vpop.f32.mrb[0].mxu0
      %689 = vmatprep.mubr.f32.mxu0 0.0
      %690 = vmatmul.mubr.f32.gmra.mrb[0].mxu0 %v485
      %v691 = vpop.f32.mrb[0].mxu0
      %v692 = vadd.f32 0.0, %v691
      %v693 = vpop.f32.mrb[0].mxu0
      %694 = vmatprep.mubr.f32.mxu0 0.0
      %695 = vmatmul.mubr.f32.gmra.mrb[0].mxu0 %v488
      %v696 = vpop.f32.mrb[0].mxu0
      %v697 = vadd.f32 0.0, %v696
      %v698 = vpop.f32.mrb[0].mxu0
      %699 = vmatprep.mubr.f32.mxu0 0.0
      %700 = vmatmul.mubr.f32.gmra.mrb[0].mxu0 %v491
      %v701 = vpop.f32.mrb[0].mxu0
      %v702 = vadd.f32 0.0, %v701
      %v703 = vpop.f32.mrb[0].mxu0
      %704 = vmatprep.mubr.f32.mxu0 0.0
      %705 = vmatmul.mubr.f32.gmra.mrb[0].mxu0 %v494
      %v706 = vpop.f32.mrb[0].mxu0
      %v707 = vadd.f32 0.0, %v706
      %v708 = vpop.f32.mrb[0].mxu0
      %709 = vmatprep.mubr.f32.mxu0 0.0
      %710 = vmatmul.mubr.f32.gmra.mrb[0].mxu0 %v497
      %v711 = vpop.f32.mrb[0].mxu0
      %v712 = vadd.f32 0.0, %v711
      %v713 = vpop.f32.mrb[0].mxu0
      %714 = vmatprep.mubr.f32.mxu0 0.0
      %715 = vmatmul.mubr.f32.gmra.mrb[0].mxu0 %v500
      %v716 = vpop.f32.mrb[0].mxu0
      %v717 = vadd.f32 0.0, %v716
      %v718 = vpop.f32.mrb[0].mxu0
      %719 = vmatprep.mubr.f32.mxu0 0.0
      %720 = vmatmul.mubr.f32.gmra.mrb[0].mxu0 %v503
      %v721 = vpop.f32.mrb[0].mxu0
      %v722 = vadd.f32 0.0, %v721
      %v723 = vpop.f32.mrb[0].mxu0
      %724 = vmatprep.mubr.f32.mxu0 0.0
      %725 = vmatmul.mubr.f32.gmra.mrb[0].mxu0 %v506
      %v726 = vpop.f32.mrb[0].mxu0
      %v727 = vadd.f32 0.0, %v726
      %v728 = vpop.f32.mrb[0].mxu0
      %729 = vmatprep.mubr.f32.mxu0 0.0
      %730 = vmatmul.mubr.f32.gmra.mrb[0].mxu0 %v509
      %v731 = vpop.f32.mrb[0].mxu0
      %v732 = vadd.f32 0.0, %v731
      %v733 = vpop.f32.mrb[0].mxu0
      %734 = vmatprep.mubr.f32.mxu0 0.0
      %735 = vmatmul.mubr.f32.gmra.mrb[0].mxu0 %v512
      %v736 = vpop.f32.mrb[0].mxu0
      %v737 = vadd.f32 0.0, %v736
      %v738 = vpop.f32.mrb[0].mxu0
      %739 = vmatprep.mubr.f32.mxu0 0.0
      %740 = vmatmul.mubr.f32.gmra.mrb[0].mxu0 %v515
      %v741 = vpop.f32.mrb[0].mxu0
      %v742 = vadd.f32 0.0, %v741
      %v743 = vpop.f32.mrb[0].mxu0
      %744 = vmatprep.mubr.f32.mxu0 0.0
      %745 = vmatmul.mubr.f32.gmra.mrb[0].mxu0 %v518
      %v746 = vpop.f32.mrb[0].mxu0
      %v747 = vadd.f32 0.0, %v746
      %v748 = vpop.f32.mrb[0].mxu0
      %749 = vmatprep.mubr.f32.mxu0 0.0
      %750 = vmatmul.mubr.f32.gmra.mrb[0].mxu0 %v521
      %v751 = vpop.f32.mrb[0].mxu0
      %v752 = vadd.f32 0.0, %v751
      %v753 = vpop.f32.mrb[0].mxu0
      %754 = vmatprep.mubr.f32.mxu0 0.0
      %755 = vmatmul.mubr.f32.gmra.mrb[0].mxu0 %v524
      %v756 = vpop.f32.mrb[0].mxu0
      %v757 = vadd.f32 0.0, %v756
      %v758 = vpop.f32.mrb[0].mxu0
      %759 = vmatprep.mubr.f32.mxu0 0.0
      %760 = vmatmul.mubr.f32.gmra.mrb[0].mxu0 %v527
      %v761 = vpop.f32.mrb[0].mxu0
      %v762 = vadd.f32 0.0, %v761
      %v763 = vpop.f32.mrb[0].mxu0
      %764 = vmatprep.mubr.f32.mxu0 0.0
      %765 = vmatmul.mubr.f32.gmra.mrb[0].mxu0 %v530
      %v766 = vpop.f32.mrb[0].mxu0
      %v767 = vadd.f32 0.0, %v766
      %v768 = vpop.f32.mrb[0].mxu0
      %769 = vmatprep.mubr.f32.mxu0 0.0
      %770 = vmatmul.mubr.f32.gmra.mrb[0].mxu0 %v533
      %v771 = vpop.f32.mrb[0].mxu0
      %v772 = vadd.f32 0.0, %v771
      %v773 = vpop.f32.mrb[0].mxu0
      %774 = vmatprep.mubr.f32.mxu0 0.0
      %775 = vmatmul.mubr.f32.gmra.mrb[0].mxu0 %v536
      %v776 = vpop.f32.mrb[0].mxu0
      %v777 = vadd.f32 0.0, %v776
      %v778 = vpop.f32.mrb[0].mxu0
      %779 = vmatprep.mubr.f32.mxu0 0.0
      %780 = vmatmul.mubr.f32.gmra.mrb[0].mxu0 %v539
      %v781 = vpop.f32.mrb[0].mxu0
      %v782 = vadd.f32 0.0, %v781
      %v783 = vpop.f32.mrb[0].mxu0
      %784 = vmatprep.mubr.f32.mxu0 0.0
      %785 = vmatmul.mubr.f32.gmra.mrb[0].mxu0 %v542
      %v786 = vpop.f32.mrb[0].mxu0
      %v787 = vadd.f32 0.0, %v786
      %v788 = vpop.f32.mrb[0].mxu0
      %789 = vmatprep.mubr.f32.mxu0 0.0
      %790 = vmatmul.mubr.f32.gmra.mrb[0].mxu0 %v545
      %v791 = vpop.f32.mrb[0].mxu0
      %v792 = vadd.f32 0.0, %v791
      %v793 = vpop.f32.mrb[0].mxu0
      %794 = vmatprep.mubr.f32.mxu0 0.0
      %795 = vmatmul.mubr.f32.gmra.mrb[0].mxu0 %v548
      %v796 = vpop.f32.mrb[0].mxu0
      %v797 = vadd.f32 0.0, %v796
      %v798 = vpop.f32.mrb[0].mxu0
      %799 = vmatprep.mubr.f32.mxu0 0.0
      %800 = vmatmul.mubr.f32.gmra.mrb[0].mxu0 %v551
      %v801 = vpop.f32.mrb[0].mxu0
      %v802 = vadd.f32 0.0, %v801
      %v803 = vpop.f32.mrb[0].mxu0
      %804 = vmatprep.mubr.f32.mxu0 0.0
      %805 = vmatmul.mubr.f32.gmra.mrb[0].mxu0 %v554
      %v806 = vpop.f32.mrb[0].mxu0
      %v807 = vadd.f32 0.0, %v806
      %v808 = vpop.f32.mrb[0].mxu0
      %809 = vmatprep.mubr.f32.mxu0 0.0
      %810 = vmatmul.mubr.f32.gmra.mrb[0].mxu0 %v557
      %v811 = vpop.f32.mrb[0].mxu0
      %v812 = vadd.f32 0.0, %v811
      %v813 = vpop.f32.mrb[0].mxu0
      %814 = vmatprep.mubr.f32.mxu0 0.0
      %815 = vmatmul.mubr.f32.gmra.mrb[0].mxu0 %v560
      %v816 = vpop.f32.mrb[0].mxu0
      %v817 = vadd.f32 0.0, %v816
      %v818 = vpop.f32.mrb[0].mxu0
      %819 = vmatprep.mubr.f32.mxu0 0.0
      %820 = vmatmul.mubr.f32.gmra.mrb[0].mxu0 %v563
      %v821 = vpop.f32.mrb[0].mxu0
      %v822 = vadd.f32 0.0, %v821
      %v823 = vpop.f32.mrb[0].mxu0
      %824 = vmatprep.mubr.f32.mxu0 0.0
      %825 = vmatmul.mubr.f32.gmra.mrb[0].mxu0 %v566
      %v826 = vpop.f32.mrb[0].mxu0
      %v827 = vadd.f32 0.0, %v826
      %v828 = vpop.f32.mrb[0].mxu0
      %829 = vmatprep.mubr.f32.mxu0 0.0
      %830 = vmatmul.mubr.f32.gmra.mrb[0].mxu0 %v569
      %v831 = vpop.f32.mrb[0].mxu0
      %v832 = vadd.f32 0.0, %v831
      %v833 = vpop.f32.mrb[0].mxu0
      %834 = vmatprep.mubr.f32.mxu0 0.0
      %835 = vmatmul.mubr.f32.gmra.mrb[0].mxu0 %v572
      %v836 = vpop.f32.mrb[0].mxu0
      %v837 = vadd.f32 0.0, %v836
      %v838 = vpop.f32.mrb[0].mxu0
      %839 = vmatprep.mubr.f32.mxu0 0.0
      %840 = vmatmul.mubr.f32.gmra.mrb[0].mxu0 %v575
      %v841 = vpop.f32.mrb[0].mxu0
      %v842 = vadd.f32 0.0, %v841
      %v843 = vpop.f32.mrb[0].mxu0
      %844 = vmatprep.mubr.f32.mxu0 0.0
      %845 = vmatmul.mubr.f32.gmra.mrb[0].mxu0 %v578
      %v846 = vpop.f32.mrb[0].mxu0
      %v847 = vadd.f32 0.0, %v846
      %v848 = vpop.f32.mrb[0].mxu0
      %849 = vdwg.mxu0
      %v851 = vlaneseq
      %v852 = vshrl.u32 %v851, 7
      %v853 = vsub.s32 0, %v852
      %v854 = vrot.slane %v412, %v853
      %v856 = vmul.f32 %v647, %v854
      %v857 = vmul.f32 %v652, %v854
      %v858 = vmul.f32 %v657, %v854
      %v859 = vmul.f32 %v662, %v854
      %v860 = vmul.f32 %v667, %v854
      %v861 = vmul.f32 %v672, %v854
      %v862 = vmul.f32 %v677, %v854
      %v863 = vmul.f32 %v682, %v854
      %v864 = vmul.f32 %v687, %v854
      %v865 = vmul.f32 %v692, %v854
      %v866 = vmul.f32 %v697, %v854
      %v867 = vmul.f32 %v702, %v854
      %v868 = vmul.f32 %v707, %v854
      %v869 = vmul.f32 %v712, %v854
      %v870 = vmul.f32 %v717, %v854
      %v871 = vmul.f32 %v722, %v854
      %v872 = vmul.f32 %v727, %v854
      %v873 = vmul.f32 %v732, %v854
      %v874 = vmul.f32 %v737, %v854
      %v875 = vmul.f32 %v742, %v854
      %v876 = vmul.f32 %v747, %v854
      %v877 = vmul.f32 %v752, %v854
      %v878 = vmul.f32 %v757, %v854
      %v879 = vmul.f32 %v762, %v854
      %v880 = vmul.f32 %v767, %v854
      %v881 = vmul.f32 %v772, %v854
      %v882 = vmul.f32 %v777, %v854
      %v883 = vmul.f32 %v782, %v854
      %v884 = vmul.f32 %v787, %v854
      %v885 = vmul.f32 %v792, %v854
      %v886 = vmul.f32 %v797, %v854
      %v887 = vmul.f32 %v802, %v854
      %v888 = vmul.f32 %v807, %v854
      %v889 = vmul.f32 %v812, %v854
      %v890 = vmul.f32 %v817, %v854
      %v891 = vmul.f32 %v822, %v854
      %v892 = vmul.f32 %v827, %v854
      %v893 = vmul.f32 %v832, %v854
      %v894 = vmul.f32 %v837, %v854
      %v895 = vmul.f32 %v842, %v854
      %v896 = vmul.f32 %v847, %v854
      %v898 = vlaneseq
      %v899 = vshrl.u32 %v898, 7
      %v900 = vsub.s32 0, %v899
      %v901 = vrot.slane %v413, %v900
      %v903 = vadd.f32 %v856, %v901
      %v904 = vadd.f32 %v857, %v901
      %v905 = vadd.f32 %v858, %v901
      %v906 = vadd.f32 %v859, %v901
      %v907 = vadd.f32 %v860, %v901
      %v908 = vadd.f32 %v861, %v901
      %v909 = vadd.f32 %v862, %v901
      %v910 = vadd.f32 %v863, %v901
      %v911 = vadd.f32 %v864, %v901
      %v912 = vadd.f32 %v865, %v901
      %v913 = vadd.f32 %v866, %v901
      %v914 = vadd.f32 %v867, %v901
      %v915 = vadd.f32 %v868, %v901
      %v916 = vadd.f32 %v869, %v901
      %v917 = vadd.f32 %v870, %v901
      %v918 = vadd.f32 %v871, %v901
      %v919 = vadd.f32 %v872, %v901
      %v920 = vadd.f32 %v873, %v901
      %v921 = vadd.f32 %v874, %v901
      %v922 = vadd.f32 %v875, %v901
      %v923 = vadd.f32 %v876, %v901
      %v924 = vadd.f32 %v877, %v901
      %v925 = vadd.f32 %v878, %v901
      %v926 = vadd.f32 %v879, %v901
      %v927 = vadd.f32 %v880, %v901
      %v928 = vadd.f32 %v881, %v901
      %v929 = vadd.f32 %v882, %v901
      %v930 = vadd.f32 %v883, %v901
      %v931 = vadd.f32 %v884, %v901
      %v932 = vadd.f32 %v885, %v901
      %v933 = vadd.f32 %v886, %v901
      %v934 = vadd.f32 %v887, %v901
      %v935 = vadd.f32 %v888, %v901
      %v936 = vadd.f32 %v889, %v901
      %v937 = vadd.f32 %v890, %v901
      %v938 = vadd.f32 %v891, %v901
      %v939 = vadd.f32 %v892, %v901
      %v940 = vadd.f32 %v893, %v901
      %v941 = vadd.f32 %v894, %v901
      %v942 = vadd.f32 %v895, %v901
      %v943 = vadd.f32 %v896, %v901
      %v944 = vmax.f32 %v903, 0.0
      %v945 = vmax.f32 %v904, 0.0
      %v946 = vmax.f32 %v905, 0.0
      %v947 = vmax.f32 %v906, 0.0
      %v948 = vmax.f32 %v907, 0.0
      %v949 = vmax.f32 %v908, 0.0
      %v950 = vmax.f32 %v909, 0.0
      %v951 = vmax.f32 %v910, 0.0
      %v952 = vmax.f32 %v911, 0.0
      %v953 = vmax.f32 %v912, 0.0
      %v954 = vmax.f32 %v913, 0.0
      %v955 = vmax.f32 %v914, 0.0
      %v956 = vmax.f32 %v915, 0.0
      %v957 = vmax.f32 %v916, 0.0
      %v958 = vmax.f32 %v917, 0.0
      %v959 = vmax.f32 %v918, 0.0
      %v960 = vmax.f32 %v919, 0.0
      %v961 = vmax.f32 %v920, 0.0
      %v962 = vmax.f32 %v921, 0.0
      %v963 = vmax.f32 %v922, 0.0
      %v964 = vmax.f32 %v923, 0.0
      %v965 = vmax.f32 %v924, 0.0
      %v966 = vmax.f32 %v925, 0.0
      %v967 = vmax.f32 %v926, 0.0
      %v968 = vmax.f32 %v927, 0.0
      %v969 = vmax.f32 %v928, 0.0
      %v970 = vmax.f32 %v929, 0.0
      %v971 = vmax.f32 %v930, 0.0
      %v972 = vmax.f32 %v931, 0.0
      %v973 = vmax.f32 %v932, 0.0
      %v974 = vmax.f32 %v933, 0.0
      %v975 = vmax.f32 %v934, 0.0
      %v976 = vmax.f32 %v935, 0.0
      %v977 = vmax.f32 %v936, 0.0
      %v978 = vmax.f32 %v937, 0.0
      %v979 = vmax.f32 %v938, 0.0
      %v980 = vmax.f32 %v939, 0.0
      %v981 = vmax.f32 %v940, 0.0
      %v982 = vmax.f32 %v941, 0.0
      %v983 = vmax.f32 %v942, 0.0
      %v984 = vmax.f32 %v943, 0.0
      %v985 = vmin.f32 %v944, 6.0
      %v986 = vmin.f32 %v945, 6.0
      %v987 = vmin.f32 %v946, 6.0
      %v988 = vmin.f32 %v947, 6.0
      %v989 = vmin.f32 %v948, 6.0
      %v990 = vmin.f32 %v949, 6.0
      %v991 = vmin.f32 %v950, 6.0
      %v992 = vmin.f32 %v951, 6.0
      %v993 = vmin.f32 %v952, 6.0
      %v994 = vmin.f32 %v953, 6.0
      %v995 = vmin.f32 %v954, 6.0
      %v996 = vmin.f32 %v955, 6.0
      %v997 = vmin.f32 %v956, 6.0
      %v998 = vmin.f32 %v957, 6.0
      %v999 = vmin.f32 %v958, 6.0
      %v1000 = vmin.f32 %v959, 6.0
      %v1001 = vmin.f32 %v960, 6.0
      %v1002 = vmin.f32 %v961, 6.0
      %v1003 = vmin.f32 %v962, 6.0
      %v1004 = vmin.f32 %v963, 6.0
      %v1005 = vmin.f32 %v964, 6.0
      %v1006 = vmin.f32 %v965, 6.0
      %v1007 = vmin.f32 %v966, 6.0
      %v1008 = vmin.f32 %v967, 6.0
      %v1009 = vmin.f32 %v968, 6.0
      %v1010 = vmin.f32 %v969, 6.0
      %v1011 = vmin.f32 %v970, 6.0
      %v1012 = vmin.f32 %v971, 6.0
      %v1013 = vmin.f32 %v972, 6.0
      %v1014 = vmin.f32 %v973, 6.0
      %v1015 = vmin.f32 %v974, 6.0
      %v1016 = vmin.f32 %v975, 6.0
      %v1017 = vmin.f32 %v976, 6.0
      %v1018 = vmin.f32 %v977, 6.0
      %v1019 = vmin.f32 %v978, 6.0
      %v1020 = vmin.f32 %v979, 6.0
      %v1021 = vmin.f32 %v980, 6.0
      %v1022 = vmin.f32 %v981, 6.0
      %v1023 = vmin.f32 %v982, 6.0
      %v1024 = vmin.f32 %v983, 6.0
      %v1025 = vmin.f32 %v984, 6.0
      %s1026 = scalar_lea.vmem %s1, %s410
      %v1027 = vld [vmem:[%s1026] sm:$0xff]
      %v1028 = vld [vmem:[%s1026 + $0x8] sm:$0xff]
      %v1029 = vld [vmem:[%s1026 + $0x10] sm:$0xff]
      %v1030 = vld [vmem:[%s1026 + $0x18] sm:$0xff]
      %v1031 = vld [vmem:[%s1026 + $0x20] sm:$0xff]
      %v1032 = vld [vmem:[%s1026 + $0x28] sm:$0xff]
      %v1033 = vld [vmem:[%s1026 + $0x30] sm:$0xff]
      %v1034 = vld [vmem:[%s1026 + $0x38] sm:$0xff]
      %v1035 = vld [vmem:[%s1026 + $0x40] sm:$0xff]
      %v1036 = vld [vmem:[%s1026 + $0x48] sm:$0xff]
      %v1037 = vld [vmem:[%s1026 + $0x50] sm:$0xff]
      %v1038 = vld [vmem:[%s1026 + $0x58] sm:$0xff]
      %v1039 = vld [vmem:[%s1026 + $0x60] sm:$0xff]
      %v1040 = vld [vmem:[%s1026 + $0x68] sm:$0xff]
      %v1041 = vld [vmem:[%s1026 + $0x70] sm:$0xff]
      %v1042 = vld [vmem:[%s1026 + $0x78] sm:$0xff]
      %v1043 = vld [vmem:[%s1026 + $0x80] sm:$0xff]
      %v1044 = vld [vmem:[%s1026 + $0x88] sm:$0xff]
      %v1045 = vld [vmem:[%s1026 + $0x90] sm:$0xff]
      %v1046 = vld [vmem:[%s1026 + $0x98] sm:$0xff]
      %v1047 = vld [vmem:[%s1026 + $0xa0] sm:$0xff]
      %v1048 = vld [vmem:[%s1026 + $0xa8] sm:$0xff]
      %v1049 = vld [vmem:[%s1026 + $0xb0] sm:$0xff]
      %v1050 = vld [vmem:[%s1026 + $0xb8] sm:$0xff]
      %v1051 = vld [vmem:[%s1026 + $0xc0] sm:$0xff]
      %v1052 = vld [vmem:[%s1026 + $0xc8] sm:$0xff]
      %v1053 = vld [vmem:[%s1026 + $0xd0] sm:$0xff]
      %v1054 = vld [vmem:[%s1026 + $0xd8] sm:$0xff]
      %v1055 = vld [vmem:[%s1026 + $0xe0] sm:$0xff]
      %v1056 = vld [vmem:[%s1026 + $0xe8] sm:$0xff]
      %v1057 = vld [vmem:[%s1026 + $0xf0] sm:$0xff]
      %v1058 = vld [vmem:[%s1026 + $0xf8] sm:$0xff]
      %v1059 = vld [vmem:[%s1026 + $0x100] sm:$0xff]
      %v1060 = vld [vmem:[%s1026 + $0x108] sm:$0xff]
      %v1061 = vld [vmem:[%s1026 + $0x110] sm:$0xff]
      %v1062 = vld [vmem:[%s1026 + $0x118] sm:$0xff]
      %v1063 = vld [vmem:[%s1026 + $0x120] sm:$0xff]
      %v1064 = vld [vmem:[%s1026 + $0x128] sm:$0xff]
      %v1065 = vld [vmem:[%s1026 + $0x130] sm:$0xff]
      %v1066 = vld [vmem:[%s1026 + $0x138] sm:$0xff]
      %v1067 = vld [vmem:[%s1026 + $0x140] sm:$0xf]
      %1069 = vset.pattern.permute.xlu0 0
      %1070 = vperm.xlu0 %1069, %v1027
      %v1071 = vpop.permute.xlu0 %1070
      %1074 = vset.pattern.permute.xlu0 0
      %1075 = vperm.xlu0 %1074, %v1028
      %v1076 = vpop.permute.xlu0 %1075
      %1079 = vset.pattern.permute.xlu0 0
      %1080 = vperm.xlu0 %1079, %v1029
      %v1081 = vpop.permute.xlu0 %1080
      %1084 = vset.pattern.permute.xlu0 0
      %1085 = vperm.xlu0 %1084, %v1030
      %v1086 = vpop.permute.xlu0 %1085
      %1089 = vset.pattern.permute.xlu0 0
      %1090 = vperm.xlu0 %1089, %v1031
      %v1091 = vpop.permute.xlu0 %1090
      %1094 = vset.pattern.permute.xlu0 0
      %1095 = vperm.xlu0 %1094, %v1032
      %v1096 = vpop.permute.xlu0 %1095
      %1099 = vset.pattern.permute.xlu0 0
      %1100 = vperm.xlu0 %1099, %v1033
      %v1101 = vpop.permute.xlu0 %1100
      %1104 = vset.pattern.permute.xlu0 0
      %1105 = vperm.xlu0 %1104, %v1034
      %v1106 = vpop.permute.xlu0 %1105
      %1109 = vset.pattern.permute.xlu0 0
      %1110 = vperm.xlu0 %1109, %v1035
      %v1111 = vpop.permute.xlu0 %1110
      %1114 = vset.pattern.permute.xlu0 0
      %1115 = vperm.xlu0 %1114, %v1036
      %v1116 = vpop.permute.xlu0 %1115
      %1119 = vset.pattern.permute.xlu0 0
      %1120 = vperm.xlu0 %1119, %v1037
      %v1121 = vpop.permute.xlu0 %1120
      %1124 = vset.pattern.permute.xlu0 0
      %1125 = vperm.xlu0 %1124, %v1038
      %v1126 = vpop.permute.xlu0 %1125
      %1129 = vset.pattern.permute.xlu0 0
      %1130 = vperm.xlu0 %1129, %v1039
      %v1131 = vpop.permute.xlu0 %1130
      %1134 = vset.pattern.permute.xlu0 0
      %1135 = vperm.xlu0 %1134, %v1040
      %v1136 = vpop.permute.xlu0 %1135
      %1139 = vset.pattern.permute.xlu0 0
      %1140 = vperm.xlu0 %1139, %v1041
      %v1141 = vpop.permute.xlu0 %1140
      %1144 = vset.pattern.permute.xlu0 0
      %1145 = vperm.xlu0 %1144, %v1042
      %v1146 = vpop.permute.xlu0 %1145
      %1149 = vset.pattern.permute.xlu0 0
      %1150 = vperm.xlu0 %1149, %v1043
      %v1151 = vpop.permute.xlu0 %1150
      %1154 = vset.pattern.permute.xlu0 0
      %1155 = vperm.xlu0 %1154, %v1044
      %v1156 = vpop.permute.xlu0 %1155
      %1159 = vset.pattern.permute.xlu0 0
      %1160 = vperm.xlu0 %1159, %v1045
      %v1161 = vpop.permute.xlu0 %1160
      %1164 = vset.pattern.permute.xlu0 0
      %1165 = vperm.xlu0 %1164, %v1046
      %v1166 = vpop.permute.xlu0 %1165
      %1169 = vset.pattern.permute.xlu0 0
      %1170 = vperm.xlu0 %1169, %v1047
      %v1171 = vpop.permute.xlu0 %1170
      %1174 = vset.pattern.permute.xlu0 0
      %1175 = vperm.xlu0 %1174, %v1048
      %v1176 = vpop.permute.xlu0 %1175
      %1179 = vset.pattern.permute.xlu0 0
      %1180 = vperm.xlu0 %1179, %v1049
      %v1181 = vpop.permute.xlu0 %1180
      %1184 = vset.pattern.permute.xlu0 0
      %1185 = vperm.xlu0 %1184, %v1050
      %v1186 = vpop.permute.xlu0 %1185
      %1189 = vset.pattern.permute.xlu0 0
      %1190 = vperm.xlu0 %1189, %v1051
      %v1191 = vpop.permute.xlu0 %1190
      %1194 = vset.pattern.permute.xlu0 0
      %1195 = vperm.xlu0 %1194, %v1052
      %v1196 = vpop.permute.xlu0 %1195
      %1199 = vset.pattern.permute.xlu0 0
      %1200 = vperm.xlu0 %1199, %v1053
      %v1201 = vpop.permute.xlu0 %1200
      %1204 = vset.pattern.permute.xlu0 0
      %1205 = vperm.xlu0 %1204, %v1054
      %v1206 = vpop.permute.xlu0 %1205
      %1209 = vset.pattern.permute.xlu0 0
      %1210 = vperm.xlu0 %1209, %v1055
      %v1211 = vpop.permute.xlu0 %1210
      %1214 = vset.pattern.permute.xlu0 0
      %1215 = vperm.xlu0 %1214, %v1056
      %v1216 = vpop.permute.xlu0 %1215
      %1219 = vset.pattern.permute.xlu0 0
      %1220 = vperm.xlu0 %1219, %v1057
      %v1221 = vpop.permute.xlu0 %1220
      %1224 = vset.pattern.permute.xlu0 0
      %1225 = vperm.xlu0 %1224, %v1058
      %v1226 = vpop.permute.xlu0 %1225
      %1229 = vset.pattern.permute.xlu0 0
      %1230 = vperm.xlu0 %1229, %v1059
      %v1231 = vpop.permute.xlu0 %1230
      %1234 = vset.pattern.permute.xlu0 0
      %1235 = vperm.xlu0 %1234, %v1060
      %v1236 = vpop.permute.xlu0 %1235
      %1239 = vset.pattern.permute.xlu0 0
      %1240 = vperm.xlu0 %1239, %v1061
      %v1241 = vpop.permute.xlu0 %1240
      %1244 = vset.pattern.permute.xlu0 0
      %1245 = vperm.xlu0 %1244, %v1062
      %v1246 = vpop.permute.xlu0 %1245
      %1249 = vset.pattern.permute.xlu0 0
      %1250 = vperm.xlu0 %1249, %v1063
      %v1251 = vpop.permute.xlu0 %1250
      %1254 = vset.pattern.permute.xlu0 0
      %1255 = vperm.xlu0 %1254, %v1064
      %v1256 = vpop.permute.xlu0 %1255
      %1259 = vset.pattern.permute.xlu0 0
      %1260 = vperm.xlu0 %1259, %v1065
      %v1261 = vpop.permute.xlu0 %1260
      %1264 = vset.pattern.permute.xlu0 0
      %1265 = vperm.xlu0 %1264, %v1066
      %v1266 = vpop.permute.xlu0 %1265
      %1269 = vset.pattern.permute.xlu0 0
      %1270 = vperm.xlu0 %1269, %v1067
      %v1271 = vpop.permute.xlu0 %1270
      %v1273 = vmul.f32 %v985, %v1071
      %v1274 = vmul.f32 %v986, %v1076
      %v1275 = vmul.f32 %v987, %v1081
      %v1276 = vmul.f32 %v988, %v1086
      %v1277 = vmul.f32 %v989, %v1091
      %v1278 = vmul.f32 %v990, %v1096
      %v1279 = vmul.f32 %v991, %v1101
      %v1280 = vmul.f32 %v992, %v1106
      %v1281 = vmul.f32 %v993, %v1111
      %v1282 = vmul.f32 %v994, %v1116
      %v1283 = vmul.f32 %v995, %v1121
      %v1284 = vmul.f32 %v996, %v1126
      %v1285 = vmul.f32 %v997, %v1131
      %v1286 = vmul.f32 %v998, %v1136
      %v1287 = vmul.f32 %v999, %v1141
      %v1288 = vmul.f32 %v1000, %v1146
      %v1289 = vmul.f32 %v1001, %v1151
      %v1290 = vmul.f32 %v1002, %v1156
      %v1291 = vmul.f32 %v1003, %v1161
      %v1292 = vmul.f32 %v1004, %v1166
      %v1293 = vmul.f32 %v1005, %v1171
      %v1294 = vmul.f32 %v1006, %v1176
      %v1295 = vmul.f32 %v1007, %v1181
      %v1296 = vmul.f32 %v1008, %v1186
      %v1297 = vmul.f32 %v1009, %v1191
      %v1298 = vmul.f32 %v1010, %v1196
      %v1299 = vmul.f32 %v1011, %v1201
      %v1300 = vmul.f32 %v1012, %v1206
      %v1301 = vmul.f32 %v1013, %v1211
      %v1302 = vmul.f32 %v1014, %v1216
      %v1303 = vmul.f32 %v1015, %v1221
      %v1304 = vmul.f32 %v1016, %v1226
      %v1305 = vmul.f32 %v1017, %v1231
      %v1306 = vmul.f32 %v1018, %v1236
      %v1307 = vmul.f32 %v1019, %v1241
      %v1308 = vmul.f32 %v1020, %v1246
      %v1309 = vmul.f32 %v1021, %v1251
      %v1310 = vmul.f32 %v1022, %v1256
      %v1311 = vmul.f32 %v1023, %v1261
      %v1312 = vmul.f32 %v1024, %v1266
      %v1313 = vmul.f32 %v1025, %v1271
      %vm1314 = vcmask 130048
      %1315 = vst.msk [vmem:[#allocation2] sm:$0xff] %vm1314, %v1273
      %1316 = vst.msk [vmem:[#allocation2 + $0x8] sm:$0xff] %vm1314, %v1274
      %1317 = vst.msk [vmem:[#allocation2 + $0x10] sm:$0xff] %vm1314, %v1275
      %1318 = vst.msk [vmem:[#allocation2 + $0x18] sm:$0xff] %vm1314, %v1276
      %1319 = vst.msk [vmem:[#allocation2 + $0x20] sm:$0xff] %vm1314, %v1277
      %1320 = vst.msk [vmem:[#allocation2 + $0x28] sm:$0xff] %vm1314, %v1278
      %1321 = vst.msk [vmem:[#allocation2 + $0x30] sm:$0xff] %vm1314, %v1279
      %1322 = vst.msk [vmem:[#allocation2 + $0x38] sm:$0xff] %vm1314, %v1280
      %1323 = vst.msk [vmem:[#allocation2 + $0x40] sm:$0xff] %vm1314, %v1281
      %1324 = vst.msk [vmem:[#allocation2 + $0x48] sm:$0xff] %vm1314, %v1282
      %1325 = vst.msk [vmem:[#allocation2 + $0x50] sm:$0xff] %vm1314, %v1283
      %1326 = vst.msk [vmem:[#allocation2 + $0x58] sm:$0xff] %vm1314, %v1284
      %1327 = vst.msk [vmem:[#allocation2 + $0x60] sm:$0xff] %vm1314, %v1285
      %1328 = vst.msk [vmem:[#allocation2 + $0x68] sm:$0xff] %vm1314, %v1286
      %1329 = vst.msk [vmem:[#allocation2 + $0x70] sm:$0xff] %vm1314, %v1287
      %1330 = vst.msk [vmem:[#allocation2 + $0x78] sm:$0xff] %vm1314, %v1288
      %1331 = vst.msk [vmem:[#allocation2 + $0x80] sm:$0xff] %vm1314, %v1289
      %1332 = vst.msk [vmem:[#allocation2 + $0x88] sm:$0xff] %vm1314, %v1290
      %1333 = vst.msk [vmem:[#allocation2 + $0x90] sm:$0xff] %vm1314, %v1291
      %1334 = vst.msk [vmem:[#allocation2 + $0x98] sm:$0xff] %vm1314, %v1292
      %1335 = vst.msk [vmem:[#allocation2 + $0xa0] sm:$0xff] %vm1314, %v1293
      %1336 = vst.msk [vmem:[#allocation2 + $0xa8] sm:$0xff] %vm1314, %v1294
      %1337 = vst.msk [vmem:[#allocation2 + $0xb0] sm:$0xff] %vm1314, %v1295
      %1338 = vst.msk [vmem:[#allocation2 + $0xb8] sm:$0xff] %vm1314, %v1296
      %1339 = vst.msk [vmem:[#allocation2 + $0xc0] sm:$0xff] %vm1314, %v1297
      %1340 = vst.msk [vmem:[#allocation2 + $0xc8] sm:$0xff] %vm1314, %v1298
      %1341 = vst.msk [vmem:[#allocation2 + $0xd0] sm:$0xff] %vm1314, %v1299
      %1342 = vst.msk [vmem:[#allocation2 + $0xd8] sm:$0xff] %vm1314, %v1300
      %1343 = vst.msk [vmem:[#allocation2 + $0xe0] sm:$0xff] %vm1314, %v1301
      %1344 = vst.msk [vmem:[#allocation2 + $0xe8] sm:$0xff] %vm1314, %v1302
      %1345 = vst.msk [vmem:[#allocation2 + $0xf0] sm:$0xff] %vm1314, %v1303
      %1346 = vst.msk [vmem:[#allocation2 + $0xf8] sm:$0xff] %vm1314, %v1304
      %1347 = vst.msk [vmem:[#allocation2 + $0x100] sm:$0xff] %vm1314, %v1305
      %1348 = vst.msk [vmem:[#allocation2 + $0x108] sm:$0xff] %vm1314, %v1306
      %1349 = vst.msk [vmem:[#allocation2 + $0x110] sm:$0xff] %vm1314, %v1307
      %1350 = vst.msk [vmem:[#allocation2 + $0x118] sm:$0xff] %vm1314, %v1308
      %1351 = vst.msk [vmem:[#allocation2 + $0x120] sm:$0xff] %vm1314, %v1309
      %1352 = vst.msk [vmem:[#allocation2 + $0x128] sm:$0xff] %vm1314, %v1310
      %1353 = vst.msk [vmem:[#allocation2 + $0x130] sm:$0xff] %vm1314, %v1311
      %1354 = vst.msk [vmem:[#allocation2 + $0x138] sm:$0xff] %vm1314, %v1312
      %vm1355 = vcmask 125952
      %1356 = vst.msk [vmem:[#allocation2 + $0x140] sm:$0xf] %vm1355, %v1313
      %1357 = vst.msk [vmem:[#allocation2 + $0x144] sm:$0xff] %vm1314, 0.0
      %1358 = vst.msk [vmem:[#allocation2 + $0x14c] sm:$0xff] %vm1314, 0.0
      %vm1359 = vcmask 123904
      %1360 = vst.msk [vmem:[#allocation2 + $0x154] sm:$0x3] %vm1359, 0.0
      %v1361 = vld [vmem:[%s5] sm:$0xff]
      %v1362 = vld [vmem:[%s5 + $0x8] sm:$0x1]
      %v1363 = vld [vmem:[#allocation2] sm:$0xff]
      %v1364 = vld [vmem:[#allocation2 + $0x8] sm:$0xff]
      %v1365 = vld [vmem:[#allocation2 + $0x10] sm:$0xff]
      %v1366 = vld [vmem:[#allocation2 + $0x18] sm:$0xff]
      %v1367 = vld [vmem:[#allocation2 + $0x20] sm:$0xff]
      %v1368 = vld [vmem:[#allocation2 + $0x28] sm:$0xff]
      %v1369 = vld [vmem:[#allocation2 + $0x30] sm:$0xff]
      %v1370 = vld [vmem:[#allocation2 + $0x38] sm:$0xff]
      %v1371 = vld [vmem:[#allocation2 + $0x40] sm:$0xff]
      %v1372 = vld [vmem:[#allocation2 + $0x48] sm:$0xff]
      %v1373 = vld [vmem:[#allocation2 + $0x50] sm:$0xff]
      %v1374 = vld [vmem:[#allocation2 + $0x58] sm:$0xff]
      %v1375 = vld [vmem:[#allocation2 + $0x60] sm:$0xff]
      %v1376 = vld [vmem:[#allocation2 + $0x68] sm:$0xff]
      %v1377 = vld [vmem:[#allocation2 + $0x70] sm:$0xff]
      %v1378 = vld [vmem:[#allocation2 + $0x78] sm:$0xff]
      %v1379 = vld [vmem:[#allocation2 + $0x80] sm:$0xff]
      %v1380 = vld [vmem:[#allocation2 + $0x88] sm:$0xff]
      %v1381 = vld [vmem:[#allocation2 + $0x90] sm:$0xff]
      %v1382 = vld [vmem:[#allocation2 + $0x98] sm:$0xff]
      %v1383 = vld [vmem:[#allocation2 + $0xa0] sm:$0xff]
      %v1384 = vld [vmem:[#allocation2 + $0xa8] sm:$0xff]
      %v1385 = vld [vmem:[#allocation2 + $0xb0] sm:$0xff]
      %v1386 = vld [vmem:[#allocation2 + $0xb8] sm:$0xff]
      %v1387 = vld [vmem:[#allocation2 + $0xc0] sm:$0xff]
      %v1388 = vld [vmem:[#allocation2 + $0xc8] sm:$0xff]
      %v1389 = vld [vmem:[#allocation2 + $0xd0] sm:$0xff]
      %v1390 = vld [vmem:[#allocation2 + $0xd8] sm:$0xff]
      %v1391 = vld [vmem:[#allocation2 + $0xe0] sm:$0xff]
      %v1392 = vld [vmem:[#allocation2 + $0xe8] sm:$0xff]
      %v1393 = vld [vmem:[#allocation2 + $0xf0] sm:$0xff]
      %v1394 = vld [vmem:[#allocation2 + $0xf8] sm:$0xff]
      %v1395 = vld [vmem:[#allocation2 + $0x100] sm:$0xff]
      %v1396 = vld [vmem:[#allocation2 + $0x108] sm:$0xff]
      %v1397 = vld [vmem:[#allocation2 + $0x110] sm:$0xff]
      %v1398 = vld [vmem:[#allocation2 + $0x118] sm:$0xff]
      %v1399 = vlaneseq
      %v1400 = vshrl.u32 %v1399, 7
      %v1401 = vsub.s32 0, %v1400
      %v1402 = vrot.slane %v1361, %v1401
      %v1403 = vmul.f32 %v1363, %v1402
      %v1404 = vmul.f32 %v1364, %v1402
      %v1405 = vmul.f32 %v1365, %v1402
      %v1406 = vmul.f32 %v1366, %v1402
      %v1407 = vmul.f32 %v1367, %v1402
      %v1408 = vmul.f32 %v1368, %v1402
      %v1409 = vmul.f32 %v1369, %v1402
      %v1410 = vmul.f32 %v1370, %v1402
      %v1411 = vmul.f32 %v1371, %v1402
      %v1412 = vmul.f32 %v1372, %v1402
      %v1413 = vmul.f32 %v1373, %v1402
      %v1414 = vmul.f32 %v1374, %v1402
      %v1415 = vmul.f32 %v1375, %v1402
      %v1416 = vmul.f32 %v1376, %v1402
      %v1417 = vmul.f32 %v1377, %v1402
      %v1418 = vmul.f32 %v1378, %v1402
      %v1419 = vmul.f32 %v1379, %v1402
      %v1420 = vmul.f32 %v1380, %v1402
      %v1421 = vmul.f32 %v1381, %v1402
      %v1422 = vmul.f32 %v1382, %v1402
      %v1423 = vmul.f32 %v1383, %v1402
      %v1424 = vmul.f32 %v1384, %v1402
      %v1425 = vmul.f32 %v1385, %v1402
      %v1426 = vmul.f32 %v1386, %v1402
      %v1427 = vmul.f32 %v1387, %v1402
      %v1428 = vmul.f32 %v1388, %v1402
      %v1429 = vmul.f32 %v1389, %v1402
      %v1430 = vmul.f32 %v1390, %v1402
      %v1431 = vmul.f32 %v1391, %v1402
      %v1432 = vmul.f32 %v1392, %v1402
      %v1433 = vmul.f32 %v1393, %v1402
      %v1434 = vmul.f32 %v1394, %v1402
      %v1435 = vmul.f32 %v1395, %v1402
      %v1436 = vmul.f32 %v1396, %v1402
      %v1437 = vmul.f32 %v1397, %v1402
      %v1438 = vmul.f32 %v1398, %v1402
      %v1439 = vadd.f32 %v1403, 0.0
      %v1440 = vadd.f32 %v1404, 0.0
      %v1441 = vadd.f32 %v1405, 0.0
      %v1442 = vadd.f32 %v1406, 0.0
      %v1443 = vadd.f32 %v1407, 0.0
      %v1444 = vadd.f32 %v1408, 0.0
      %v1445 = vadd.f32 %v1409, 0.0
      %v1446 = vadd.f32 %v1410, 0.0
      %v1447 = vadd.f32 %v1411, 0.0
      %v1448 = vadd.f32 %v1412, 0.0
      %v1449 = vadd.f32 %v1413, 0.0
      %v1450 = vadd.f32 %v1414, 0.0
      %v1451 = vadd.f32 %v1415, 0.0
      %v1452 = vadd.f32 %v1416, 0.0
      %v1453 = vadd.f32 %v1417, 0.0
      %v1454 = vadd.f32 %v1418, 0.0
      %v1455 = vadd.f32 %v1419, 0.0
      %v1456 = vadd.f32 %v1420, 0.0
      %v1457 = vadd.f32 %v1421, 0.0
      %v1458 = vadd.f32 %v1422, 0.0
      %v1459 = vadd.f32 %v1423, 0.0
      %v1460 = vadd.f32 %v1424, 0.0
      %v1461 = vadd.f32 %v1425, 0.0
      %v1462 = vadd.f32 %v1426, 0.0
      %v1463 = vadd.f32 %v1427, 0.0
      %v1464 = vadd.f32 %v1428, 0.0
      %v1465 = vadd.f32 %v1429, 0.0
      %v1466 = vadd.f32 %v1430, 0.0
      %v1467 = vadd.f32 %v1431, 0.0
      %v1468 = vadd.f32 %v1432, 0.0
      %v1469 = vadd.f32 %v1433, 0.0
      %v1470 = vadd.f32 %v1434, 0.0
      %v1471 = vadd.f32 %v1435, 0.0
      %v1472 = vadd.f32 %v1436, 0.0
      %v1473 = vadd.f32 %v1437, 0.0
      %v1474 = vadd.f32 %v1438, 0.0
      %v1475 = vld [vmem:[#allocation2 + $0x1] sm:$0xff]
      %v1476 = vld [vmem:[#allocation2 + $0x9] sm:$0xff]
      %v1477 = vld [vmem:[#allocation2 + $0x11] sm:$0xff]
      %v1478 = vld [vmem:[#allocation2 + $0x19] sm:$0xff]
      %v1479 = vld [vmem:[#allocation2 + $0x21] sm:$0xff]
      %v1480 = vld [vmem:[#allocation2 + $0x29] sm:$0xff]
      %v1481 = vld [vmem:[#allocation2 + $0x31] sm:$0xff]
      %v1482 = vld [vmem:[#allocation2 + $0x39] sm:$0xff]
      %v1483 = vld [vmem:[#allocation2 + $0x41] sm:$0xff]
      %v1484 = vld [vmem:[#allocation2 + $0x49] sm:$0xff]
      %v1485 = vld [vmem:[#allocation2 + $0x51] sm:$0xff]
      %v1486 = vld [vmem:[#allocation2 + $0x59] sm:$0xff]
      %v1487 = vld [vmem:[#allocation2 + $0x61] sm:$0xff]
      %v1488 = vld [vmem:[#allocation2 + $0x69] sm:$0xff]
      %v1489 = vld [vmem:[#allocation2 + $0x71] sm:$0xff]
      %v1490 = vld [vmem:[#allocation2 + $0x79] sm:$0xff]
      %v1491 = vld [vmem:[#allocation2 + $0x81] sm:$0xff]
      %v1492 = vld [vmem:[#allocation2 + $0x89] sm:$0xff]
      %v1493 = vld [vmem:[#allocation2 + $0x91] sm:$0xff]
      %v1494 = vld [vmem:[#allocation2 + $0x99] sm:$0xff]
      %v1495 = vld [vmem:[#allocation2 + $0xa1] sm:$0xff]
      %v1496 = vld [vmem:[#allocation2 + $0xa9] sm:$0xff]
      %v1497 = vld [vmem:[#allocation2 + $0xb1] sm:$0xff]
      %v1498 = vld [vmem:[#allocation2 + $0xb9] sm:$0xff]
      %v1499 = vld [vmem:[#allocation2 + $0xc1] sm:$0xff]
      %v1500 = vld [vmem:[#allocation2 + $0xc9] sm:$0xff]
      %v1501 = vld [vmem:[#allocation2 + $0xd1] sm:$0xff]
      %v1502 = vld [vmem:[#allocation2 + $0xd9] sm:$0xff]
      %v1503 = vld [vmem:[#allocation2 + $0xe1] sm:$0xff]
      %v1504 = vld [vmem:[#allocation2 + $0xe9] sm:$0xff]
      %v1505 = vld [vmem:[#allocation2 + $0xf1] sm:$0xff]
      %v1506 = vld [vmem:[#allocation2 + $0xf9] sm:$0xff]
      %v1507 = vld [vmem:[#allocation2 + $0x101] sm:$0xff]
      %v1508 = vld [vmem:[#allocation2 + $0x109] sm:$0xff]
      %v1509 = vld [vmem:[#allocation2 + $0x111] sm:$0xff]
      %v1510 = vld [vmem:[#allocation2 + $0x119] sm:$0xff]
      %v1511 = vlaneseq
      %v1512 = vshrl.u32 %v1511, 7
      %v1513 = vsub.s32 1, %v1512
      %v1514 = vrot.slane %v1361, %v1513
      %v1515 = vmul.f32 %v1475, %v1514
      %v1516 = vmul.f32 %v1476, %v1514
      %v1517 = vmul.f32 %v1477, %v1514
      %v1518 = vmul.f32 %v1478, %v1514
      %v1519 = vmul.f32 %v1479, %v1514
      %v1520 = vmul.f32 %v1480, %v1514
      %v1521 = vmul.f32 %v1481, %v1514
      %v1522 = vmul.f32 %v1482, %v1514
      %v1523 = vmul.f32 %v1483, %v1514
      %v1524 = vmul.f32 %v1484, %v1514
      %v1525 = vmul.f32 %v1485, %v1514
      %v1526 = vmul.f32 %v1486, %v1514
      %v1527 = vmul.f32 %v1487, %v1514
      %v1528 = vmul.f32 %v1488, %v1514
      %v1529 = vmul.f32 %v1489, %v1514
      %v1530 = vmul.f32 %v1490, %v1514
      %v1531 = vmul.f32 %v1491, %v1514
      %v1532 = vmul.f32 %v1492, %v1514
      %v1533 = vmul.f32 %v1493, %v1514
      %v1534 = vmul.f32 %v1494, %v1514
      %v1535 = vmul.f32 %v1495, %v1514
      %v1536 = vmul.f32 %v1496, %v1514
      %v1537 = vmul.f32 %v1497, %v1514
      %v1538 = vmul.f32 %v1498, %v1514
      %v1539 = vmul.f32 %v1499, %v1514
      %v1540 = vmul.f32 %v1500, %v1514
      %v1541 = vmul.f32 %v1501, %v1514
      %v1542 = vmul.f32 %v1502, %v1514
      %v1543 = vmul.f32 %v1503, %v1514
      %v1544 = vmul.f32 %v1504, %v1514
      %v1545 = vmul.f32 %v1505, %v1514
      %v1546 = vmul.f32 %v1506, %v1514
      %v1547 = vmul.f32 %v1507, %v1514
      %v1548 = vmul.f32 %v1508, %v1514
      %v1549 = vmul.f32 %v1509, %v1514
      %v1550 = vmul.f32 %v1510, %v1514
      %v1551 = vadd.f32 %v1439, %v1515
      %v1552 = vadd.f32 %v1440, %v1516
      %v1553 = vadd.f32 %v1441, %v1517
      %v1554 = vadd.f32 %v1442, %v1518
      %v1555 = vadd.f32 %v1443, %v1519
      %v1556 = vadd.f32 %v1444, %v1520
      %v1557 = vadd.f32 %v1445, %v1521
      %v1558 = vadd.f32 %v1446, %v1522
      %v1559 = vadd.f32 %v1447, %v1523
      %v1560 = vadd.f32 %v1448, %v1524
      %v1561 = vadd.f32 %v1449, %v1525
      %v1562 = vadd.f32 %v1450, %v1526
      %v1563 = vadd.f32 %v1451, %v1527
      %v1564 = vadd.f32 %v1452, %v1528
      %v1565 = vadd.f32 %v1453, %v1529
      %v1566 = vadd.f32 %v1454, %v1530
      %v1567 = vadd.f32 %v1455, %v1531
      %v1568 = vadd.f32 %v1456, %v1532
      %v1569 = vadd.f32 %v1457, %v1533
      %v1570 = vadd.f32 %v1458, %v1534
      %v1571 = vadd.f32 %v1459, %v1535
      %v1572 = vadd.f32 %v1460, %v1536
      %v1573 = vadd.f32 %v1461, %v1537
      %v1574 = vadd.f32 %v1462, %v1538
      %v1575 = vadd.f32 %v1463, %v1539
      %v1576 = vadd.f32 %v1464, %v1540
      %v1577 = vadd.f32 %v1465, %v1541
      %v1578 = vadd.f32 %v1466, %v1542
      %v1579 = vadd.f32 %v1467, %v1543
      %v1580 = vadd.f32 %v1468, %v1544
      %v1581 = vadd.f32 %v1469, %v1545
      %v1582 = vadd.f32 %v1470, %v1546
      %v1583 = vadd.f32 %v1471, %v1547
      %v1584 = vadd.f32 %v1472, %v1548
      %v1585 = vadd.f32 %v1473, %v1549
      %v1586 = vadd.f32 %v1474, %v1550
      %v1587 = vld [vmem:[#allocation2 + $0x2] sm:$0xff]
      %v1588 = vld [vmem:[#allocation2 + $0xa] sm:$0xff]
      %v1589 = vld [vmem:[#allocation2 + $0x12] sm:$0xff]
      %v1590 = vld [vmem:[#allocation2 + $0x1a] sm:$0xff]
      %v1591 = vld [vmem:[#allocation2 + $0x22] sm:$0xff]
      %v1592 = vld [vmem:[#allocation2 + $0x2a] sm:$0xff]
      %v1593 = vld [vmem:[#allocation2 + $0x32] sm:$0xff]
      %v1594 = vld [vmem:[#allocation2 + $0x3a] sm:$0xff]
      %v1595 = vld [vmem:[#allocation2 + $0x42] sm:$0xff]
      %v1596 = vld [vmem:[#allocation2 + $0x4a] sm:$0xff]
      %v1597 = vld [vmem:[#allocation2 + $0x52] sm:$0xff]
      %v1598 = vld [vmem:[#allocation2 + $0x5a] sm:$0xff]
      %v1599 = vld [vmem:[#allocation2 + $0x62] sm:$0xff]
      %v1600 = vld [vmem:[#allocation2 + $0x6a] sm:$0xff]
      %v1601 = vld [vmem:[#allocation2 + $0x72] sm:$0xff]
      %v1602 = vld [vmem:[#allocation2 + $0x7a] sm:$0xff]
      %v1603 = vld [vmem:[#allocation2 + $0x82] sm:$0xff]
      %v1604 = vld [vmem:[#allocation2 + $0x8a] sm:$0xff]
      %v1605 = vld [vmem:[#allocation2 + $0x92] sm:$0xff]
      %v1606 = vld [vmem:[#allocation2 + $0x9a] sm:$0xff]
      %v1607 = vld [vmem:[#allocation2 + $0xa2] sm:$0xff]
      %v1608 = vld [vmem:[#allocation2 + $0xaa] sm:$0xff]
      %v1609 = vld [vmem:[#allocation2 + $0xb2] sm:$0xff]
      %v1610 = vld [vmem:[#allocation2 + $0xba] sm:$0xff]
      %v1611 = vld [vmem:[#allocation2 + $0xc2] sm:$0xff]
      %v1612 = vld [vmem:[#allocation2 + $0xca] sm:$0xff]
      %v1613 = vld [vmem:[#allocation2 + $0xd2] sm:$0xff]
      %v1614 = vld [vmem:[#allocation2 + $0xda] sm:$0xff]
      %v1615 = vld [vmem:[#allocation2 + $0xe2] sm:$0xff]
      %v1616 = vld [vmem:[#allocation2 + $0xea] sm:$0xff]
      %v1617 = vld [vmem:[#allocation2 + $0xf2] sm:$0xff]
      %v1618 = vld [vmem:[#allocation2 + $0xfa] sm:$0xff]
      %v1619 = vld [vmem:[#allocation2 + $0x102] sm:$0xff]
      %v1620 = vld [vmem:[#allocation2 + $0x10a] sm:$0xff]
      %v1621 = vld [vmem:[#allocation2 + $0x112] sm:$0xff]
      %v1622 = vld [vmem:[#allocation2 + $0x11a] sm:$0xff]
      %v1623 = vlaneseq
      %v1624 = vshrl.u32 %v1623, 7
      %v1625 = vsub.s32 2, %v1624
      %v1626 = vrot.slane %v1361, %v1625
      %v1627 = vmul.f32 %v1587, %v1626
      %v1628 = vmul.f32 %v1588, %v1626
      %v1629 = vmul.f32 %v1589, %v1626
      %v1630 = vmul.f32 %v1590, %v1626
      %v1631 = vmul.f32 %v1591, %v1626
      %v1632 = vmul.f32 %v1592, %v1626
      %v1633 = vmul.f32 %v1593, %v1626
      %v1634 = vmul.f32 %v1594, %v1626
      %v1635 = vmul.f32 %v1595, %v1626
      %v1636 = vmul.f32 %v1596, %v1626
      %v1637 = vmul.f32 %v1597, %v1626
      %v1638 = vmul.f32 %v1598, %v1626
      %v1639 = vmul.f32 %v1599, %v1626
      %v1640 = vmul.f32 %v1600, %v1626
      %v1641 = vmul.f32 %v1601, %v1626
      %v1642 = vmul.f32 %v1602, %v1626
      %v1643 = vmul.f32 %v1603, %v1626
      %v1644 = vmul.f32 %v1604, %v1626
      %v1645 = vmul.f32 %v1605, %v1626
      %v1646 = vmul.f32 %v1606, %v1626
      %v1647 = vmul.f32 %v1607, %v1626
      %v1648 = vmul.f32 %v1608, %v1626
      %v1649 = vmul.f32 %v1609, %v1626
      %v1650 = vmul.f32 %v1610, %v1626
      %v1651 = vmul.f32 %v1611, %v1626
      %v1652 = vmul.f32 %v1612, %v1626
      %v1653 = vmul.f32 %v1613, %v1626
      %v1654 = vmul.f32 %v1614, %v1626
      %v1655 = vmul.f32 %v1615, %v1626
      %v1656 = vmul.f32 %v1616, %v1626
      %v1657 = vmul.f32 %v1617, %v1626
      %v1658 = vmul.f32 %v1618, %v1626
      %v1659 = vmul.f32 %v1619, %v1626
      %v1660 = vmul.f32 %v1620, %v1626
      %v1661 = vmul.f32 %v1621, %v1626
      %v1662 = vmul.f32 %v1622, %v1626
      %v1663 = vadd.f32 %v1551, %v1627
      %v1664 = vadd.f32 %v1552, %v1628
      %v1665 = vadd.f32 %v1553, %v1629
      %v1666 = vadd.f32 %v1554, %v1630
      %v1667 = vadd.f32 %v1555, %v1631
      %v1668 = vadd.f32 %v1556, %v1632
      %v1669 = vadd.f32 %v1557, %v1633
      %v1670 = vadd.f32 %v1558, %v1634
      %v1671 = vadd.f32 %v1559, %v1635
      %v1672 = vadd.f32 %v1560, %v1636
      %v1673 = vadd.f32 %v1561, %v1637
      %v1674 = vadd.f32 %v1562, %v1638
      %v1675 = vadd.f32 %v1563, %v1639
      %v1676 = vadd.f32 %v1564, %v1640
      %v1677 = vadd.f32 %v1565, %v1641
      %v1678 = vadd.f32 %v1566, %v1642
      %v1679 = vadd.f32 %v1567, %v1643
      %v1680 = vadd.f32 %v1568, %v1644
      %v1681 = vadd.f32 %v1569, %v1645
      %v1682 = vadd.f32 %v1570, %v1646
      %v1683 = vadd.f32 %v1571, %v1647
      %v1684 = vadd.f32 %v1572, %v1648
      %v1685 = vadd.f32 %v1573, %v1649
      %v1686 = vadd.f32 %v1574, %v1650
      %v1687 = vadd.f32 %v1575, %v1651
      %v1688 = vadd.f32 %v1576, %v1652
      %v1689 = vadd.f32 %v1577, %v1653
      %v1690 = vadd.f32 %v1578, %v1654
      %v1691 = vadd.f32 %v1579, %v1655
      %v1692 = vadd.f32 %v1580, %v1656
      %v1693 = vadd.f32 %v1581, %v1657
      %v1694 = vadd.f32 %v1582, %v1658
      %v1695 = vadd.f32 %v1583, %v1659
      %v1696 = vadd.f32 %v1584, %v1660
      %v1697 = vadd.f32 %v1585, %v1661
      %v1698 = vadd.f32 %v1586, %v1662
      %v1699 = vld [vmem:[#allocation2 + $0x122] sm:$0xff]
      %v1700 = vld [vmem:[#allocation2 + $0x12a] sm:$0xff]
      %v1701 = vlaneseq
      %v1702 = vshrl.u32 %v1701, 7
      %v1703 = vsub.s32 3, %v1702
      %v1704 = vrot.slane %v1361, %v1703
      %v1705 = vmul.f32 %v1589, %v1704
      %v1706 = vmul.f32 %v1590, %v1704
      %v1707 = vmul.f32 %v1591, %v1704
      %v1708 = vmul.f32 %v1592, %v1704
      %v1709 = vmul.f32 %v1593, %v1704
      %v1710 = vmul.f32 %v1594, %v1704
      %v1711 = vmul.f32 %v1595, %v1704
      %v1712 = vmul.f32 %v1596, %v1704
      %v1713 = vmul.f32 %v1597, %v1704
      %v1714 = vmul.f32 %v1598, %v1704
      %v1715 = vmul.f32 %v1599, %v1704
      %v1716 = vmul.f32 %v1600, %v1704
      %v1717 = vmul.f32 %v1601, %v1704
      %v1718 = vmul.f32 %v1602, %v1704
      %v1719 = vmul.f32 %v1603, %v1704
      %v1720 = vmul.f32 %v1604, %v1704
      %v1721 = vmul.f32 %v1605, %v1704
      %v1722 = vmul.f32 %v1606, %v1704
      %v1723 = vmul.f32 %v1607, %v1704
      %v1724 = vmul.f32 %v1608, %v1704
      %v1725 = vmul.f32 %v1609, %v1704
      %v1726 = vmul.f32 %v1610, %v1704
      %v1727 = vmul.f32 %v1611, %v1704
      %v1728 = vmul.f32 %v1612, %v1704
      %v1729 = vmul.f32 %v1613, %v1704
      %v1730 = vmul.f32 %v1614, %v1704
      %v1731 = vmul.f32 %v1615, %v1704
      %v1732 = vmul.f32 %v1616, %v1704
      %v1733 = vmul.f32 %v1617, %v1704
      %v1734 = vmul.f32 %v1618, %v1704
      %v1735 = vmul.f32 %v1619, %v1704
      %v1736 = vmul.f32 %v1620, %v1704
      %v1737 = vmul.f32 %v1621, %v1704
      %v1738 = vmul.f32 %v1622, %v1704
      %v1739 = vmul.f32 %v1699, %v1704
      %v1740 = vmul.f32 %v1700, %v1704
      %v1741 = vadd.f32 %v1663, %v1705
      %v1742 = vadd.f32 %v1664, %v1706
      %v1743 = vadd.f32 %v1665, %v1707
      %v1744 = vadd.f32 %v1666, %v1708
      %v1745 = vadd.f32 %v1667, %v1709
      %v1746 = vadd.f32 %v1668, %v1710
      %v1747 = vadd.f32 %v1669, %v1711
      %v1748 = vadd.f32 %v1670, %v1712
      %v1749 = vadd.f32 %v1671, %v1713
      %v1750 = vadd.f32 %v1672, %v1714
      %v1751 = vadd.f32 %v1673, %v1715
      %v1752 = vadd.f32 %v1674, %v1716
      %v1753 = vadd.f32 %v1675, %v1717
      %v1754 = vadd.f32 %v1676, %v1718
      %v1755 = vadd.f32 %v1677, %v1719
      %v1756 = vadd.f32 %v1678, %v1720
      %v1757 = vadd.f32 %v1679, %v1721
      %v1758 = vadd.f32 %v1680, %v1722
      %v1759 = vadd.f32 %v1681, %v1723
      %v1760 = vadd.f32 %v1682, %v1724
      %v1761 = vadd.f32 %v1683, %v1725
      %v1762 = vadd.f32 %v1684, %v1726
      %v1763 = vadd.f32 %v1685, %v1727
      %v1764 = vadd.f32 %v1686, %v1728
      %v1765 = vadd.f32 %v1687, %v1729
      %v1766 = vadd.f32 %v1688, %v1730
      %v1767 = vadd.f32 %v1689, %v1731
      %v1768 = vadd.f32 %v1690, %v1732
      %v1769 = vadd.f32 %v1691, %v1733
      %v1770 = vadd.f32 %v1692, %v1734
      %v1771 = vadd.f32 %v1693, %v1735
      %v1772 = vadd.f32 %v1694, %v1736
      %v1773 = vadd.f32 %v1695, %v1737
      %v1774 = vadd.f32 %v1696, %v1738
      %v1775 = vadd.f32 %v1697, %v1739
      %v1776 = vadd.f32 %v1698, %v1740
      %v1777 = vld [vmem:[#allocation2 + $0x13] sm:$0xff]
      %v1778 = vld [vmem:[#allocation2 + $0x1b] sm:$0xff]
      %v1779 = vld [vmem:[#allocation2 + $0x23] sm:$0xff]
      %v1780 = vld [vmem:[#allocation2 + $0x2b] sm:$0xff]
      %v1781 = vld [vmem:[#allocation2 + $0x33] sm:$0xff]
      %v1782 = vld [vmem:[#allocation2 + $0x3b] sm:$0xff]
      %v1783 = vld [vmem:[#allocation2 + $0x43] sm:$0xff]
      %v1784 = vld [vmem:[#allocation2 + $0x4b] sm:$0xff]
      %v1785 = vld [vmem:[#allocation2 + $0x53] sm:$0xff]
      %v1786 = vld [vmem:[#allocation2 + $0x5b] sm:$0xff]
      %v1787 = vld [vmem:[#allocation2 + $0x63] sm:$0xff]
      %v1788 = vld [vmem:[#allocation2 + $0x6b] sm:$0xff]
      %v1789 = vld [vmem:[#allocation2 + $0x73] sm:$0xff]
      %v1790 = vld [vmem:[#allocation2 + $0x7b] sm:$0xff]
      %v1791 = vld [vmem:[#allocation2 + $0x83] sm:$0xff]
      %v1792 = vld [vmem:[#allocation2 + $0x8b] sm:$0xff]
      %v1793 = vld [vmem:[#allocation2 + $0x93] sm:$0xff]
      %v1794 = vld [vmem:[#allocation2 + $0x9b] sm:$0xff]
      %v1795 = vld [vmem:[#allocation2 + $0xa3] sm:$0xff]
      %v1796 = vld [vmem:[#allocation2 + $0xab] sm:$0xff]
      %v1797 = vld [vmem:[#allocation2 + $0xb3] sm:$0xff]
      %v1798 = vld [vmem:[#allocation2 + $0xbb] sm:$0xff]
      %v1799 = vld [vmem:[#allocation2 + $0xc3] sm:$0xff]
      %v1800 = vld [vmem:[#allocation2 + $0xcb] sm:$0xff]
      %v1801 = vld [vmem:[#allocation2 + $0xd3] sm:$0xff]
      %v1802 = vld [vmem:[#allocation2 + $0xdb] sm:$0xff]
      %v1803 = vld [vmem:[#allocation2 + $0xe3] sm:$0xff]
      %v1804 = vld [vmem:[#allocation2 + $0xeb] sm:$0xff]
      %v1805 = vld [vmem:[#allocation2 + $0xf3] sm:$0xff]
      %v1806 = vld [vmem:[#allocation2 + $0xfb] sm:$0xff]
      %v1807 = vld [vmem:[#allocation2 + $0x103] sm:$0xff]
      %v1808 = vld [vmem:[#allocation2 + $0x10b] sm:$0xff]
      %v1809 = vld [vmem:[#allocation2 + $0x113] sm:$0xff]
      %v1810 = vld [vmem:[#allocation2 + $0x11b] sm:$0xff]
      %v1811 = vld [vmem:[#allocation2 + $0x123] sm:$0xff]
      %v1812 = vld [vmem:[#allocation2 + $0x12b] sm:$0xff]
      %v1813 = vlaneseq
      %v1814 = vshrl.u32 %v1813, 7
      %v1815 = vsub.s32 4, %v1814
      %v1816 = vrot.slane %v1361, %v1815
      %v1817 = vmul.f32 %v1777, %v1816
      %v1818 = vmul.f32 %v1778, %v1816
      %v1819 = vmul.f32 %v1779, %v1816
      %v1820 = vmul.f32 %v1780, %v1816
      %v1821 = vmul.f32 %v1781, %v1816
      %v1822 = vmul.f32 %v1782, %v1816
      %v1823 = vmul.f32 %v1783, %v1816
      %v1824 = vmul.f32 %v1784, %v1816
      %v1825 = vmul.f32 %v1785, %v1816
      %v1826 = vmul.f32 %v1786, %v1816
      %v1827 = vmul.f32 %v1787, %v1816
      %v1828 = vmul.f32 %v1788, %v1816
      %v1829 = vmul.f32 %v1789, %v1816
      %v1830 = vmul.f32 %v1790, %v1816
      %v1831 = vmul.f32 %v1791, %v1816
      %v1832 = vmul.f32 %v1792, %v1816
      %v1833 = vmul.f32 %v1793, %v1816
      %v1834 = vmul.f32 %v1794, %v1816
      %v1835 = vmul.f32 %v1795, %v1816
      %v1836 = vmul.f32 %v1796, %v1816
      %v1837 = vmul.f32 %v1797, %v1816
      %v1838 = vmul.f32 %v1798, %v1816
      %v1839 = vmul.f32 %v1799, %v1816
      %v1840 = vmul.f32 %v1800, %v1816
      %v1841 = vmul.f32 %v1801, %v1816
      %v1842 = vmul.f32 %v1802, %v1816
      %v1843 = vmul.f32 %v1803, %v1816
      %v1844 = vmul.f32 %v1804, %v1816
      %v1845 = vmul.f32 %v1805, %v1816
      %v1846 = vmul.f32 %v1806, %v1816
      %v1847 = vmul.f32 %v1807, %v1816
      %v1848 = vmul.f32 %v1808, %v1816
      %v1849 = vmul.f32 %v1809, %v1816
      %v1850 = vmul.f32 %v1810, %v1816
      %v1851 = vmul.f32 %v1811, %v1816
      %v1852 = vmul.f32 %v1812, %v1816
      %v1853 = vadd.f32 %v1741, %v1817
      %v1854 = vadd.f32 %v1742, %v1818
      %v1855 = vadd.f32 %v1743, %v1819
      %v1856 = vadd.f32 %v1744, %v1820
      %v1857 = vadd.f32 %v1745, %v1821
      %v1858 = vadd.f32 %v1746, %v1822
      %v1859 = vadd.f32 %v1747, %v1823
      %v1860 = vadd.f32 %v1748, %v1824
      %v1861 = vadd.f32 %v1749, %v1825
      %v1862 = vadd.f32 %v1750, %v1826
      %v1863 = vadd.f32 %v1751, %v1827
      %v1864 = vadd.f32 %v1752, %v1828
      %v1865 = vadd.f32 %v1753, %v1829
      %v1866 = vadd.f32 %v1754, %v1830
      %v1867 = vadd.f32 %v1755, %v1831
      %v1868 = vadd.f32 %v1756, %v1832
      %v1869 = vadd.f32 %v1757, %v1833
      %v1870 = vadd.f32 %v1758, %v1834
      %v1871 = vadd.f32 %v1759, %v1835
      %v1872 = vadd.f32 %v1760, %v1836
      %v1873 = vadd.f32 %v1761, %v1837
      %v1874 = vadd.f32 %v1762, %v1838
      %v1875 = vadd.f32 %v1763, %v1839
      %v1876 = vadd.f32 %v1764, %v1840
      %v1877 = vadd.f32 %v1765, %v1841
      %v1878 = vadd.f32 %v1766, %v1842
      %v1879 = vadd.f32 %v1767, %v1843
      %v1880 = vadd.f32 %v1768, %v1844
      %v1881 = vadd.f32 %v1769, %v1845
      %v1882 = vadd.f32 %v1770, %v1846
      %v1883 = vadd.f32 %v1771, %v1847
      %v1884 = vadd.f32 %v1772, %v1848
      %v1885 = vadd.f32 %v1773, %v1849
      %v1886 = vadd.f32 %v1774, %v1850
      %v1887 = vadd.f32 %v1775, %v1851
      %v1888 = vadd.f32 %v1776, %v1852
      %v1889 = vld [vmem:[#allocation2 + $0x14] sm:$0xff]
      %v1890 = vld [vmem:[#allocation2 + $0x1c] sm:$0xff]
      %v1891 = vld [vmem:[#allocation2 + $0x24] sm:$0xff]
      %v1892 = vld [vmem:[#allocation2 + $0x2c] sm:$0xff]
      %v1893 = vld [vmem:[#allocation2 + $0x34] sm:$0xff]
      %v1894 = vld [vmem:[#allocation2 + $0x3c] sm:$0xff]
      %v1895 = vld [vmem:[#allocation2 + $0x44] sm:$0xff]
      %v1896 = vld [vmem:[#allocation2 + $0x4c] sm:$0xff]
      %v1897 = vld [vmem:[#allocation2 + $0x54] sm:$0xff]
      %v1898 = vld [vmem:[#allocation2 + $0x5c] sm:$0xff]
      %v1899 = vld [vmem:[#allocation2 + $0x64] sm:$0xff]
      %v1900 = vld [vmem:[#allocation2 + $0x6c] sm:$0xff]
      %v1901 = vld [vmem:[#allocation2 + $0x74] sm:$0xff]
      %v1902 = vld [vmem:[#allocation2 + $0x7c] sm:$0xff]
      %v1903 = vld [vmem:[#allocation2 + $0x84] sm:$0xff]
      %v1904 = vld [vmem:[#allocation2 + $0x8c] sm:$0xff]
      %v1905 = vld [vmem:[#allocation2 + $0x94] sm:$0xff]
      %v1906 = vld [vmem:[#allocation2 + $0x9c] sm:$0xff]
      %v1907 = vld [vmem:[#allocation2 + $0xa4] sm:$0xff]
      %v1908 = vld [vmem:[#allocation2 + $0xac] sm:$0xff]
      %v1909 = vld [vmem:[#allocation2 + $0xb4] sm:$0xff]
      %v1910 = vld [vmem:[#allocation2 + $0xbc] sm:$0xff]
      %v1911 = vld [vmem:[#allocation2 + $0xc4] sm:$0xff]
      %v1912 = vld [vmem:[#allocation2 + $0xcc] sm:$0xff]
      %v1913 = vld [vmem:[#allocation2 + $0xd4] sm:$0xff]
      %v1914 = vld [vmem:[#allocation2 + $0xdc] sm:$0xff]
      %v1915 = vld [vmem:[#allocation2 + $0xe4] sm:$0xff]
      %v1916 = vld [vmem:[#allocation2 + $0xec] sm:$0xff]
      %v1917 = vld [vmem:[#allocation2 + $0xf4] sm:$0xff]
      %v1918 = vld [vmem:[#allocation2 + $0xfc] sm:$0xff]
      %v1919 = vld [vmem:[#allocation2 + $0x104] sm:$0xff]
      %v1920 = vld [vmem:[#allocation2 + $0x10c] sm:$0xff]
      %v1921 = vld [vmem:[#allocation2 + $0x114] sm:$0xff]
      %v1922 = vld [vmem:[#allocation2 + $0x11c] sm:$0xff]
      %v1923 = vld [vmem:[#allocation2 + $0x124] sm:$0xff]
      %v1924 = vld [vmem:[#allocation2 + $0x12c] sm:$0xff]
      %v1925 = vlaneseq
      %v1926 = vshrl.u32 %v1925, 7
      %v1927 = vsub.s32 5, %v1926
      %v1928 = vrot.slane %v1361, %v1927
      %v1929 = vmul.f32 %v1889, %v1928
      %v1930 = vmul.f32 %v1890, %v1928
      %v1931 = vmul.f32 %v1891, %v1928
      %v1932 = vmul.f32 %v1892, %v1928
      %v1933 = vmul.f32 %v1893, %v1928
      %v1934 = vmul.f32 %v1894, %v1928
      %v1935 = vmul.f32 %v1895, %v1928
      %v1936 = vmul.f32 %v1896, %v1928
      %v1937 = vmul.f32 %v1897, %v1928
      %v1938 = vmul.f32 %v1898, %v1928
      %v1939 = vmul.f32 %v1899, %v1928
      %v1940 = vmul.f32 %v1900, %v1928
      %v1941 = vmul.f32 %v1901, %v1928
      %v1942 = vmul.f32 %v1902, %v1928
      %v1943 = vmul.f32 %v1903, %v1928
      %v1944 = vmul.f32 %v1904, %v1928
      %v1945 = vmul.f32 %v1905, %v1928
      %v1946 = vmul.f32 %v1906, %v1928
      %v1947 = vmul.f32 %v1907, %v1928
      %v1948 = vmul.f32 %v1908, %v1928
      %v1949 = vmul.f32 %v1909, %v1928
      %v1950 = vmul.f32 %v1910, %v1928
      %v1951 = vmul.f32 %v1911, %v1928
      %v1952 = vmul.f32 %v1912, %v1928
      %v1953 = vmul.f32 %v1913, %v1928
      %v1954 = vmul.f32 %v1914, %v1928
      %v1955 = vmul.f32 %v1915, %v1928
      %v1956 = vmul.f32 %v1916, %v1928
      %v1957 = vmul.f32 %v1917, %v1928
      %v1958 = vmul.f32 %v1918, %v1928
      %v1959 = vmul.f32 %v1919, %v1928
      %v1960 = vmul.f32 %v1920, %v1928
      %v1961 = vmul.f32 %v1921, %v1928
      %v1962 = vmul.f32 %v1922, %v1928
      %v1963 = vmul.f32 %v1923, %v1928
      %v1964 = vmul.f32 %v1924, %v1928
      %v1965 = vadd.f32 %v1853, %v1929
      %v1966 = vadd.f32 %v1854, %v1930
      %v1967 = vadd.f32 %v1855, %v1931
      %v1968 = vadd.f32 %v1856, %v1932
      %v1969 = vadd.f32 %v1857, %v1933
      %v1970 = vadd.f32 %v1858, %v1934
      %v1971 = vadd.f32 %v1859, %v1935
      %v1972 = vadd.f32 %v1860, %v1936
      %v1973 = vadd.f32 %v1861, %v1937
      %v1974 = vadd.f32 %v1862, %v1938
      %v1975 = vadd.f32 %v1863, %v1939
      %v1976 = vadd.f32 %v1864, %v1940
      %v1977 = vadd.f32 %v1865, %v1941
      %v1978 = vadd.f32 %v1866, %v1942
      %v1979 = vadd.f32 %v1867, %v1943
      %v1980 = vadd.f32 %v1868, %v1944
      %v1981 = vadd.f32 %v1869, %v1945
      %v1982 = vadd.f32 %v1870, %v1946
      %v1983 = vadd.f32 %v1871, %v1947
      %v1984 = vadd.f32 %v1872, %v1948
      %v1985 = vadd.f32 %v1873, %v1949
      %v1986 = vadd.f32 %v1874, %v1950
      %v1987 = vadd.f32 %v1875, %v1951
      %v1988 = vadd.f32 %v1876, %v1952
      %v1989 = vadd.f32 %v1877, %v1953
      %v1990 = vadd.f32 %v1878, %v1954
      %v1991 = vadd.f32 %v1879, %v1955
      %v1992 = vadd.f32 %v1880, %v1956
      %v1993 = vadd.f32 %v1881, %v1957
      %v1994 = vadd.f32 %v1882, %v1958
      %v1995 = vadd.f32 %v1883, %v1959
      %v1996 = vadd.f32 %v1884, %v1960
      %v1997 = vadd.f32 %v1885, %v1961
      %v1998 = vadd.f32 %v1886, %v1962
      %v1999 = vadd.f32 %v1887, %v1963
      %v2000 = vadd.f32 %v1888, %v1964
      %v2001 = vld [vmem:[#allocation2 + $0x134] sm:$0xff]
      %v2002 = vld [vmem:[#allocation2 + $0x13c] sm:$0xff]
      %v2003 = vlaneseq
      %v2004 = vshrl.u32 %v2003, 7
      %v2005 = vsub.s32 6, %v2004
      %v2006 = vrot.slane %v1361, %v2005
      %v2007 = vmul.f32 %v1891, %v2006
      %v2008 = vmul.f32 %v1892, %v2006
      %v2009 = vmul.f32 %v1893, %v2006
      %v2010 = vmul.f32 %v1894, %v2006
      %v2011 = vmul.f32 %v1895, %v2006
      %v2012 = vmul.f32 %v1896, %v2006
      %v2013 = vmul.f32 %v1897, %v2006
      %v2014 = vmul.f32 %v1898, %v2006
      %v2015 = vmul.f32 %v1899, %v2006
      %v2016 = vmul.f32 %v1900, %v2006
      %v2017 = vmul.f32 %v1901, %v2006
      %v2018 = vmul.f32 %v1902, %v2006
      %v2019 = vmul.f32 %v1903, %v2006
      %v2020 = vmul.f32 %v1904, %v2006
      %v2021 = vmul.f32 %v1905, %v2006
      %v2022 = vmul.f32 %v1906, %v2006
      %v2023 = vmul.f32 %v1907, %v2006
      %v2024 = vmul.f32 %v1908, %v2006
      %v2025 = vmul.f32 %v1909, %v2006
      %v2026 = vmul.f32 %v1910, %v2006
      %v2027 = vmul.f32 %v1911, %v2006
      %v2028 = vmul.f32 %v1912, %v2006
      %v2029 = vmul.f32 %v1913, %v2006
      %v2030 = vmul.f32 %v1914, %v2006
      %v2031 = vmul.f32 %v1915, %v2006
      %v2032 = vmul.f32 %v1916, %v2006
      %v2033 = vmul.f32 %v1917, %v2006
      %v2034 = vmul.f32 %v1918, %v2006
      %v2035 = vmul.f32 %v1919, %v2006
      %v2036 = vmul.f32 %v1920, %v2006
      %v2037 = vmul.f32 %v1921, %v2006
      %v2038 = vmul.f32 %v1922, %v2006
      %v2039 = vmul.f32 %v1923, %v2006
      %v2040 = vmul.f32 %v1924, %v2006
      %v2041 = vmul.f32 %v2001, %v2006
      %v2042 = vmul.f32 %v2002, %v2006
      %v2043 = vadd.f32 %v1965, %v2007
      %v2044 = vadd.f32 %v1966, %v2008
      %v2045 = vadd.f32 %v1967, %v2009
      %v2046 = vadd.f32 %v1968, %v2010
      %v2047 = vadd.f32 %v1969, %v2011
      %v2048 = vadd.f32 %v1970, %v2012
      %v2049 = vadd.f32 %v1971, %v2013
      %v2050 = vadd.f32 %v1972, %v2014
      %v2051 = vadd.f32 %v1973, %v2015
      %v2052 = vadd.f32 %v1974, %v2016
      %v2053 = vadd.f32 %v1975, %v2017
      %v2054 = vadd.f32 %v1976, %v2018
      %v2055 = vadd.f32 %v1977, %v2019
      %v2056 = vadd.f32 %v1978, %v2020
      %v2057 = vadd.f32 %v1979, %v2021
      %v2058 = vadd.f32 %v1980, %v2022
      %v2059 = vadd.f32 %v1981, %v2023
      %v2060 = vadd.f32 %v1982, %v2024
      %v2061 = vadd.f32 %v1983, %v2025
      %v2062 = vadd.f32 %v1984, %v2026
      %v2063 = vadd.f32 %v1985, %v2027
      %v2064 = vadd.f32 %v1986, %v2028
      %v2065 = vadd.f32 %v1987, %v2029
      %v2066 = vadd.f32 %v1988, %v2030
      %v2067 = vadd.f32 %v1989, %v2031
      %v2068 = vadd.f32 %v1990, %v2032
      %v2069 = vadd.f32 %v1991, %v2033
      %v2070 = vadd.f32 %v1992, %v2034
      %v2071 = vadd.f32 %v1993, %v2035
      %v2072 = vadd.f32 %v1994, %v2036
      %v2073 = vadd.f32 %v1995, %v2037
      %v2074 = vadd.f32 %v1996, %v2038
      %v2075 = vadd.f32 %v1997, %v2039
      %v2076 = vadd.f32 %v1998, %v2040
      %v2077 = vadd.f32 %v1999, %v2041
      %v2078 = vadd.f32 %v2000, %v2042
      %v2079 = vld [vmem:[#allocation2 + $0x25] sm:$0xff]
      %v2080 = vld [vmem:[#allocation2 + $0x2d] sm:$0xff]
      %v2081 = vld [vmem:[#allocation2 + $0x35] sm:$0xff]
      %v2082 = vld [vmem:[#allocation2 + $0x3d] sm:$0xff]
      %v2083 = vld [vmem:[#allocation2 + $0x45] sm:$0xff]
      %v2084 = vld [vmem:[#allocation2 + $0x4d] sm:$0xff]
      %v2085 = vld [vmem:[#allocation2 + $0x55] sm:$0xff]
      %v2086 = vld [vmem:[#allocation2 + $0x5d] sm:$0xff]
      %v2087 = vld [vmem:[#allocation2 + $0x65] sm:$0xff]
      %v2088 = vld [vmem:[#allocation2 + $0x6d] sm:$0xff]
      %v2089 = vld [vmem:[#allocation2 + $0x75] sm:$0xff]
      %v2090 = vld [vmem:[#allocation2 + $0x7d] sm:$0xff]
      %v2091 = vld [vmem:[#allocation2 + $0x85] sm:$0xff]
      %v2092 = vld [vmem:[#allocation2 + $0x8d] sm:$0xff]
      %v2093 = vld [vmem:[#allocation2 + $0x95] sm:$0xff]
      %v2094 = vld [vmem:[#allocation2 + $0x9d] sm:$0xff]
      %v2095 = vld [vmem:[#allocation2 + $0xa5] sm:$0xff]
      %v2096 = vld [vmem:[#allocation2 + $0xad] sm:$0xff]
      %v2097 = vld [vmem:[#allocation2 + $0xb5] sm:$0xff]
      %v2098 = vld [vmem:[#allocation2 + $0xbd] sm:$0xff]
      %v2099 = vld [vmem:[#allocation2 + $0xc5] sm:$0xff]
      %v2100 = vld [vmem:[#allocation2 + $0xcd] sm:$0xff]
      %v2101 = vld [vmem:[#allocation2 + $0xd5] sm:$0xff]
      %v2102 = vld [vmem:[#allocation2 + $0xdd] sm:$0xff]
      %v2103 = vld [vmem:[#allocation2 + $0xe5] sm:$0xff]
      %v2104 = vld [vmem:[#allocation2 + $0xed] sm:$0xff]
      %v2105 = vld [vmem:[#allocation2 + $0xf5] sm:$0xff]
      %v2106 = vld [vmem:[#allocation2 + $0xfd] sm:$0xff]
      %v2107 = vld [vmem:[#allocation2 + $0x105] sm:$0xff]
      %v2108 = vld [vmem:[#allocation2 + $0x10d] sm:$0xff]
      %v2109 = vld [vmem:[#allocation2 + $0x115] sm:$0xff]
      %v2110 = vld [vmem:[#allocation2 + $0x11d] sm:$0xff]
      %v2111 = vld [vmem:[#allocation2 + $0x125] sm:$0xff]
      %v2112 = vld [vmem:[#allocation2 + $0x12d] sm:$0xff]
      %v2113 = vld [vmem:[#allocation2 + $0x135] sm:$0xff]
      %v2114 = vld [vmem:[#allocation2 + $0x13d] sm:$0xff]
      %v2115 = vlaneseq
      %v2116 = vshrl.u32 %v2115, 7
      %v2117 = vsub.s32 7, %v2116
      %v2118 = vrot.slane %v1361, %v2117
      %v2119 = vmul.f32 %v2079, %v2118
      %v2120 = vmul.f32 %v2080, %v2118
      %v2121 = vmul.f32 %v2081, %v2118
      %v2122 = vmul.f32 %v2082, %v2118
      %v2123 = vmul.f32 %v2083, %v2118
      %v2124 = vmul.f32 %v2084, %v2118
      %v2125 = vmul.f32 %v2085, %v2118
      %v2126 = vmul.f32 %v2086, %v2118
      %v2127 = vmul.f32 %v2087, %v2118
      %v2128 = vmul.f32 %v2088, %v2118
      %v2129 = vmul.f32 %v2089, %v2118
      %v2130 = vmul.f32 %v2090, %v2118
      %v2131 = vmul.f32 %v2091, %v2118
      %v2132 = vmul.f32 %v2092, %v2118
      %v2133 = vmul.f32 %v2093, %v2118
      %v2134 = vmul.f32 %v2094, %v2118
      %v2135 = vmul.f32 %v2095, %v2118
      %v2136 = vmul.f32 %v2096, %v2118
      %v2137 = vmul.f32 %v2097, %v2118
      %v2138 = vmul.f32 %v2098, %v2118
      %v2139 = vmul.f32 %v2099, %v2118
      %v2140 = vmul.f32 %v2100, %v2118
      %v2141 = vmul.f32 %v2101, %v2118
      %v2142 = vmul.f32 %v2102, %v2118
      %v2143 = vmul.f32 %v2103, %v2118
      %v2144 = vmul.f32 %v2104, %v2118
      %v2145 = vmul.f32 %v2105, %v2118
      %v2146 = vmul.f32 %v2106, %v2118
      %v2147 = vmul.f32 %v2107, %v2118
      %v2148 = vmul.f32 %v2108, %v2118
      %v2149 = vmul.f32 %v2109, %v2118
      %v2150 = vmul.f32 %v2110, %v2118
      %v2151 = vmul.f32 %v2111, %v2118
      %v2152 = vmul.f32 %v2112, %v2118
      %v2153 = vmul.f32 %v2113, %v2118
      %v2154 = vmul.f32 %v2114, %v2118
      %v2155 = vadd.f32 %v2043, %v2119
      %v2156 = vadd.f32 %v2044, %v2120
      %v2157 = vadd.f32 %v2045, %v2121
      %v2158 = vadd.f32 %v2046, %v2122
      %v2159 = vadd.f32 %v2047, %v2123
      %v2160 = vadd.f32 %v2048, %v2124
      %v2161 = vadd.f32 %v2049, %v2125
      %v2162 = vadd.f32 %v2050, %v2126
      %v2163 = vadd.f32 %v2051, %v2127
      %v2164 = vadd.f32 %v2052, %v2128
      %v2165 = vadd.f32 %v2053, %v2129
      %v2166 = vadd.f32 %v2054, %v2130
      %v2167 = vadd.f32 %v2055, %v2131
      %v2168 = vadd.f32 %v2056, %v2132
      %v2169 = vadd.f32 %v2057, %v2133
      %v2170 = vadd.f32 %v2058, %v2134
      %v2171 = vadd.f32 %v2059, %v2135
      %v2172 = vadd.f32 %v2060, %v2136
      %v2173 = vadd.f32 %v2061, %v2137
      %v2174 = vadd.f32 %v2062, %v2138
      %v2175 = vadd.f32 %v2063, %v2139
      %v2176 = vadd.f32 %v2064, %v2140
      %v2177 = vadd.f32 %v2065, %v2141
      %v2178 = vadd.f32 %v2066, %v2142
      %v2179 = vadd.f32 %v2067, %v2143
      %v2180 = vadd.f32 %v2068, %v2144
      %v2181 = vadd.f32 %v2069, %v2145
      %v2182 = vadd.f32 %v2070, %v2146
      %v2183 = vadd.f32 %v2071, %v2147
      %v2184 = vadd.f32 %v2072, %v2148
      %v2185 = vadd.f32 %v2073, %v2149
      %v2186 = vadd.f32 %v2074, %v2150
      %v2187 = vadd.f32 %v2075, %v2151
      %v2188 = vadd.f32 %v2076, %v2152
      %v2189 = vadd.f32 %v2077, %v2153
      %v2190 = vadd.f32 %v2078, %v2154
      %v2191 = vld [vmem:[#allocation2 + $0x26] sm:$0xff]
      %v2192 = vld [vmem:[#allocation2 + $0x2e] sm:$0xff]
      %v2193 = vld [vmem:[#allocation2 + $0x36] sm:$0xff]
      %v2194 = vld [vmem:[#allocation2 + $0x3e] sm:$0xff]
      %v2195 = vld [vmem:[#allocation2 + $0x46] sm:$0xff]
      %v2196 = vld [vmem:[#allocation2 + $0x4e] sm:$0xff]
      %v2197 = vld [vmem:[#allocation2 + $0x56] sm:$0xff]
      %v2198 = vld [vmem:[#allocation2 + $0x5e] sm:$0xff]
      %v2199 = vld [vmem:[#allocation2 + $0x66] sm:$0xff]
      %v2200 = vld [vmem:[#allocation2 + $0x6e] sm:$0xff]
      %v2201 = vld [vmem:[#allocation2 + $0x76] sm:$0xff]
      %v2202 = vld [vmem:[#allocation2 + $0x7e] sm:$0xff]
      %v2203 = vld [vmem:[#allocation2 + $0x86] sm:$0xff]
      %v2204 = vld [vmem:[#allocation2 + $0x8e] sm:$0xff]
      %v2205 = vld [vmem:[#allocation2 + $0x96] sm:$0xff]
      %v2206 = vld [vmem:[#allocation2 + $0x9e] sm:$0xff]
      %v2207 = vld [vmem:[#allocation2 + $0xa6] sm:$0xff]
      %v2208 = vld [vmem:[#allocation2 + $0xae] sm:$0xff]
      %v2209 = vld [vmem:[#allocation2 + $0xb6] sm:$0xff]
      %v2210 = vld [vmem:[#allocation2 + $0xbe] sm:$0xff]
      %v2211 = vld [vmem:[#allocation2 + $0xc6] sm:$0xff]
      %v2212 = vld [vmem:[#allocation2 + $0xce] sm:$0xff]
      %v2213 = vld [vmem:[#allocation2 + $0xd6] sm:$0xff]
      %v2214 = vld [vmem:[#allocation2 + $0xde] sm:$0xff]
      %v2215 = vld [vmem:[#allocation2 + $0xe6] sm:$0xff]
      %v2216 = vld [vmem:[#allocation2 + $0xee] sm:$0xff]
      %v2217 = vld [vmem:[#allocation2 + $0xf6] sm:$0xff]
      %v2218 = vld [vmem:[#allocation2 + $0xfe] sm:$0xff]
      %v2219 = vld [vmem:[#allocation2 + $0x106] sm:$0xff]
      %v2220 = vld [vmem:[#allocation2 + $0x10e] sm:$0xff]
      %v2221 = vld [vmem:[#allocation2 + $0x116] sm:$0xff]
      %v2222 = vld [vmem:[#allocation2 + $0x11e] sm:$0xff]
      %v2223 = vld [vmem:[#allocation2 + $0x126] sm:$0xff]
      %v2224 = vld [vmem:[#allocation2 + $0x12e] sm:$0xff]
      %v2225 = vld [vmem:[#allocation2 + $0x136] sm:$0xff]
      %v2226 = vld [vmem:[#allocation2 + $0x13e] sm:$0xff]
      %v2227 = vlaneseq
      %v2228 = vshrl.u32 %v2227, 7
      %v2229 = vsub.s32 0, %v2228
      %v2230 = vrot.slane %v1362, %v2229
      %v2231 = vmul.f32 %v2191, %v2230
      %v2232 = vmul.f32 %v2192, %v2230
      %v2233 = vmul.f32 %v2193, %v2230
      %v2234 = vmul.f32 %v2194, %v2230
      %v2235 = vmul.f32 %v2195, %v2230
      %v2236 = vmul.f32 %v2196, %v2230
      %v2237 = vmul.f32 %v2197, %v2230
      %v2238 = vmul.f32 %v2198, %v2230
      %v2239 = vmul.f32 %v2199, %v2230
      %v2240 = vmul.f32 %v2200, %v2230
      %v2241 = vmul.f32 %v2201, %v2230
      %v2242 = vmul.f32 %v2202, %v2230
      %v2243 = vmul.f32 %v2203, %v2230
      %v2244 = vmul.f32 %v2204, %v2230
      %v2245 = vmul.f32 %v2205, %v2230
      %v2246 = vmul.f32 %v2206, %v2230
      %v2247 = vmul.f32 %v2207, %v2230
      %v2248 = vmul.f32 %v2208, %v2230
      %v2249 = vmul.f32 %v2209, %v2230
      %v2250 = vmul.f32 %v2210, %v2230
      %v2251 = vmul.f32 %v2211, %v2230
      %v2252 = vmul.f32 %v2212, %v2230
      %v2253 = vmul.f32 %v2213, %v2230
      %v2254 = vmul.f32 %v2214, %v2230
      %v2255 = vmul.f32 %v2215, %v2230
      %v2256 = vmul.f32 %v2216, %v2230
      %v2257 = vmul.f32 %v2217, %v2230
      %v2258 = vmul.f32 %v2218, %v2230
      %v2259 = vmul.f32 %v2219, %v2230
      %v2260 = vmul.f32 %v2220, %v2230
      %v2261 = vmul.f32 %v2221, %v2230
      %v2262 = vmul.f32 %v2222, %v2230
      %v2263 = vmul.f32 %v2223, %v2230
      %v2264 = vmul.f32 %v2224, %v2230
      %v2265 = vmul.f32 %v2225, %v2230
      %v2266 = vmul.f32 %v2226, %v2230
      %v2267 = vadd.f32 %v2155, %v2231
      %v2268 = vadd.f32 %v2156, %v2232
      %v2269 = vadd.f32 %v2157, %v2233
      %v2270 = vadd.f32 %v2158, %v2234
      %v2271 = vadd.f32 %v2159, %v2235
      %v2272 = vadd.f32 %v2160, %v2236
      %v2273 = vadd.f32 %v2161, %v2237
      %v2274 = vadd.f32 %v2162, %v2238
      %v2275 = vadd.f32 %v2163, %v2239
      %v2276 = vadd.f32 %v2164, %v2240
      %v2277 = vadd.f32 %v2165, %v2241
      %v2278 = vadd.f32 %v2166, %v2242
      %v2279 = vadd.f32 %v2167, %v2243
      %v2280 = vadd.f32 %v2168, %v2244
      %v2281 = vadd.f32 %v2169, %v2245
      %v2282 = vadd.f32 %v2170, %v2246
      %v2283 = vadd.f32 %v2171, %v2247
      %v2284 = vadd.f32 %v2172, %v2248
      %v2285 = vadd.f32 %v2173, %v2249
      %v2286 = vadd.f32 %v2174, %v2250
      %v2287 = vadd.f32 %v2175, %v2251
      %v2288 = vadd.f32 %v2176, %v2252
      %v2289 = vadd.f32 %v2177, %v2253
      %v2290 = vadd.f32 %v2178, %v2254
      %v2291 = vadd.f32 %v2179, %v2255
      %v2292 = vadd.f32 %v2180, %v2256
      %v2293 = vadd.f32 %v2181, %v2257
      %v2294 = vadd.f32 %v2182, %v2258
      %v2295 = vadd.f32 %v2183, %v2259
      %v2296 = vadd.f32 %v2184, %v2260
      %v2297 = vadd.f32 %v2185, %v2261
      %v2298 = vadd.f32 %v2186, %v2262
      %v2299 = vadd.f32 %v2187, %v2263
      %v2300 = vadd.f32 %v2188, %v2264
      %v2301 = vadd.f32 %v2189, %v2265
      %v2302 = vadd.f32 %v2190, %v2266
      %v2303 = vld [vmem:[%s6] sm:$0x1]
      %v2305 = vlaneseq
      %v2306 = vshrl.u32 %v2305, 7
      %v2307 = vsub.s32 0, %v2306
      %v2308 = vrot.slane %v2303, %v2307
      %v2310 = vmul.f32 %v2267, %v2308
      %v2311 = vmul.f32 %v2268, %v2308
      %v2312 = vmul.f32 %v2269, %v2308
      %v2313 = vmul.f32 %v2270, %v2308
      %v2314 = vmul.f32 %v2271, %v2308
      %v2315 = vmul.f32 %v2272, %v2308
      %v2316 = vmul.f32 %v2273, %v2308
      %v2317 = vmul.f32 %v2274, %v2308
      %v2318 = vmul.f32 %v2275, %v2308
      %v2319 = vmul.f32 %v2276, %v2308
      %v2320 = vmul.f32 %v2277, %v2308
      %v2321 = vmul.f32 %v2278, %v2308
      %v2322 = vmul.f32 %v2279, %v2308
      %v2323 = vmul.f32 %v2280, %v2308
      %v2324 = vmul.f32 %v2281, %v2308
      %v2325 = vmul.f32 %v2282, %v2308
      %v2326 = vmul.f32 %v2283, %v2308
      %v2327 = vmul.f32 %v2284, %v2308
      %v2328 = vmul.f32 %v2285, %v2308
      %v2329 = vmul.f32 %v2286, %v2308
      %v2330 = vmul.f32 %v2287, %v2308
      %v2331 = vmul.f32 %v2288, %v2308
      %v2332 = vmul.f32 %v2289, %v2308
      %v2333 = vmul.f32 %v2290, %v2308
      %v2334 = vmul.f32 %v2291, %v2308
      %v2335 = vmul.f32 %v2292, %v2308
      %v2336 = vmul.f32 %v2293, %v2308
      %v2337 = vmul.f32 %v2294, %v2308
      %v2338 = vmul.f32 %v2295, %v2308
      %v2339 = vmul.f32 %v2296, %v2308
      %v2340 = vmul.f32 %v2297, %v2308
      %v2341 = vmul.f32 %v2298, %v2308
      %v2342 = vmul.f32 %v2299, %v2308
      %v2343 = vmul.f32 %v2300, %v2308
      %v2344 = vmul.f32 %v2301, %v2308
      %v2345 = vmul.f32 %v2302, %v2308
      %v2346 = vld [vmem:[%s7] sm:$0x1]
      %v2348 = vlaneseq
      %v2349 = vshrl.u32 %v2348, 7
      %v2350 = vsub.s32 0, %v2349
      %v2351 = vrot.slane %v2346, %v2350
      %v2353 = vadd.f32 %v2310, %v2351
      %v2354 = vadd.f32 %v2311, %v2351
      %v2355 = vadd.f32 %v2312, %v2351
      %v2356 = vadd.f32 %v2313, %v2351
      %v2357 = vadd.f32 %v2314, %v2351
      %v2358 = vadd.f32 %v2315, %v2351
      %v2359 = vadd.f32 %v2316, %v2351
      %v2360 = vadd.f32 %v2317, %v2351
      %v2361 = vadd.f32 %v2318, %v2351
      %v2362 = vadd.f32 %v2319, %v2351
      %v2363 = vadd.f32 %v2320, %v2351
      %v2364 = vadd.f32 %v2321, %v2351
      %v2365 = vadd.f32 %v2322, %v2351
      %v2366 = vadd.f32 %v2323, %v2351
      %v2367 = vadd.f32 %v2324, %v2351
      %v2368 = vadd.f32 %v2325, %v2351
      %v2369 = vadd.f32 %v2326, %v2351
      %v2370 = vadd.f32 %v2327, %v2351
      %v2371 = vadd.f32 %v2328, %v2351
      %v2372 = vadd.f32 %v2329, %v2351
      %v2373 = vadd.f32 %v2330, %v2351
      %v2374 = vadd.f32 %v2331, %v2351
      %v2375 = vadd.f32 %v2332, %v2351
      %v2376 = vadd.f32 %v2333, %v2351
      %v2377 = vadd.f32 %v2334, %v2351
      %v2378 = vadd.f32 %v2335, %v2351
      %v2379 = vadd.f32 %v2336, %v2351
      %v2380 = vadd.f32 %v2337, %v2351
      %v2381 = vadd.f32 %v2338, %v2351
      %v2382 = vadd.f32 %v2339, %v2351
      %v2383 = vadd.f32 %v2340, %v2351
      %v2384 = vadd.f32 %v2341, %v2351
      %v2385 = vadd.f32 %v2342, %v2351
      %v2386 = vadd.f32 %v2343, %v2351
      %v2387 = vadd.f32 %v2344, %v2351
      %v2388 = vadd.f32 %v2345, %v2351
      %v2389 = vmax.f32 %v2353, 0.0
      %v2390 = vmax.f32 %v2354, 0.0
      %v2391 = vmax.f32 %v2355, 0.0
      %v2392 = vmax.f32 %v2356, 0.0
      %v2393 = vmax.f32 %v2357, 0.0
      %v2394 = vmax.f32 %v2358, 0.0
      %v2395 = vmax.f32 %v2359, 0.0
      %v2396 = vmax.f32 %v2360, 0.0
      %v2397 = vmax.f32 %v2361, 0.0
      %v2398 = vmax.f32 %v2362, 0.0
      %v2399 = vmax.f32 %v2363, 0.0
      %v2400 = vmax.f32 %v2364, 0.0
      %v2401 = vmax.f32 %v2365, 0.0
      %v2402 = vmax.f32 %v2366, 0.0
      %v2403 = vmax.f32 %v2367, 0.0
      %v2404 = vmax.f32 %v2368, 0.0
      %v2405 = vmax.f32 %v2369, 0.0
      %v2406 = vmax.f32 %v2370, 0.0
      %v2407 = vmax.f32 %v2371, 0.0
      %v2408 = vmax.f32 %v2372, 0.0
      %v2409 = vmax.f32 %v2373, 0.0
      %v2410 = vmax.f32 %v2374, 0.0
      %v2411 = vmax.f32 %v2375, 0.0
      %v2412 = vmax.f32 %v2376, 0.0
      %v2413 = vmax.f32 %v2377, 0.0
      %v2414 = vmax.f32 %v2378, 0.0
      %v2415 = vmax.f32 %v2379, 0.0
      %v2416 = vmax.f32 %v2380, 0.0
      %v2417 = vmax.f32 %v2381, 0.0
      %v2418 = vmax.f32 %v2382, 0.0
      %v2419 = vmax.f32 %v2383, 0.0
      %v2420 = vmax.f32 %v2384, 0.0
      %v2421 = vmax.f32 %v2385, 0.0
      %v2422 = vmax.f32 %v2386, 0.0
      %v2423 = vmax.f32 %v2387, 0.0
      %v2424 = vmax.f32 %v2388, 0.0
      %v2425 = vmin.f32 %v2389, 6.0
      %v2426 = vmin.f32 %v2390, 6.0
      %v2427 = vmin.f32 %v2391, 6.0
      %v2428 = vmin.f32 %v2392, 6.0
      %v2429 = vmin.f32 %v2393, 6.0
      %v2430 = vmin.f32 %v2394, 6.0
      %v2431 = vmin.f32 %v2395, 6.0
      %v2432 = vmin.f32 %v2396, 6.0
      %v2433 = vmin.f32 %v2397, 6.0
      %v2434 = vmin.f32 %v2398, 6.0
      %v2435 = vmin.f32 %v2399, 6.0
      %v2436 = vmin.f32 %v2400, 6.0
      %v2437 = vmin.f32 %v2401, 6.0
      %v2438 = vmin.f32 %v2402, 6.0
      %v2439 = vmin.f32 %v2403, 6.0
      %v2440 = vmin.f32 %v2404, 6.0
      %v2441 = vmin.f32 %v2405, 6.0
      %v2442 = vmin.f32 %v2406, 6.0
      %v2443 = vmin.f32 %v2407, 6.0
      %v2444 = vmin.f32 %v2408, 6.0
      %v2445 = vmin.f32 %v2409, 6.0
      %v2446 = vmin.f32 %v2410, 6.0
      %v2447 = vmin.f32 %v2411, 6.0
      %v2448 = vmin.f32 %v2412, 6.0
      %v2449 = vmin.f32 %v2413, 6.0
      %v2450 = vmin.f32 %v2414, 6.0
      %v2451 = vmin.f32 %v2415, 6.0
      %v2452 = vmin.f32 %v2416, 6.0
      %v2453 = vmin.f32 %v2417, 6.0
      %v2454 = vmin.f32 %v2418, 6.0
      %v2455 = vmin.f32 %v2419, 6.0
      %v2456 = vmin.f32 %v2420, 6.0
      %v2457 = vmin.f32 %v2421, 6.0
      %v2458 = vmin.f32 %v2422, 6.0
      %v2459 = vmin.f32 %v2423, 6.0
      %v2460 = vmin.f32 %v2424, 6.0
      %v2461 = vld [vmem:[%s8] sm:$0xff]
      %v2462 = vld [vmem:[%s8 + $0x8] sm:$0xff]
      %v2464 = vsel %vm1314, %v2425, 0
      %v2467 = vsel %vm1314, %v2426, 0
      %v2470 = vsel %vm1314, %v2427, 0
      %v2473 = vsel %vm1314, %v2428, 0
      %v2476 = vsel %vm1314, %v2429, 0
      %v2479 = vsel %vm1314, %v2430, 0
      %v2482 = vsel %vm1314, %v2431, 0
      %v2485 = vsel %vm1314, %v2432, 0
      %v2488 = vsel %vm1314, %v2433, 0
      %v2491 = vsel %vm1314, %v2434, 0
      %v2494 = vsel %vm1314, %v2435, 0
      %v2497 = vsel %vm1314, %v2436, 0
      %v2500 = vsel %vm1314, %v2437, 0
      %v2503 = vsel %vm1314, %v2438, 0
      %v2506 = vsel %vm1314, %v2439, 0
      %v2509 = vsel %vm1314, %v2440, 0
      %v2512 = vsel %vm1314, %v2441, 0
      %v2515 = vsel %vm1314, %v2442, 0
      %v2518 = vsel %vm1314, %v2443, 0
      %v2521 = vsel %vm1314, %v2444, 0
      %v2524 = vsel %vm1314, %v2445, 0
      %v2527 = vsel %vm1314, %v2446, 0
      %v2530 = vsel %vm1314, %v2447, 0
      %v2533 = vsel %vm1314, %v2448, 0
      %v2536 = vsel %vm1314, %v2449, 0
      %v2539 = vsel %vm1314, %v2450, 0
      %v2542 = vsel %vm1314, %v2451, 0
      %v2545 = vsel %vm1314, %v2452, 0
      %v2548 = vsel %vm1314, %v2453, 0
      %v2551 = vsel %vm1314, %v2454, 0
      %v2554 = vsel %vm1314, %v2455, 0
      %v2557 = vsel %vm1314, %v2456, 0
      %v2560 = vsel %vm1314, %v2457, 0
      %v2563 = vsel %vm1314, %v2458, 0
      %v2566 = vsel %vm1314, %v2459, 0
      %v2569 = vsel %vm1314, %v2460, 0
      %2571 = vmatprep.subr.mxu0 0.0
      %2572 = vmatpush1.msra.mxu0 %v2461
      %2573 = vmatprep.subr.mxu0 0.0
      %2574 = vmatpush1.msra.mxu0 %v2462
      %2575 = vmatprep.subr.mxu0 0.0
      %2576 = vmatpush1.msra.mxu0 0.0
      %2577 = vmatprep.subr.mxu0 0.0
      %2578 = vmatpush1.msra.mxu0 0.0
      %2579 = vmatprep.subr.mxu0 0.0
      %2580 = vmatpush1.msra.mxu0 0.0
      %2581 = vmatprep.subr.mxu0 0.0
      %2582 = vmatpush1.msra.mxu0 0.0
      %2583 = vmatprep.subr.mxu0 0.0
      %2584 = vmatpush1.msra.mxu0 0.0
      %2585 = vmatprep.subr.mxu0 0.0
      %2586 = vmatpush1.msra.mxu0 0.0
      %2587 = vmatprep.subr.mxu0 0.0
      %2588 = vmatpush1.msra.mxu0 0.0
      %2589 = vmatprep.subr.mxu0 0.0
      %2590 = vmatpush1.msra.mxu0 0.0
      %2591 = vmatprep.subr.mxu0 0.0
      %2592 = vmatpush1.msra.mxu0 0.0
      %2593 = vmatprep.subr.mxu0 0.0
      %2594 = vmatpush1.msra.mxu0 0.0
      %2595 = vmatprep.subr.mxu0 0.0
      %2596 = vmatpush1.msra.mxu0 0.0
      %2597 = vmatprep.subr.mxu0 0.0
      %2598 = vmatpush1.msra.mxu0 0.0
      %2599 = vmatprep.subr.mxu0 0.0
      %2600 = vmatpush1.msra.mxu0 0.0
      %2601 = vmatprep.subr.mxu0 0.0
      %2602 = vmatpush1.msra.mxu0 0.0
      %2603 = vmatprep.subr.mxu0 0.0
      %2604 = vmatpush1.msra.mxu0 0.0
      %2605 = vmatprep.subr.mxu0 0.0
      %2606 = vmatpush1.msra.mxu0 0.0
      %2607 = vmatprep.subr.mxu0 0.0
      %2608 = vmatpush1.msra.mxu0 0.0
      %2609 = vmatprep.subr.mxu0 0.0
      %2610 = vmatpush1.msra.mxu0 0.0
      %2611 = vmatprep.subr.mxu0 0.0
      %2612 = vmatpush1.msra.mxu0 0.0
      %2613 = vmatprep.subr.mxu0 0.0
      %2614 = vmatpush1.msra.mxu0 0.0
      %2615 = vmatprep.subr.mxu0 0.0
      %2616 = vmatpush1.msra.mxu0 0.0
      %2617 = vmatprep.subr.mxu0 0.0
      %2618 = vmatpush1.msra.mxu0 0.0
      %2619 = vmatprep.subr.mxu0 0.0
      %2620 = vmatpush1.msra.mxu0 0.0
      %2621 = vmatprep.subr.mxu0 0.0
      %2622 = vmatpush1.msra.mxu0 0.0
      %2623 = vmatprep.subr.mxu0 0.0
      %2624 = vmatpush1.msra.mxu0 0.0
      %2625 = vmatprep.subr.mxu0 0.0
      %2626 = vmatpush1.msra.mxu0 0.0
      %2627 = vmatprep.subr.mxu0 0.0
      %2628 = vmatpush1.msra.mxu0 0.0
      %2629 = vmatprep.subr.mxu0 0.0
      %2630 = vmatpush1.msra.mxu0 0.0
      %2631 = vmatprep.subr.mxu0 0.0
      %2632 = vmatpush1.msra.mxu0 0.0
      %2633 = vmatprep.subr.mxu0 0.0
      %2634 = vmatpush1.msra.mxu0 0.0
      %2635 = vmatprep.mubr.f32.mxu0 0.0
      %2636 = vmatmul.mubr.f32.gmra.mrb[0].mxu0 %v2464
      %v2637 = vpop.f32.mrb[0].mxu0
      %v2638 = vadd.f32 0.0, %v2637
      %v2639 = vpop.f32.mrb[0].mxu0
      %2640 = vmatprep.mubr.f32.mxu0 0.0
      %2641 = vmatmul.mubr.f32.gmra.mrb[0].mxu0 %v2467
      %v2642 = vpop.f32.mrb[0].mxu0
      %v2643 = vadd.f32 0.0, %v2642
      %v2644 = vpop.f32.mrb[0].mxu0
      %2645 = vmatprep.mubr.f32.mxu0 0.0
      %2646 = vmatmul.mubr.f32.gmra.mrb[0].mxu0 %v2470
      %v2647 = vpop.f32.mrb[0].mxu0
      %v2648 = vadd.f32 0.0, %v2647
      %v2649 = vpop.f32.mrb[0].mxu0
      %2650 = vmatprep.mubr.f32.mxu0 0.0
      %2651 = vmatmul.mubr.f32.gmra.mrb[0].mxu0 %v2473
      %v2652 = vpop.f32.mrb[0].mxu0
      %v2653 = vadd.f32 0.0, %v2652
      %v2654 = vpop.f32.mrb[0].mxu0
      %2655 = vmatprep.mubr.f32.mxu0 0.0
      %2656 = vmatmul.mubr.f32.gmra.mrb[0].mxu0 %v2476
      %v2657 = vpop.f32.mrb[0].mxu0
      %v2658 = vadd.f32 0.0, %v2657
      %v2659 = vpop.f32.mrb[0].mxu0
      %2660 = vmatprep.mubr.f32.mxu0 0.0
      %2661 = vmatmul.mubr.f32.gmra.mrb[0].mxu0 %v2479
      %v2662 = vpop.f32.mrb[0].mxu0
      %v2663 = vadd.f32 0.0, %v2662
      %v2664 = vpop.f32.mrb[0].mxu0
      %2665 = vmatprep.mubr.f32.mxu0 0.0
      %2666 = vmatmul.mubr.f32.gmra.mrb[0].mxu0 %v2482
      %v2667 = vpop.f32.mrb[0].mxu0
      %v2668 = vadd.f32 0.0, %v2667
      %v2669 = vpop.f32.mrb[0].mxu0
      %2670 = vmatprep.mubr.f32.mxu0 0.0
      %2671 = vmatmul.mubr.f32.gmra.mrb[0].mxu0 %v2485
      %v2672 = vpop.f32.mrb[0].mxu0
      %v2673 = vadd.f32 0.0, %v2672
      %v2674 = vpop.f32.mrb[0].mxu0
      %2675 = vmatprep.mubr.f32.mxu0 0.0
      %2676 = vmatmul.mubr.f32.gmra.mrb[0].mxu0 %v2488
      %v2677 = vpop.f32.mrb[0].mxu0
      %v2678 = vadd.f32 0.0, %v2677
      %v2679 = vpop.f32.mrb[0].mxu0
      %2680 = vmatprep.mubr.f32.mxu0 0.0
      %2681 = vmatmul.mubr.f32.gmra.mrb[0].mxu0 %v2491
      %v2682 = vpop.f32.mrb[0].mxu0
      %v2683 = vadd.f32 0.0, %v2682
      %v2684 = vpop.f32.mrb[0].mxu0
      %2685 = vmatprep.mubr.f32.mxu0 0.0
      %2686 = vmatmul.mubr.f32.gmra.mrb[0].mxu0 %v2494
      %v2687 = vpop.f32.mrb[0].mxu0
      %v2688 = vadd.f32 0.0, %v2687
      %v2689 = vpop.f32.mrb[0].mxu0
      %2690 = vmatprep.mubr.f32.mxu0 0.0
      %2691 = vmatmul.mubr.f32.gmra.mrb[0].mxu0 %v2497
      %v2692 = vpop.f32.mrb[0].mxu0
      %v2693 = vadd.f32 0.0, %v2692
      %v2694 = vpop.f32.mrb[0].mxu0
      %2695 = vmatprep.mubr.f32.mxu0 0.0
      %2696 = vmatmul.mubr.f32.gmra.mrb[0].mxu0 %v2500
      %v2697 = vpop.f32.mrb[0].mxu0
      %v2698 = vadd.f32 0.0, %v2697
      %v2699 = vpop.f32.mrb[0].mxu0
      %2700 = vmatprep.mubr.f32.mxu0 0.0
      %2701 = vmatmul.mubr.f32.gmra.mrb[0].mxu0 %v2503
      %v2702 = vpop.f32.mrb[0].mxu0
      %v2703 = vadd.f32 0.0, %v2702
      %v2704 = vpop.f32.mrb[0].mxu0
      %2705 = vmatprep.mubr.f32.mxu0 0.0
      %2706 = vmatmul.mubr.f32.gmra.mrb[0].mxu0 %v2506
      %v2707 = vpop.f32.mrb[0].mxu0
      %v2708 = vadd.f32 0.0, %v2707
      %v2709 = vpop.f32.mrb[0].mxu0
      %2710 = vmatprep.mubr.f32.mxu0 0.0
      %2711 = vmatmul.mubr.f32.gmra.mrb[0].mxu0 %v2509
      %v2712 = vpop.f32.mrb[0].mxu0
      %v2713 = vadd.f32 0.0, %v2712
      %v2714 = vpop.f32.mrb[0].mxu0
      %2715 = vmatprep.mubr.f32.mxu0 0.0
      %2716 = vmatmul.mubr.f32.gmra.mrb[0].mxu0 %v2512
      %v2717 = vpop.f32.mrb[0].mxu0
      %v2718 = vadd.f32 0.0, %v2717
      %v2719 = vpop.f32.mrb[0].mxu0
      %2720 = vmatprep.mubr.f32.mxu0 0.0
      %2721 = vmatmul.mubr.f32.gmra.mrb[0].mxu0 %v2515
      %v2722 = vpop.f32.mrb[0].mxu0
      %v2723 = vadd.f32 0.0, %v2722
      %v2724 = vpop.f32.mrb[0].mxu0
      %2725 = vmatprep.mubr.f32.mxu0 0.0
      %2726 = vmatmul.mubr.f32.gmra.mrb[0].mxu0 %v2518
      %v2727 = vpop.f32.mrb[0].mxu0
      %v2728 = vadd.f32 0.0, %v2727
      %v2729 = vpop.f32.mrb[0].mxu0
      %2730 = vmatprep.mubr.f32.mxu0 0.0
      %2731 = vmatmul.mubr.f32.gmra.mrb[0].mxu0 %v2521
      %v2732 = vpop.f32.mrb[0].mxu0
      %v2733 = vadd.f32 0.0, %v2732
      %v2734 = vpop.f32.mrb[0].mxu0
      %2735 = vmatprep.mubr.f32.mxu0 0.0
      %2736 = vmatmul.mubr.f32.gmra.mrb[0].mxu0 %v2524
      %v2737 = vpop.f32.mrb[0].mxu0
      %v2738 = vadd.f32 0.0, %v2737
      %v2739 = vpop.f32.mrb[0].mxu0
      %2740 = vmatprep.mubr.f32.mxu0 0.0
      %2741 = vmatmul.mubr.f32.gmra.mrb[0].mxu0 %v2527
      %v2742 = vpop.f32.mrb[0].mxu0
      %v2743 = vadd.f32 0.0, %v2742
      %v2744 = vpop.f32.mrb[0].mxu0
      %2745 = vmatprep.mubr.f32.mxu0 0.0
      %2746 = vmatmul.mubr.f32.gmra.mrb[0].mxu0 %v2530
      %v2747 = vpop.f32.mrb[0].mxu0
      %v2748 = vadd.f32 0.0, %v2747
      %v2749 = vpop.f32.mrb[0].mxu0
      %2750 = vmatprep.mubr.f32.mxu0 0.0
      %2751 = vmatmul.mubr.f32.gmra.mrb[0].mxu0 %v2533
      %v2752 = vpop.f32.mrb[0].mxu0
      %v2753 = vadd.f32 0.0, %v2752
      %v2754 = vpop.f32.mrb[0].mxu0
      %2755 = vmatprep.mubr.f32.mxu0 0.0
      %2756 = vmatmul.mubr.f32.gmra.mrb[0].mxu0 %v2536
      %v2757 = vpop.f32.mrb[0].mxu0
      %v2758 = vadd.f32 0.0, %v2757
      %v2759 = vpop.f32.mrb[0].mxu0
      %2760 = vmatprep.mubr.f32.mxu0 0.0
      %2761 = vmatmul.mubr.f32.gmra.mrb[0].mxu0 %v2539
      %v2762 = vpop.f32.mrb[0].mxu0
      %v2763 = vadd.f32 0.0, %v2762
      %v2764 = vpop.f32.mrb[0].mxu0
      %2765 = vmatprep.mubr.f32.mxu0 0.0
      %2766 = vmatmul.mubr.f32.gmra.mrb[0].mxu0 %v2542
      %v2767 = vpop.f32.mrb[0].mxu0
      %v2768 = vadd.f32 0.0, %v2767
      %v2769 = vpop.f32.mrb[0].mxu0
      %2770 = vmatprep.mubr.f32.mxu0 0.0
      %2771 = vmatmul.mubr.f32.gmra.mrb[0].mxu0 %v2545
      %v2772 = vpop.f32.mrb[0].mxu0
      %v2773 = vadd.f32 0.0, %v2772
      %v2774 = vpop.f32.mrb[0].mxu0
      %2775 = vmatprep.mubr.f32.mxu0 0.0
      %2776 = vmatmul.mubr.f32.gmra.mrb[0].mxu0 %v2548
      %v2777 = vpop.f32.mrb[0].mxu0
      %v2778 = vadd.f32 0.0, %v2777
      %v2779 = vpop.f32.mrb[0].mxu0
      %2780 = vmatprep.mubr.f32.mxu0 0.0
      %2781 = vmatmul.mubr.f32.gmra.mrb[0].mxu0 %v2551
      %v2782 = vpop.f32.mrb[0].mxu0
      %v2783 = vadd.f32 0.0, %v2782
      %v2784 = vpop.f32.mrb[0].mxu0
      %2785 = vmatprep.mubr.f32.mxu0 0.0
      %2786 = vmatmul.mubr.f32.gmra.mrb[0].mxu0 %v2554
      %v2787 = vpop.f32.mrb[0].mxu0
      %v2788 = vadd.f32 0.0, %v2787
      %v2789 = vpop.f32.mrb[0].mxu0
      %2790 = vmatprep.mubr.f32.mxu0 0.0
      %2791 = vmatmul.mubr.f32.gmra.mrb[0].mxu0 %v2557
      %v2792 = vpop.f32.mrb[0].mxu0
      %v2793 = vadd.f32 0.0, %v2792
      %v2794 = vpop.f32.mrb[0].mxu0
      %2795 = vmatprep.mubr.f32.mxu0 0.0
      %2796 = vmatmul.mubr.f32.gmra.mrb[0].mxu0 %v2560
      %v2797 = vpop.f32.mrb[0].mxu0
      %v2798 = vadd.f32 0.0, %v2797
      %v2799 = vpop.f32.mrb[0].mxu0
      %2800 = vmatprep.mubr.f32.mxu0 0.0
      %2801 = vmatmul.mubr.f32.gmra.mrb[0].mxu0 %v2563
      %v2802 = vpop.f32.mrb[0].mxu0
      %v2803 = vadd.f32 0.0, %v2802
      %v2804 = vpop.f32.mrb[0].mxu0
      %2805 = vmatprep.mubr.f32.mxu0 0.0
      %2806 = vmatmul.mubr.f32.gmra.mrb[0].mxu0 %v2566
      %v2807 = vpop.f32.mrb[0].mxu0
      %v2808 = vadd.f32 0.0, %v2807
      %v2809 = vpop.f32.mrb[0].mxu0
      %2810 = vmatprep.mubr.f32.mxu0 0.0
      %2811 = vmatmul.mubr.f32.gmra.mrb[0].mxu0 %v2569
      %v2812 = vpop.f32.mrb[0].mxu0
      %v2813 = vadd.f32 0.0, %v2812
      %v2814 = vpop.f32.mrb[0].mxu0
      %2815 = vdwg.mxu0
      %v2816 = vld [vmem:[%s9] sm:$0x1]
      %v2818 = vlaneseq
      %v2819 = vshrl.u32 %v2818, 7
      %v2820 = vsub.s32 0, %v2819
      %v2821 = vrot.slane %v2816, %v2820
      %v2823 = vmul.f32 %v2638, %v2821
      %v2824 = vmul.f32 %v2643, %v2821
      %v2825 = vmul.f32 %v2648, %v2821
      %v2826 = vmul.f32 %v2653, %v2821
      %v2827 = vmul.f32 %v2658, %v2821
      %v2828 = vmul.f32 %v2663, %v2821
      %v2829 = vmul.f32 %v2668, %v2821
      %v2830 = vmul.f32 %v2673, %v2821
      %v2831 = vmul.f32 %v2678, %v2821
      %v2832 = vmul.f32 %v2683, %v2821
      %v2833 = vmul.f32 %v2688, %v2821
      %v2834 = vmul.f32 %v2693, %v2821
      %v2835 = vmul.f32 %v2698, %v2821
      %v2836 = vmul.f32 %v2703, %v2821
      %v2837 = vmul.f32 %v2708, %v2821
      %v2838 = vmul.f32 %v2713, %v2821
      %v2839 = vmul.f32 %v2718, %v2821
      %v2840 = vmul.f32 %v2723, %v2821
      %v2841 = vmul.f32 %v2728, %v2821
      %v2842 = vmul.f32 %v2733, %v2821
      %v2843 = vmul.f32 %v2738, %v2821
      %v2844 = vmul.f32 %v2743, %v2821
      %v2845 = vmul.f32 %v2748, %v2821
      %v2846 = vmul.f32 %v2753, %v2821
      %v2847 = vmul.f32 %v2758, %v2821
      %v2848 = vmul.f32 %v2763, %v2821
      %v2849 = vmul.f32 %v2768, %v2821
      %v2850 = vmul.f32 %v2773, %v2821
      %v2851 = vmul.f32 %v2778, %v2821
      %v2852 = vmul.f32 %v2783, %v2821
      %v2853 = vmul.f32 %v2788, %v2821
      %v2854 = vmul.f32 %v2793, %v2821
      %v2855 = vmul.f32 %v2798, %v2821
      %v2856 = vmul.f32 %v2803, %v2821
      %v2857 = vmul.f32 %v2808, %v2821
      %v2858 = vmul.f32 %v2813, %v2821
      %v2859 = vld [vmem:[%s10] sm:$0x1]
      %v2861 = vlaneseq
      %v2862 = vshrl.u32 %v2861, 7
      %v2863 = vsub.s32 0, %v2862
      %v2864 = vrot.slane %v2859, %v2863
      %v2866 = vadd.f32 %v2823, %v2864
      %v2867 = vadd.f32 %v2824, %v2864
      %v2868 = vadd.f32 %v2825, %v2864
      %v2869 = vadd.f32 %v2826, %v2864
      %v2870 = vadd.f32 %v2827, %v2864
      %v2871 = vadd.f32 %v2828, %v2864
      %v2872 = vadd.f32 %v2829, %v2864
      %v2873 = vadd.f32 %v2830, %v2864
      %v2874 = vadd.f32 %v2831, %v2864
      %v2875 = vadd.f32 %v2832, %v2864
      %v2876 = vadd.f32 %v2833, %v2864
      %v2877 = vadd.f32 %v2834, %v2864
      %v2878 = vadd.f32 %v2835, %v2864
      %v2879 = vadd.f32 %v2836, %v2864
      %v2880 = vadd.f32 %v2837, %v2864
      %v2881 = vadd.f32 %v2838, %v2864
      %v2882 = vadd.f32 %v2839, %v2864
      %v2883 = vadd.f32 %v2840, %v2864
      %v2884 = vadd.f32 %v2841, %v2864
      %v2885 = vadd.f32 %v2842, %v2864
      %v2886 = vadd.f32 %v2843, %v2864
      %v2887 = vadd.f32 %v2844, %v2864
      %v2888 = vadd.f32 %v2845, %v2864
      %v2889 = vadd.f32 %v2846, %v2864
      %v2890 = vadd.f32 %v2847, %v2864
      %v2891 = vadd.f32 %v2848, %v2864
      %v2892 = vadd.f32 %v2849, %v2864
      %v2893 = vadd.f32 %v2850, %v2864
      %v2894 = vadd.f32 %v2851, %v2864
      %v2895 = vadd.f32 %v2852, %v2864
      %v2896 = vadd.f32 %v2853, %v2864
      %v2897 = vadd.f32 %v2854, %v2864
      %v2898 = vadd.f32 %v2855, %v2864
      %v2899 = vadd.f32 %v2856, %v2864
      %v2900 = vadd.f32 %v2857, %v2864
      %v2901 = vadd.f32 %v2858, %v2864
      %s2902 = sadd.s32 %s410, 19
      %s2903 = scalar_lea.vmem %s399, %s2902
      %v2904 = vld [vmem:[%s2903] sm:$0xff]
      %v2905 = vld [vmem:[%s2903 + $0x8] sm:$0xff]
      %v2906 = vld [vmem:[%s2903 + $0x10] sm:$0xff]
      %v2907 = vld [vmem:[%s2903 + $0x18] sm:$0xff]
      %v2908 = vld [vmem:[%s2903 + $0x20] sm:$0xff]
      %v2909 = vld [vmem:[%s2903 + $0x28] sm:$0xff]
      %v2910 = vld [vmem:[%s2903 + $0x30] sm:$0xff]
      %v2911 = vld [vmem:[%s2903 + $0x38] sm:$0xff]
      %v2912 = vld [vmem:[%s2903 + $0x40] sm:$0xff]
      %v2913 = vld [vmem:[%s2903 + $0x48] sm:$0xff]
      %v2914 = vld [vmem:[%s2903 + $0x50] sm:$0xff]
      %v2915 = vld [vmem:[%s2903 + $0x58] sm:$0xff]
      %v2916 = vld [vmem:[%s2903 + $0x60] sm:$0xff]
      %v2917 = vld [vmem:[%s2903 + $0x68] sm:$0xff]
      %v2918 = vld [vmem:[%s2903 + $0x70] sm:$0xff]
      %v2919 = vld [vmem:[%s2903 + $0x78] sm:$0xff]
      %v2920 = vld [vmem:[%s2903 + $0x80] sm:$0xff]
      %v2921 = vld [vmem:[%s2903 + $0x88] sm:$0xff]
      %v2922 = vld [vmem:[%s2903 + $0x90] sm:$0xff]
      %v2923 = vld [vmem:[%s2903 + $0x98] sm:$0xff]
      %v2924 = vld [vmem:[%s2903 + $0xa0] sm:$0xff]
      %v2925 = vld [vmem:[%s2903 + $0xa8] sm:$0xff]
      %v2926 = vld [vmem:[%s2903 + $0xb0] sm:$0xff]
      %v2927 = vld [vmem:[%s2903 + $0xb8] sm:$0xff]
      %v2928 = vld [vmem:[%s2903 + $0xc0] sm:$0xff]
      %v2929 = vld [vmem:[%s2903 + $0xc8] sm:$0xff]
      %v2930 = vld [vmem:[%s2903 + $0xd0] sm:$0xff]
      %v2931 = vld [vmem:[%s2903 + $0xd8] sm:$0xff]
      %v2932 = vld [vmem:[%s2903 + $0xe0] sm:$0xff]
      %v2933 = vld [vmem:[%s2903 + $0xe8] sm:$0xff]
      %v2934 = vld [vmem:[%s2903 + $0xf0] sm:$0xff]
      %v2935 = vld [vmem:[%s2903 + $0xf8] sm:$0xff]
      %v2936 = vld [vmem:[%s2903 + $0x100] sm:$0xff]
      %v2937 = vld [vmem:[%s2903 + $0x108] sm:$0xff]
      %v2938 = vld [vmem:[%s2903 + $0x110] sm:$0xff]
      %v2939 = vld [vmem:[%s2903 + $0x118] sm:$0xff]
      %v2940 = vadd.f32 %v2866, %v2904
      %v2941 = vadd.f32 %v2867, %v2905
      %v2942 = vadd.f32 %v2868, %v2906
      %v2943 = vadd.f32 %v2869, %v2907
      %v2944 = vadd.f32 %v2870, %v2908
      %v2945 = vadd.f32 %v2871, %v2909
      %v2946 = vadd.f32 %v2872, %v2910
      %v2947 = vadd.f32 %v2873, %v2911
      %v2948 = vadd.f32 %v2874, %v2912
      %v2949 = vadd.f32 %v2875, %v2913
      %v2950 = vadd.f32 %v2876, %v2914
      %v2951 = vadd.f32 %v2877, %v2915
      %v2952 = vadd.f32 %v2878, %v2916
      %v2953 = vadd.f32 %v2879, %v2917
      %v2954 = vadd.f32 %v2880, %v2918
      %v2955 = vadd.f32 %v2881, %v2919
      %v2956 = vadd.f32 %v2882, %v2920
      %v2957 = vadd.f32 %v2883, %v2921
      %v2958 = vadd.f32 %v2884, %v2922
      %v2959 = vadd.f32 %v2885, %v2923
      %v2960 = vadd.f32 %v2886, %v2924
      %v2961 = vadd.f32 %v2887, %v2925
      %v2962 = vadd.f32 %v2888, %v2926
      %v2963 = vadd.f32 %v2889, %v2927
      %v2964 = vadd.f32 %v2890, %v2928
      %v2965 = vadd.f32 %v2891, %v2929
      %v2966 = vadd.f32 %v2892, %v2930
      %v2967 = vadd.f32 %v2893, %v2931
      %v2968 = vadd.f32 %v2894, %v2932
      %v2969 = vadd.f32 %v2895, %v2933
      %v2970 = vadd.f32 %v2896, %v2934
      %v2971 = vadd.f32 %v2897, %v2935
      %v2972 = vadd.f32 %v2898, %v2936
      %v2973 = vadd.f32 %v2899, %v2937
      %v2974 = vadd.f32 %v2900, %v2938
      %v2975 = vadd.f32 %v2901, %v2939
      %2976 = vst.msk [vmem:[%s408] sm:$0xff] %vm456, %v2940
      %2977 = vst.msk [vmem:[%s408 + $0x8] sm:$0xff] %vm456, %v2941
      %2978 = vst.msk [vmem:[%s408 + $0x10] sm:$0xff] %vm456, %v2942
      %2979 = vst.msk [vmem:[%s408 + $0x18] sm:$0xff] %vm456, %v2943
      %2980 = vst.msk [vmem:[%s408 + $0x20] sm:$0xff] %vm456, %v2944
      %2981 = vst.msk [vmem:[%s408 + $0x28] sm:$0xff] %vm456, %v2945
      %2982 = vst.msk [vmem:[%s408 + $0x30] sm:$0xff] %vm456, %v2946
      %2983 = vst.msk [vmem:[%s408 + $0x38] sm:$0xff] %vm456, %v2947
      %2984 = vst.msk [vmem:[%s408 + $0x40] sm:$0xff] %vm456, %v2948
      %2985 = vst.msk [vmem:[%s408 + $0x48] sm:$0xff] %vm456, %v2949
      %2986 = vst.msk [vmem:[%s408 + $0x50] sm:$0xff] %vm456, %v2950
      %2987 = vst.msk [vmem:[%s408 + $0x58] sm:$0xff] %vm456, %v2951
      %2988 = vst.msk [vmem:[%s408 + $0x60] sm:$0xff] %vm456, %v2952
      %2989 = vst.msk [vmem:[%s408 + $0x68] sm:$0xff] %vm456, %v2953
      %2990 = vst.msk [vmem:[%s408 + $0x70] sm:$0xff] %vm456, %v2954
      %2991 = vst.msk [vmem:[%s408 + $0x78] sm:$0xff] %vm456, %v2955
      %2992 = vst.msk [vmem:[%s408 + $0x80] sm:$0xff] %vm456, %v2956
      %2993 = vst.msk [vmem:[%s408 + $0x88] sm:$0xff] %vm456, %v2957
      %2994 = vst.msk [vmem:[%s408 + $0x90] sm:$0xff] %vm456, %v2958
      %2995 = vst.msk [vmem:[%s408 + $0x98] sm:$0xff] %vm456, %v2959
      %2996 = vst.msk [vmem:[%s408 + $0xa0] sm:$0xff] %vm456, %v2960
      %2997 = vst.msk [vmem:[%s408 + $0xa8] sm:$0xff] %vm456, %v2961
      %2998 = vst.msk [vmem:[%s408 + $0xb0] sm:$0xff] %vm456, %v2962
      %2999 = vst.msk [vmem:[%s408 + $0xb8] sm:$0xff] %vm456, %v2963
      %3000 = vst.msk [vmem:[%s408 + $0xc0] sm:$0xff] %vm456, %v2964
      %3001 = vst.msk [vmem:[%s408 + $0xc8] sm:$0xff] %vm456, %v2965
      %3002 = vst.msk [vmem:[%s408 + $0xd0] sm:$0xff] %vm456, %v2966
      %3003 = vst.msk [vmem:[%s408 + $0xd8] sm:$0xff] %vm456, %v2967
      %3004 = vst.msk [vmem:[%s408 + $0xe0] sm:$0xff] %vm456, %v2968
      %3005 = vst.msk [vmem:[%s408 + $0xe8] sm:$0xff] %vm456, %v2969
      %3006 = vst.msk [vmem:[%s408 + $0xf0] sm:$0xff] %vm456, %v2970
      %3007 = vst.msk [vmem:[%s408 + $0xf8] sm:$0xff] %vm456, %v2971
      %3008 = vst.msk [vmem:[%s408 + $0x100] sm:$0xff] %vm456, %v2972
      %3009 = vst.msk [vmem:[%s408 + $0x108] sm:$0xff] %vm456, %v2973
      %3010 = vst.msk [vmem:[%s408 + $0x110] sm:$0xff] %vm456, %v2974
      %3011 = vst.msk [vmem:[%s408 + $0x118] sm:$0xff] %vm456, %v2975
      %s3012 = smul.u32 36, %s27
      %p3013 = scmp.lt.s32.totalorder %s26, 1
      %s3014 = scalar_select %p3013, %s26, 1
      %p3015 = scmp.lt.s32.totalorder %s3012, 35
      %s3016 = scalar_select %p3015, %s3012, 35
      %s3017 = smul.addr %s3014, 36
      %s3018 = sadd.s32 %s3016, %s3017
      %s3019 = smul.addr %s3018, 8
      %s3020 = scalar_lea.vmem %s11, %s3019
      // Predicated region
      $region65: #{tpu_custom_call.1} parent=63 // pred_check
        %p3021 = pneg %p290
      $region66: #{tpu_custom_call.1} parent=63 // pred_check_branch
        %3023 = sbr.rel (%p3021) target = $region68
      $region67: #{tpu_custom_call.1} parent=63 // pred_region
        %s3024 = smul.u32 36, %s27
      $region68: #{tpu_custom_call.1} parent=63 // pred_fallthru
        _
    $region64: #{tpu_custom_call.1} parent=5 // pred_fallthru
      _
    %p3025 = scmp.le.s32.totalorder 2, %s17
    // Predicated region
    $region69: #{tpu_custom_call.1} parent=5 // pred_check
      %p3026 = pneg %p3025
    $region70: #{tpu_custom_call.1} parent=5 // pred_check_branch
      %3028 = sbr.rel (%p3026) target = $region72
    $region71: #{tpu_custom_call.1} parent=5 // pred_region
      %s3029 = ssub.s32 %s17, 2
      // Predicated region
      $region73: #{tpu_custom_call.1} parent=71 // pred_check
        %p3030 = pneg %p296
      $region74: #{tpu_custom_call.1} parent=71 // pred_check_branch
        %3032 = sbr.rel (%p3030) target = $region76
      $region75: #{tpu_custom_call.1} parent=71 // pred_region
        %s3033 = smul.u32 36, %s29
        %p3034 = scmp.lt.s32.totalorder %s28, 1
        %s3035 = scalar_select %p3034, %s28, 1
        %p3036 = scmp.lt.s32.totalorder %s3033, 35
        %s3037 = scalar_select %p3036, %s3033, 35
        %s3038 = smul.addr %s3035, 36
        %s3039 = sadd.s32 %s3037, %s3038
        %s3040 = smul.addr %s3039, 8
        %s3041 = scalar_lea.vmem %s11, %s3040
      $region76: #{tpu_custom_call.1} parent=71 // pred_fallthru
        _
    $region72: #{tpu_custom_call.1} parent=5 // pred_fallthru
      _
  $region6: #{tpu_custom_call.1} parent=0 // loop_footer
    %s21 = sadd.s32 1, %s17
  $region7: #{tpu_custom_call.1} parent=0 // loop_footer_branch
    %16 = sbr.rel target = $region3
  $region8: #{tpu_custom_call.1} parent=0 // loop_exit
    _

</llo_original>
